<compile_context>
chip_gen: v6e
topology: v6e:2x2x1
jax: 0.10.0
libtpu: 0.0.40
codegen_flags: <defaults>
</compile_context>

<pallas_src>
import functools

import jax
import jax.numpy as jnp
from jax import lax
from jax.experimental import pallas as pl
from jax.experimental.pallas import tpu as pltpu

# ---- bert-tiny-like config (prajjwal1/bert-tiny => width=128) ----
HIDDEN = 128
NUM_LAYERS = 2
NUM_HEADS = 2
HEAD_DIM = HIDDEN // NUM_HEADS
INTERMEDIATE = 512
VOCAB = 100
MAX_POS = 32
TYPE_VOCAB = 2
LN_EPS = 1e-12


# ---------------- fused Pallas kernel (whole BERTClass after the embedding gather) --------------

def _bert_kernel(x_ref, mask_ref, emb_g_ref, emb_b_ref,
                 wqkv_ref, bqkv_ref, wo_ref, bo_ref, ln1g_ref, ln1b_ref,
                 wi_ref, bi_ref, wo2_ref, bo2_ref, ln2g_ref, ln2b_ref,
                 pw_ref, pb_ref, cw_ref, cb_ref, out_ref, *, B, S):
    H = HIDDEN
    f32 = jnp.float32
    bf16 = jnp.bfloat16

    def ln(x, g, b):
        mu = jnp.mean(x, axis=-1, keepdims=True)
        xc = x - mu
        var = jnp.mean(xc * xc, axis=-1, keepdims=True)
        return xc * lax.rsqrt(var + LN_EPS) * g + b

    def dense(x, w, b):
        # bf16 MXU operands, f32 accumulation.
        return jnp.dot(x.astype(bf16), w, preferred_element_type=f32) + b

    def gelu(y):
        # TODO(synk): HF BERT uses exact (erf) gelu; tanh approximation used here.
        c = jnp.float32(0.7978845608028654)  # sqrt(2/pi)
        return 0.5 * y * (1.0 + jnp.tanh(c * (y + 0.044715 * y * y * y)))

    scale = jnp.float32(1.0 / float(HEAD_DIM) ** 0.5)

    # Embedding LayerNorm (no residual input needed).
    h = ln(x_ref[...], emb_g_ref[...], emb_b_ref[...])                  # (M, H) f32

    for l in range(NUM_LAYERS):
        # ---- self-attention ----
        qkv = dense(h, wqkv_ref[l], bqkv_ref[l])                        # (M, 3H) f32
        ctx_rows = []
        for b in range(B):
            mb = mask_ref[b]                                            # (1, S) additive bias
            row = b * S
            heads = []
            for hd in range(NUM_HEADS):
                lo = hd * HEAD_DIM
                q = qkv[row:row + S, lo:lo + HEAD_DIM].astype(bf16)             # (S, Dh)
                k = qkv[row:row + S, H + lo:H + lo + HEAD_DIM].astype(bf16)     # (S, Dh)
                v = qkv[row:row + S, 2 * H + lo:2 * H + lo + HEAD_DIM].astype(bf16)
                # q @ k^T without materializing a transpose.
                s = lax.dot_general(q, k, (((1,), (1,)), ((), ())),
                                    preferred_element_type=f32)                 # (S, S)
                s = s * scale + mb
                s = s - jnp.max(s, axis=-1, keepdims=True)
                p = jnp.exp(s)
                p = p * pl.reciprocal(jnp.sum(p, axis=-1, keepdims=True), approx=True)
                heads.append(jnp.dot(p.astype(bf16), v, preferred_element_type=f32))
            ctx_rows.append(jnp.concatenate(heads, axis=-1))            # (S, H) lane-dense
        ctx = jnp.concatenate(ctx_rows, axis=0)                         # (M, H)

        attn_out = dense(ctx, wo_ref[l], bo_ref[l])
        h = ln(attn_out + h, ln1g_ref[l], ln1b_ref[l])                  # fused residual + LN1

        # ---- feed-forward ----
        inter = gelu(dense(h, wi_ref[l], bi_ref[l]))                    # (M, INTERMEDIATE)
        ffn = dense(inter, wo2_ref[l], bo2_ref[l])
        h = ln(ffn + h, ln2g_ref[l], ln2b_ref[l])                       # fused residual + LN2

    # ---- BERT pooler: tanh(W h[CLS] + b) ----
    cls = jnp.concatenate([h[b * S:b * S + 1, :] for b in range(B)], axis=0)    # (B, H)
    pooled = jnp.tanh(dense(cls, pw_ref[...], pb_ref[...]))

    # l2 = Dropout(0.3): identity in inference mode.
    # l3 Linear(width, 1) + l4 Sigmoid (stable sigmoid via tanh).
    logits = jnp.dot(pooled, cw_ref[...], preferred_element_type=f32) + cb_ref[...]
    out_ref[...] = 0.5 * (jnp.tanh(0.5 * logits) + 1.0)


def _fullspec(shape):
    n = len(shape)
    return pl.BlockSpec(tuple(shape), lambda i, n=n: (0,) * n)


# ---------------- Parameters (deterministic synthetic init, f32 masters) ----------------

def init_params(key):
    keys = iter(jax.random.split(key, 256))

    def nrm(shape, std=0.02):
        return std * jax.random.normal(next(keys), shape, dtype=jnp.float32)

    params = {
        "word_emb": nrm((VOCAB, HIDDEN)),
        "pos_emb": nrm((MAX_POS, HIDDEN)),
        "type_emb": nrm((TYPE_VOCAB, HIDDEN)),
        "emb_ln_g": jnp.ones((1, HIDDEN), jnp.float32),
        "emb_ln_b": jnp.zeros((1, HIDDEN), jnp.float32),
        "layers": [],
        "pool_w": nrm((HIDDEN, HIDDEN)),
        "pool_b": jnp.zeros((1, HIDDEN), jnp.float32),
        "cls_w": nrm((HIDDEN, 1)),
        "cls_b": jnp.zeros((1, 1), jnp.float32),
    }
    for _ in range(NUM_LAYERS):
        params["layers"].append({
            "wq": nrm((HIDDEN, HIDDEN)), "bq": jnp.zeros((1, HIDDEN), jnp.float32),
            "wk": nrm((HIDDEN, HIDDEN)), "bk": jnp.zeros((1, HIDDEN), jnp.float32),
            "wv": nrm((HIDDEN, HIDDEN)), "bv": jnp.zeros((1, HIDDEN), jnp.float32),
            "wo": nrm((HIDDEN, HIDDEN)), "bo": jnp.zeros((1, HIDDEN), jnp.float32),
            "ln1_g": jnp.ones((1, HIDDEN), jnp.float32),
            "ln1_b": jnp.zeros((1, HIDDEN), jnp.float32),
            "wi": nrm((HIDDEN, INTERMEDIATE)), "bi": jnp.zeros((1, INTERMEDIATE), jnp.float32),
            "wo2": nrm((INTERMEDIATE, HIDDEN)), "bo2": jnp.zeros((1, HIDDEN), jnp.float32),
            "ln2_g": jnp.ones((1, HIDDEN), jnp.float32),
            "ln2_b": jnp.zeros((1, HIDDEN), jnp.float32),
        })
    return params


# ---------------- Forward pass (== BERTClass.forward) ----------------

@jax.jit
def bert_class_forward(params, ids, mask, token_type_ids):
    B, S = ids.shape
    H = HIDDEN
    M = B * S

    # Embedding gathers stay in plain JAX (no clean Pallas equivalent for tiny table gathers).
    emb = (jnp.take(params["word_emb"], ids, axis=0)
           + params["pos_emb"][None, :S, :]
           + jnp.take(params["type_emb"], token_type_ids, axis=0))
    x = emb.reshape(M, H).astype(jnp.float32)

    # Extended attention mask: (1 - mask) * -10000, broadcast over heads/query positions.
    mask_bias = ((1.0 - mask.astype(jnp.float32)) * -10000.0)[:, None, :]       # (B, 1, S)

    # Stack + fuse per-layer weights (bf16 for MXU operands; biases / LN params stay f32).
    L = params["layers"]
    stack = lambda key: jnp.stack([lp[key] for lp in L], axis=0)
    wqkv = jnp.stack([jnp.concatenate([lp["wq"], lp["wk"], lp["wv"]], axis=1)
                      for lp in L], axis=0).astype(jnp.bfloat16)                # (L, H, 3H)
    bqkv = jnp.stack([jnp.concatenate([lp["bq"], lp["bk"], lp["bv"]], axis=1)
                      for lp in L], axis=0)                                     # (L, 1, 3H)
    wo = stack("wo").astype(jnp.bfloat16);  bo = stack("bo")
    ln1g = stack("ln1_g");                  ln1b = stack("ln1_b")
    wi = stack("wi").astype(jnp.bfloat16);  bi = stack("bi")
    wo2 = stack("wo2").astype(jnp.bfloat16); bo2 = stack("bo2")
    ln2g = stack("ln2_g");                  ln2b = stack("ln2_b")
    pw = params["pool_w"].astype(jnp.bfloat16)
    pb = params["pool_b"]
    cw = params["cls_w"]     # (H, 1) — trivial matmul, keep f32
    cb = params["cls_b"]

    args = (x, mask_bias, params["emb_ln_g"], params["emb_ln_b"],
            wqkv, bqkv, wo, bo, ln1g, ln1b, wi, bi, wo2, bo2, ln2g, ln2b,
            pw, pb, cw, cb)

    return pl.pallas_call(
        functools.partial(_bert_kernel, B=B, S=S),
        out_shape=jax.ShapeDtypeStruct((B, 1), jnp.float32),
        grid=(1,),
        in_specs=[_fullspec(a.shape) for a in args],
        out_specs=_fullspec((B, 1)),
        compiler_params=pltpu.CompilerParams(dimension_semantics=("arbitrary",)),
    )(*args)


if __name__ == "__main__":
    key = jax.random.PRNGKey(0)
    pkey, ikey = jax.random.split(key)
    params = init_params(pkey)

    B, S = 2, 8
    ids = jax.random.randint(ikey, (B, S), 0, VOCAB, dtype=jnp.int32)
    mask = jnp.ones((B, S), dtype=jnp.int32).at[1, 6:].set(0)   # pad last 2 tokens of seq 1
    token_type_ids = jnp.zeros((B, S), dtype=jnp.int32)

    out = bert_class_forward(params, ids, mask, token_type_ids)
    out = jax.block_until_ready(out)
    assert out.shape == (B, 1) and out.dtype == jnp.float32
    assert bool(jnp.all((out >= 0.0) & (out <= 1.0)))
    print("KERNEL_OK")
</pallas_src>

<mosaic_0001>
module attributes {stable_mosaic.version = 11 : i64} {
  func.func @_bert_kernel(%arg0: i32, %arg1: memref<16x128xf32, #tpu.memory_space<vmem>>, %arg2: memref<2x1x8xf32, #tpu.memory_space<vmem>>, %arg3: memref<1x128xf32, #tpu.memory_space<vmem>>, %arg4: memref<1x128xf32, #tpu.memory_space<vmem>>, %arg5: memref<2x128x384xbf16, #tpu.memory_space<vmem>>, %arg6: memref<2x1x384xf32, #tpu.memory_space<vmem>>, %arg7: memref<2x128x128xbf16, #tpu.memory_space<vmem>>, %arg8: memref<2x1x128xf32, #tpu.memory_space<vmem>>, %arg9: memref<2x1x128xf32, #tpu.memory_space<vmem>>, %arg10: memref<2x1x128xf32, #tpu.memory_space<vmem>>, %arg11: memref<2x128x512xbf16, #tpu.memory_space<vmem>>, %arg12: memref<2x1x512xf32, #tpu.memory_space<vmem>>, %arg13: memref<2x512x128xbf16, #tpu.memory_space<vmem>>, %arg14: memref<2x1x128xf32, #tpu.memory_space<vmem>>, %arg15: memref<2x1x128xf32, #tpu.memory_space<vmem>>, %arg16: memref<2x1x128xf32, #tpu.memory_space<vmem>>, %arg17: memref<128x128xbf16, #tpu.memory_space<vmem>>, %arg18: memref<1x128xf32, #tpu.memory_space<vmem>>, %arg19: memref<128x1xf32, #tpu.memory_space<vmem>>, %arg20: memref<1x1xf32, #tpu.memory_space<vmem>>, %arg21: memref<2x1xf32, #tpu.memory_space<vmem>>) attributes {dimension_semantics = [#tpu.dimension_semantics<arbitrary>], iteration_bounds = array<i64: 1>, scalar_prefetch = 0 : i64, scratch_operands = 0 : i64, tpu.core_type = #tpu.core_type<tc>, window_params = [{pipeline_mode = #tpu.pipeline_mode<synchronous>, transform_indices = @transform_0, window_bounds = array<i64: 16, 128>}, {pipeline_mode = #tpu.pipeline_mode<synchronous>, transform_indices = @transform_1, window_bounds = array<i64: 2, 1, 8>}, {pipeline_mode = #tpu.pipeline_mode<synchronous>, transform_indices = @transform_2, window_bounds = array<i64: 1, 128>}, {pipeline_mode = #tpu.pipeline_mode<synchronous>, transform_indices = @transform_3, window_bounds = array<i64: 1, 128>}, {pipeline_mode = #tpu.pipeline_mode<synchronous>, transform_indices = @transform_4, window_bounds = array<i64: 2, 128, 384>}, {pipeline_mode = #tpu.pipeline_mode<synchronous>, transform_indices = @transform_5, window_bounds = array<i64: 2, 1, 384>}, {pipeline_mode = #tpu.pipeline_mode<synchronous>, transform_indices = @transform_6, window_bounds = array<i64: 2, 128, 128>}, {pipeline_mode = #tpu.pipeline_mode<synchronous>, transform_indices = @transform_7, window_bounds = array<i64: 2, 1, 128>}, {pipeline_mode = #tpu.pipeline_mode<synchronous>, transform_indices = @transform_8, window_bounds = array<i64: 2, 1, 128>}, {pipeline_mode = #tpu.pipeline_mode<synchronous>, transform_indices = @transform_9, window_bounds = array<i64: 2, 1, 128>}, {pipeline_mode = #tpu.pipeline_mode<synchronous>, transform_indices = @transform_10, window_bounds = array<i64: 2, 128, 512>}, {pipeline_mode = #tpu.pipeline_mode<synchronous>, transform_indices = @transform_11, window_bounds = array<i64: 2, 1, 512>}, {pipeline_mode = #tpu.pipeline_mode<synchronous>, transform_indices = @transform_12, window_bounds = array<i64: 2, 512, 128>}, {pipeline_mode = #tpu.pipeline_mode<synchronous>, transform_indices = @transform_13, window_bounds = array<i64: 2, 1, 128>}, {pipeline_mode = #tpu.pipeline_mode<synchronous>, transform_indices = @transform_14, window_bounds = array<i64: 2, 1, 128>}, {pipeline_mode = #tpu.pipeline_mode<synchronous>, transform_indices = @transform_15, window_bounds = array<i64: 2, 1, 128>}, {pipeline_mode = #tpu.pipeline_mode<synchronous>, transform_indices = @transform_16, window_bounds = array<i64: 128, 128>}, {pipeline_mode = #tpu.pipeline_mode<synchronous>, transform_indices = @transform_17, window_bounds = array<i64: 1, 128>}, {pipeline_mode = #tpu.pipeline_mode<synchronous>, transform_indices = @transform_18, window_bounds = array<i64: 128, 1>}, {pipeline_mode = #tpu.pipeline_mode<synchronous>, transform_indices = @transform_19, window_bounds = array<i64: 1, 1>}, {pipeline_mode = #tpu.pipeline_mode<synchronous>, transform_indices = @transform_20, window_bounds = array<i64: 2, 1>}]} {
    %c0 = arith.constant 0 : index
    %c0_0 = arith.constant 0 : index
    %0 = vector.load %arg1[%c0, %c0_0] : memref<16x128xf32, #tpu.memory_space<vmem>>, vector<16x128xf32>
    %c0_1 = arith.constant 0 : index
    %c0_2 = arith.constant 0 : index
    %1 = vector.load %arg3[%c0_1, %c0_2] : memref<1x128xf32, #tpu.memory_space<vmem>>, vector<1x128xf32>
    %c0_3 = arith.constant 0 : index
    %c0_4 = arith.constant 0 : index
    %2 = vector.load %arg4[%c0_3, %c0_4] : memref<1x128xf32, #tpu.memory_space<vmem>>, vector<1x128xf32>
    %cst = arith.constant dense<0.000000e+00> : vector<16xf32>
    %3 = vector.multi_reduction <add>, %0, %cst [1] : vector<16x128xf32> to vector<16xf32>
    %4 = vector.shape_cast %3 : vector<16xf32> to vector<16x1xf32>
    %cst_5 = arith.constant 1.280000e+02 : f32
    %5 = vector.broadcast %cst_5 : f32 to vector<16x1xf32>
    %6 = arith.divf %4, %5 : vector<16x1xf32>
    %7 = vector.broadcast %6 : vector<16x1xf32> to vector<16x128xf32>
    %8 = arith.subf %0, %7 : vector<16x128xf32>
    %9 = arith.mulf %8, %8 : vector<16x128xf32>
    %cst_6 = arith.constant dense<0.000000e+00> : vector<16xf32>
    %10 = vector.multi_reduction <add>, %9, %cst_6 [1] : vector<16x128xf32> to vector<16xf32>
    %11 = vector.shape_cast %10 : vector<16xf32> to vector<16x1xf32>
    %cst_7 = arith.constant 1.280000e+02 : f32
    %12 = vector.broadcast %cst_7 : f32 to vector<16x1xf32>
    %13 = arith.divf %11, %12 : vector<16x1xf32>
    %cst_8 = arith.constant 9.99999996E-13 : f32
    %14 = vector.broadcast %cst_8 : f32 to vector<16x1xf32>
    %15 = arith.addf %13, %14 : vector<16x1xf32>
    %16 = math.rsqrt %15 : vector<16x1xf32>
    %17 = vector.broadcast %16 : vector<16x1xf32> to vector<16x128xf32>
    %18 = arith.mulf %8, %17 : vector<16x128xf32>
    %19 = vector.broadcast %1 : vector<1x128xf32> to vector<16x128xf32>
    %20 = arith.mulf %18, %19 : vector<16x128xf32>
    %21 = vector.broadcast %2 : vector<1x128xf32> to vector<16x128xf32>
    %22 = arith.addf %20, %21 : vector<16x128xf32>
    %c0_9 = arith.constant 0 : index
    %c0_10 = arith.constant 0 : index
    %c0_11 = arith.constant 0 : index
    %23 = vector.load %arg5[%c0_9, %c0_10, %c0_11] : memref<2x128x384xbf16, #tpu.memory_space<vmem>>, vector<1x128x384xbf16>
    %24 = vector.shape_cast %23 : vector<1x128x384xbf16> to vector<128x384xbf16>
    %c0_12 = arith.constant 0 : index
    %c0_13 = arith.constant 0 : index
    %c0_14 = arith.constant 0 : index
    %25 = vector.load %arg6[%c0_12, %c0_13, %c0_14] : memref<2x1x384xf32, #tpu.memory_space<vmem>>, vector<1x1x384xf32>
    %26 = vector.shape_cast %25 : vector<1x1x384xf32> to vector<1x384xf32>
    %27 = arith.truncf %22 : vector<16x128xf32> to vector<16x128xbf16>
    %cst_15 = arith.constant dense<0.000000e+00> : vector<16x384xf32>
    %28 = tpu.matmul %27, %24, %cst_15 {dimension_numbers = #tpu.dot_dimension_numbers<[1], [0], [0], [1], [0, 0, 1, 1], [], []>} : vector<16x128xbf16>, vector<128x384xbf16>, vector<16x384xf32> -> vector<16x384xf32>
    %29 = vector.broadcast %26 : vector<1x384xf32> to vector<16x384xf32>
    %30 = arith.addf %28, %29 : vector<16x384xf32>
    %c0_16 = arith.constant 0 : index
    %c0_17 = arith.constant 0 : index
    %c0_18 = arith.constant 0 : index
    %31 = vector.load %arg2[%c0_16, %c0_17, %c0_18] : memref<2x1x8xf32, #tpu.memory_space<vmem>>, vector<1x1x8xf32>
    %32 = vector.shape_cast %31 : vector<1x1x8xf32> to vector<1x8xf32>
    %33 = vector.extract_strided_slice %30 {offsets = [0, 0], sizes = [8, 64], strides = [1, 1]} : vector<16x384xf32> to vector<8x64xf32>
    %34 = arith.truncf %33 : vector<8x64xf32> to vector<8x64xbf16>
    %35 = vector.extract_strided_slice %30 {offsets = [0, 128], sizes = [8, 64], strides = [1, 1]} : vector<16x384xf32> to vector<8x64xf32>
    %36 = arith.truncf %35 : vector<8x64xf32> to vector<8x64xbf16>
    %37 = vector.extract_strided_slice %30 {offsets = [0, 256], sizes = [8, 64], strides = [1, 1]} : vector<16x384xf32> to vector<8x64xf32>
    %38 = arith.truncf %37 : vector<8x64xf32> to vector<8x64xbf16>
    %cst_19 = arith.constant dense<0.000000e+00> : vector<8x8xf32>
    %39 = tpu.matmul %34, %36, %cst_19 {dimension_numbers = #tpu.dot_dimension_numbers<[1], [1], [0], [0], [0, 0, 1, 0], [], []>} : vector<8x64xbf16>, vector<8x64xbf16>, vector<8x8xf32> -> vector<8x8xf32>
    %cst_20 = arith.constant 1.250000e-01 : f32
    %40 = vector.broadcast %cst_20 : f32 to vector<8x8xf32>
    %41 = arith.mulf %39, %40 : vector<8x8xf32>
    %42 = vector.broadcast %32 : vector<1x8xf32> to vector<8x8xf32>
    %43 = arith.addf %41, %42 : vector<8x8xf32>
    %cst_21 = arith.constant dense<0xFF800000> : vector<8xf32>
    %44 = vector.multi_reduction <maximumf>, %43, %cst_21 [1] : vector<8x8xf32> to vector<8xf32>
    %45 = vector.shape_cast %44 : vector<8xf32> to vector<8x1xf32>
    %46 = vector.broadcast %45 : vector<8x1xf32> to vector<8x8xf32>
    %47 = arith.subf %43, %46 : vector<8x8xf32>
    %48 = math.exp %47 : vector<8x8xf32>
    %cst_22 = arith.constant dense<0.000000e+00> : vector<8xf32>
    %49 = vector.multi_reduction <add>, %48, %cst_22 [1] : vector<8x8xf32> to vector<8xf32>
    %50 = vector.shape_cast %49 : vector<8xf32> to vector<8x1xf32>
    %51 = tpu.reciprocal %50 {approx = true} : vector<8x1xf32> -> vector<8x1xf32>
    %52 = vector.broadcast %51 : vector<8x1xf32> to vector<8x8xf32>
    %53 = arith.mulf %48, %52 : vector<8x8xf32>
    %54 = arith.truncf %53 : vector<8x8xf32> to vector<8x8xbf16>
    %cst_23 = arith.constant dense<0.000000e+00> : vector<8x64xf32>
    %55 = tpu.matmul %54, %38, %cst_23 {dimension_numbers = #tpu.dot_dimension_numbers<[1], [0], [0], [1], [0, 0, 1, 1], [], []>} : vector<8x8xbf16>, vector<8x64xbf16>, vector<8x64xf32> -> vector<8x64xf32>
    %56 = vector.extract_strided_slice %30 {offsets = [0, 64], sizes = [8, 64], strides = [1, 1]} : vector<16x384xf32> to vector<8x64xf32>
    %57 = arith.truncf %56 : vector<8x64xf32> to vector<8x64xbf16>
    %58 = vector.extract_strided_slice %30 {offsets = [0, 192], sizes = [8, 64], strides = [1, 1]} : vector<16x384xf32> to vector<8x64xf32>
    %59 = arith.truncf %58 : vector<8x64xf32> to vector<8x64xbf16>
    %60 = vector.extract_strided_slice %30 {offsets = [0, 320], sizes = [8, 64], strides = [1, 1]} : vector<16x384xf32> to vector<8x64xf32>
    %61 = arith.truncf %60 : vector<8x64xf32> to vector<8x64xbf16>
    %cst_24 = arith.constant dense<0.000000e+00> : vector<8x8xf32>
    %62 = tpu.matmul %57, %59, %cst_24 {dimension_numbers = #tpu.dot_dimension_numbers<[1], [1], [0], [0], [0, 0, 1, 0], [], []>} : vector<8x64xbf16>, vector<8x64xbf16>, vector<8x8xf32> -> vector<8x8xf32>
    %cst_25 = arith.constant 1.250000e-01 : f32
    %63 = vector.broadcast %cst_25 : f32 to vector<8x8xf32>
    %64 = arith.mulf %62, %63 : vector<8x8xf32>
    %65 = vector.broadcast %32 : vector<1x8xf32> to vector<8x8xf32>
    %66 = arith.addf %64, %65 : vector<8x8xf32>
    %cst_26 = arith.constant dense<0xFF800000> : vector<8xf32>
    %67 = vector.multi_reduction <maximumf>, %66, %cst_26 [1] : vector<8x8xf32> to vector<8xf32>
    %68 = vector.shape_cast %67 : vector<8xf32> to vector<8x1xf32>
    %69 = vector.broadcast %68 : vector<8x1xf32> to vector<8x8xf32>
    %70 = arith.subf %66, %69 : vector<8x8xf32>
    %71 = math.exp %70 : vector<8x8xf32>
    %cst_27 = arith.constant dense<0.000000e+00> : vector<8xf32>
    %72 = vector.multi_reduction <add>, %71, %cst_27 [1] : vector<8x8xf32> to vector<8xf32>
    %73 = vector.shape_cast %72 : vector<8xf32> to vector<8x1xf32>
    %74 = tpu.reciprocal %73 {approx = true} : vector<8x1xf32> -> vector<8x1xf32>
    %75 = vector.broadcast %74 : vector<8x1xf32> to vector<8x8xf32>
    %76 = arith.mulf %71, %75 : vector<8x8xf32>
    %77 = arith.truncf %76 : vector<8x8xf32> to vector<8x8xbf16>
    %cst_28 = arith.constant dense<0.000000e+00> : vector<8x64xf32>
    %78 = tpu.matmul %77, %61, %cst_28 {dimension_numbers = #tpu.dot_dimension_numbers<[1], [0], [0], [1], [0, 0, 1, 1], [], []>} : vector<8x8xbf16>, vector<8x64xbf16>, vector<8x64xf32> -> vector<8x64xf32>
    %79 = tpu.concatenate %55, %78 in 1 : vector<8x64xf32>, vector<8x64xf32> -> vector<8x128xf32>
    %c1 = arith.constant 1 : index
    %c0_29 = arith.constant 0 : index
    %c0_30 = arith.constant 0 : index
    %80 = vector.load %arg2[%c1, %c0_29, %c0_30] : memref<2x1x8xf32, #tpu.memory_space<vmem>>, vector<1x1x8xf32>
    %81 = vector.shape_cast %80 : vector<1x1x8xf32> to vector<1x8xf32>
    %82 = vector.extract_strided_slice %30 {offsets = [8, 0], sizes = [8, 64], strides = [1, 1]} : vector<16x384xf32> to vector<8x64xf32>
    %83 = arith.truncf %82 : vector<8x64xf32> to vector<8x64xbf16>
    %84 = vector.extract_strided_slice %30 {offsets = [8, 128], sizes = [8, 64], strides = [1, 1]} : vector<16x384xf32> to vector<8x64xf32>
    %85 = arith.truncf %84 : vector<8x64xf32> to vector<8x64xbf16>
    %86 = vector.extract_strided_slice %30 {offsets = [8, 256], sizes = [8, 64], strides = [1, 1]} : vector<16x384xf32> to vector<8x64xf32>
    %87 = arith.truncf %86 : vector<8x64xf32> to vector<8x64xbf16>
    %cst_31 = arith.constant dense<0.000000e+00> : vector<8x8xf32>
    %88 = tpu.matmul %83, %85, %cst_31 {dimension_numbers = #tpu.dot_dimension_numbers<[1], [1], [0], [0], [0, 0, 1, 0], [], []>} : vector<8x64xbf16>, vector<8x64xbf16>, vector<8x8xf32> -> vector<8x8xf32>
    %cst_32 = arith.constant 1.250000e-01 : f32
    %89 = vector.broadcast %cst_32 : f32 to vector<8x8xf32>
    %90 = arith.mulf %88, %89 : vector<8x8xf32>
    %91 = vector.broadcast %81 : vector<1x8xf32> to vector<8x8xf32>
    %92 = arith.addf %90, %91 : vector<8x8xf32>
    %cst_33 = arith.constant dense<0xFF800000> : vector<8xf32>
    %93 = vector.multi_reduction <maximumf>, %92, %cst_33 [1] : vector<8x8xf32> to vector<8xf32>
    %94 = vector.shape_cast %93 : vector<8xf32> to vector<8x1xf32>
    %95 = vector.broadcast %94 : vector<8x1xf32> to vector<8x8xf32>
    %96 = arith.subf %92, %95 : vector<8x8xf32>
    %97 = math.exp %96 : vector<8x8xf32>
    %cst_34 = arith.constant dense<0.000000e+00> : vector<8xf32>
    %98 = vector.multi_reduction <add>, %97, %cst_34 [1] : vector<8x8xf32> to vector<8xf32>
    %99 = vector.shape_cast %98 : vector<8xf32> to vector<8x1xf32>
    %100 = tpu.reciprocal %99 {approx = true} : vector<8x1xf32> -> vector<8x1xf32>
    %101 = vector.broadcast %100 : vector<8x1xf32> to vector<8x8xf32>
    %102 = arith.mulf %97, %101 : vector<8x8xf32>
    %103 = arith.truncf %102 : vector<8x8xf32> to vector<8x8xbf16>
    %cst_35 = arith.constant dense<0.000000e+00> : vector<8x64xf32>
    %104 = tpu.matmul %103, %87, %cst_35 {dimension_numbers = #tpu.dot_dimension_numbers<[1], [0], [0], [1], [0, 0, 1, 1], [], []>} : vector<8x8xbf16>, vector<8x64xbf16>, vector<8x64xf32> -> vector<8x64xf32>
    %105 = vector.extract_strided_slice %30 {offsets = [8, 64], sizes = [8, 64], strides = [1, 1]} : vector<16x384xf32> to vector<8x64xf32>
    %106 = arith.truncf %105 : vector<8x64xf32> to vector<8x64xbf16>
    %107 = vector.extract_strided_slice %30 {offsets = [8, 192], sizes = [8, 64], strides = [1, 1]} : vector<16x384xf32> to vector<8x64xf32>
    %108 = arith.truncf %107 : vector<8x64xf32> to vector<8x64xbf16>
    %109 = vector.extract_strided_slice %30 {offsets = [8, 320], sizes = [8, 64], strides = [1, 1]} : vector<16x384xf32> to vector<8x64xf32>
    %110 = arith.truncf %109 : vector<8x64xf32> to vector<8x64xbf16>
    %cst_36 = arith.constant dense<0.000000e+00> : vector<8x8xf32>
    %111 = tpu.matmul %106, %108, %cst_36 {dimension_numbers = #tpu.dot_dimension_numbers<[1], [1], [0], [0], [0, 0, 1, 0], [], []>} : vector<8x64xbf16>, vector<8x64xbf16>, vector<8x8xf32> -> vector<8x8xf32>
    %cst_37 = arith.constant 1.250000e-01 : f32
    %112 = vector.broadcast %cst_37 : f32 to vector<8x8xf32>
    %113 = arith.mulf %111, %112 : vector<8x8xf32>
    %114 = vector.broadcast %81 : vector<1x8xf32> to vector<8x8xf32>
    %115 = arith.addf %113, %114 : vector<8x8xf32>
    %cst_38 = arith.constant dense<0xFF800000> : vector<8xf32>
    %116 = vector.multi_reduction <maximumf>, %115, %cst_38 [1] : vector<8x8xf32> to vector<8xf32>
    %117 = vector.shape_cast %116 : vector<8xf32> to vector<8x1xf32>
    %118 = vector.broadcast %117 : vector<8x1xf32> to vector<8x8xf32>
    %119 = arith.subf %115, %118 : vector<8x8xf32>
    %120 = math.exp %119 : vector<8x8xf32>
    %cst_39 = arith.constant dense<0.000000e+00> : vector<8xf32>
    %121 = vector.multi_reduction <add>, %120, %cst_39 [1] : vector<8x8xf32> to vector<8xf32>
    %122 = vector.shape_cast %121 : vector<8xf32> to vector<8x1xf32>
    %123 = tpu.reciprocal %122 {approx = true} : vector<8x1xf32> -> vector<8x1xf32>
    %124 = vector.broadcast %123 : vector<8x1xf32> to vector<8x8xf32>
    %125 = arith.mulf %120, %124 : vector<8x8xf32>
    %126 = arith.truncf %125 : vector<8x8xf32> to vector<8x8xbf16>
    %cst_40 = arith.constant dense<0.000000e+00> : vector<8x64xf32>
    %127 = tpu.matmul %126, %110, %cst_40 {dimension_numbers = #tpu.dot_dimension_numbers<[1], [0], [0], [1], [0, 0, 1, 1], [], []>} : vector<8x8xbf16>, vector<8x64xbf16>, vector<8x64xf32> -> vector<8x64xf32>
    %128 = tpu.concatenate %104, %127 in 1 : vector<8x64xf32>, vector<8x64xf32> -> vector<8x128xf32>
    %129 = tpu.concatenate %79, %128 in 0 : vector<8x128xf32>, vector<8x128xf32> -> vector<16x128xf32>
    %c0_41 = arith.constant 0 : index
    %c0_42 = arith.constant 0 : index
    %c0_43 = arith.constant 0 : index
    %130 = vector.load %arg7[%c0_41, %c0_42, %c0_43] : memref<2x128x128xbf16, #tpu.memory_space<vmem>>, vector<1x128x128xbf16>
    %131 = vector.shape_cast %130 : vector<1x128x128xbf16> to vector<128x128xbf16>
    %c0_44 = arith.constant 0 : index
    %c0_45 = arith.constant 0 : index
    %c0_46 = arith.constant 0 : index
    %132 = vector.load %arg8[%c0_44, %c0_45, %c0_46] : memref<2x1x128xf32, #tpu.memory_space<vmem>>, vector<1x1x128xf32>
    %133 = vector.shape_cast %132 : vector<1x1x128xf32> to vector<1x128xf32>
    %134 = arith.truncf %129 : vector<16x128xf32> to vector<16x128xbf16>
    %cst_47 = arith.constant dense<0.000000e+00> : vector<16x128xf32>
    %135 = tpu.matmul %134, %131, %cst_47 {dimension_numbers = #tpu.dot_dimension_numbers<[1], [0], [0], [1], [0, 0, 1, 1], [], []>} : vector<16x128xbf16>, vector<128x128xbf16>, vector<16x128xf32> -> vector<16x128xf32>
    %136 = vector.broadcast %133 : vector<1x128xf32> to vector<16x128xf32>
    %137 = arith.addf %135, %136 : vector<16x128xf32>
    %138 = arith.addf %137, %22 : vector<16x128xf32>
    %c0_48 = arith.constant 0 : index
    %c0_49 = arith.constant 0 : index
    %c0_50 = arith.constant 0 : index
    %139 = vector.load %arg9[%c0_48, %c0_49, %c0_50] : memref<2x1x128xf32, #tpu.memory_space<vmem>>, vector<1x1x128xf32>
    %140 = vector.shape_cast %139 : vector<1x1x128xf32> to vector<1x128xf32>
    %c0_51 = arith.constant 0 : index
    %c0_52 = arith.constant 0 : index
    %c0_53 = arith.constant 0 : index
    %141 = vector.load %arg10[%c0_51, %c0_52, %c0_53] : memref<2x1x128xf32, #tpu.memory_space<vmem>>, vector<1x1x128xf32>
    %142 = vector.shape_cast %141 : vector<1x1x128xf32> to vector<1x128xf32>
    %cst_54 = arith.constant dense<0.000000e+00> : vector<16xf32>
    %143 = vector.multi_reduction <add>, %138, %cst_54 [1] : vector<16x128xf32> to vector<16xf32>
    %144 = vector.shape_cast %143 : vector<16xf32> to vector<16x1xf32>
    %cst_55 = arith.constant 1.280000e+02 : f32
    %145 = vector.broadcast %cst_55 : f32 to vector<16x1xf32>
    %146 = arith.divf %144, %145 : vector<16x1xf32>
    %147 = vector.broadcast %146 : vector<16x1xf32> to vector<16x128xf32>
    %148 = arith.subf %138, %147 : vector<16x128xf32>
    %149 = arith.mulf %148, %148 : vector<16x128xf32>
    %cst_56 = arith.constant dense<0.000000e+00> : vector<16xf32>
    %150 = vector.multi_reduction <add>, %149, %cst_56 [1] : vector<16x128xf32> to vector<16xf32>
    %151 = vector.shape_cast %150 : vector<16xf32> to vector<16x1xf32>
    %cst_57 = arith.constant 1.280000e+02 : f32
    %152 = vector.broadcast %cst_57 : f32 to vector<16x1xf32>
    %153 = arith.divf %151, %152 : vector<16x1xf32>
    %cst_58 = arith.constant 9.99999996E-13 : f32
    %154 = vector.broadcast %cst_58 : f32 to vector<16x1xf32>
    %155 = arith.addf %153, %154 : vector<16x1xf32>
    %156 = math.rsqrt %155 : vector<16x1xf32>
    %157 = vector.broadcast %156 : vector<16x1xf32> to vector<16x128xf32>
    %158 = arith.mulf %148, %157 : vector<16x128xf32>
    %159 = vector.broadcast %140 : vector<1x128xf32> to vector<16x128xf32>
    %160 = arith.mulf %158, %159 : vector<16x128xf32>
    %161 = vector.broadcast %142 : vector<1x128xf32> to vector<16x128xf32>
    %162 = arith.addf %160, %161 : vector<16x128xf32>
    %c0_59 = arith.constant 0 : index
    %c0_60 = arith.constant 0 : index
    %c0_61 = arith.constant 0 : index
    %163 = vector.load %arg11[%c0_59, %c0_60, %c0_61] : memref<2x128x512xbf16, #tpu.memory_space<vmem>>, vector<1x128x512xbf16>
    %164 = vector.shape_cast %163 : vector<1x128x512xbf16> to vector<128x512xbf16>
    %c0_62 = arith.constant 0 : index
    %c0_63 = arith.constant 0 : index
    %c0_64 = arith.constant 0 : index
    %165 = vector.load %arg12[%c0_62, %c0_63, %c0_64] : memref<2x1x512xf32, #tpu.memory_space<vmem>>, vector<1x1x512xf32>
    %166 = vector.shape_cast %165 : vector<1x1x512xf32> to vector<1x512xf32>
    %167 = arith.truncf %162 : vector<16x128xf32> to vector<16x128xbf16>
    %cst_65 = arith.constant dense<0.000000e+00> : vector<16x512xf32>
    %168 = tpu.matmul %167, %164, %cst_65 {dimension_numbers = #tpu.dot_dimension_numbers<[1], [0], [0], [1], [0, 0, 1, 1], [], []>} : vector<16x128xbf16>, vector<128x512xbf16>, vector<16x512xf32> -> vector<16x512xf32>
    %169 = vector.broadcast %166 : vector<1x512xf32> to vector<16x512xf32>
    %170 = arith.addf %168, %169 : vector<16x512xf32>
    %cst_66 = arith.constant 5.000000e-01 : f32
    %171 = vector.broadcast %cst_66 : f32 to vector<16x512xf32>
    %172 = arith.mulf %171, %170 : vector<16x512xf32>
    %cst_67 = arith.constant 4.471500e-02 : f32
    %173 = vector.broadcast %cst_67 : f32 to vector<16x512xf32>
    %174 = arith.mulf %173, %170 : vector<16x512xf32>
    %175 = arith.mulf %174, %170 : vector<16x512xf32>
    %176 = arith.mulf %175, %170 : vector<16x512xf32>
    %177 = arith.addf %170, %176 : vector<16x512xf32>
    %cst_68 = arith.constant 0.797884583 : f32
    %178 = vector.broadcast %cst_68 : f32 to vector<16x512xf32>
    %179 = arith.mulf %178, %177 : vector<16x512xf32>
    %180 = math.tanh %179 : vector<16x512xf32>
    %cst_69 = arith.constant 1.000000e+00 : f32
    %181 = vector.broadcast %cst_69 : f32 to vector<16x512xf32>
    %182 = arith.addf %181, %180 : vector<16x512xf32>
    %183 = arith.mulf %172, %182 : vector<16x512xf32>
    %c0_70 = arith.constant 0 : index
    %c0_71 = arith.constant 0 : index
    %c0_72 = arith.constant 0 : index
    %184 = vector.load %arg13[%c0_70, %c0_71, %c0_72] : memref<2x512x128xbf16, #tpu.memory_space<vmem>>, vector<1x512x128xbf16>
    %185 = vector.shape_cast %184 : vector<1x512x128xbf16> to vector<512x128xbf16>
    %c0_73 = arith.constant 0 : index
    %c0_74 = arith.constant 0 : index
    %c0_75 = arith.constant 0 : index
    %186 = vector.load %arg14[%c0_73, %c0_74, %c0_75] : memref<2x1x128xf32, #tpu.memory_space<vmem>>, vector<1x1x128xf32>
    %187 = vector.shape_cast %186 : vector<1x1x128xf32> to vector<1x128xf32>
    %188 = arith.truncf %183 : vector<16x512xf32> to vector<16x512xbf16>
    %cst_76 = arith.constant dense<0.000000e+00> : vector<16x128xf32>
    %189 = tpu.matmul %188, %185, %cst_76 {dimension_numbers = #tpu.dot_dimension_numbers<[1], [0], [0], [1], [0, 0, 1, 1], [], []>} : vector<16x512xbf16>, vector<512x128xbf16>, vector<16x128xf32> -> vector<16x128xf32>
    %190 = vector.broadcast %187 : vector<1x128xf32> to vector<16x128xf32>
    %191 = arith.addf %189, %190 : vector<16x128xf32>
    %192 = arith.addf %191, %162 : vector<16x128xf32>
    %c0_77 = arith.constant 0 : index
    %c0_78 = arith.constant 0 : index
    %c0_79 = arith.constant 0 : index
    %193 = vector.load %arg15[%c0_77, %c0_78, %c0_79] : memref<2x1x128xf32, #tpu.memory_space<vmem>>, vector<1x1x128xf32>
    %194 = vector.shape_cast %193 : vector<1x1x128xf32> to vector<1x128xf32>
    %c0_80 = arith.constant 0 : index
    %c0_81 = arith.constant 0 : index
    %c0_82 = arith.constant 0 : index
    %195 = vector.load %arg16[%c0_80, %c0_81, %c0_82] : memref<2x1x128xf32, #tpu.memory_space<vmem>>, vector<1x1x128xf32>
    %196 = vector.shape_cast %195 : vector<1x1x128xf32> to vector<1x128xf32>
    %cst_83 = arith.constant dense<0.000000e+00> : vector<16xf32>
    %197 = vector.multi_reduction <add>, %192, %cst_83 [1] : vector<16x128xf32> to vector<16xf32>
    %198 = vector.shape_cast %197 : vector<16xf32> to vector<16x1xf32>
    %cst_84 = arith.constant 1.280000e+02 : f32
    %199 = vector.broadcast %cst_84 : f32 to vector<16x1xf32>
    %200 = arith.divf %198, %199 : vector<16x1xf32>
    %201 = vector.broadcast %200 : vector<16x1xf32> to vector<16x128xf32>
    %202 = arith.subf %192, %201 : vector<16x128xf32>
    %203 = arith.mulf %202, %202 : vector<16x128xf32>
    %cst_85 = arith.constant dense<0.000000e+00> : vector<16xf32>
    %204 = vector.multi_reduction <add>, %203, %cst_85 [1] : vector<16x128xf32> to vector<16xf32>
    %205 = vector.shape_cast %204 : vector<16xf32> to vector<16x1xf32>
    %cst_86 = arith.constant 1.280000e+02 : f32
    %206 = vector.broadcast %cst_86 : f32 to vector<16x1xf32>
    %207 = arith.divf %205, %206 : vector<16x1xf32>
    %cst_87 = arith.constant 9.99999996E-13 : f32
    %208 = vector.broadcast %cst_87 : f32 to vector<16x1xf32>
    %209 = arith.addf %207, %208 : vector<16x1xf32>
    %210 = math.rsqrt %209 : vector<16x1xf32>
    %211 = vector.broadcast %210 : vector<16x1xf32> to vector<16x128xf32>
    %212 = arith.mulf %202, %211 : vector<16x128xf32>
    %213 = vector.broadcast %194 : vector<1x128xf32> to vector<16x128xf32>
    %214 = arith.mulf %212, %213 : vector<16x128xf32>
    %215 = vector.broadcast %196 : vector<1x128xf32> to vector<16x128xf32>
    %216 = arith.addf %214, %215 : vector<16x128xf32>
    %c1_88 = arith.constant 1 : index
    %c0_89 = arith.constant 0 : index
    %c0_90 = arith.constant 0 : index
    %217 = vector.load %arg5[%c1_88, %c0_89, %c0_90] : memref<2x128x384xbf16, #tpu.memory_space<vmem>>, vector<1x128x384xbf16>
    %218 = vector.shape_cast %217 : vector<1x128x384xbf16> to vector<128x384xbf16>
    %c1_91 = arith.constant 1 : index
    %c0_92 = arith.constant 0 : index
    %c0_93 = arith.constant 0 : index
    %219 = vector.load %arg6[%c1_91, %c0_92, %c0_93] : memref<2x1x384xf32, #tpu.memory_space<vmem>>, vector<1x1x384xf32>
    %220 = vector.shape_cast %219 : vector<1x1x384xf32> to vector<1x384xf32>
    %221 = arith.truncf %216 : vector<16x128xf32> to vector<16x128xbf16>
    %cst_94 = arith.constant dense<0.000000e+00> : vector<16x384xf32>
    %222 = tpu.matmul %221, %218, %cst_94 {dimension_numbers = #tpu.dot_dimension_numbers<[1], [0], [0], [1], [0, 0, 1, 1], [], []>} : vector<16x128xbf16>, vector<128x384xbf16>, vector<16x384xf32> -> vector<16x384xf32>
    %223 = vector.broadcast %220 : vector<1x384xf32> to vector<16x384xf32>
    %224 = arith.addf %222, %223 : vector<16x384xf32>
    %c0_95 = arith.constant 0 : index
    %c0_96 = arith.constant 0 : index
    %c0_97 = arith.constant 0 : index
    %225 = vector.load %arg2[%c0_95, %c0_96, %c0_97] : memref<2x1x8xf32, #tpu.memory_space<vmem>>, vector<1x1x8xf32>
    %226 = vector.shape_cast %225 : vector<1x1x8xf32> to vector<1x8xf32>
    %227 = vector.extract_strided_slice %224 {offsets = [0, 0], sizes = [8, 64], strides = [1, 1]} : vector<16x384xf32> to vector<8x64xf32>
    %228 = arith.truncf %227 : vector<8x64xf32> to vector<8x64xbf16>
    %229 = vector.extract_strided_slice %224 {offsets = [0, 128], sizes = [8, 64], strides = [1, 1]} : vector<16x384xf32> to vector<8x64xf32>
    %230 = arith.truncf %229 : vector<8x64xf32> to vector<8x64xbf16>
    %231 = vector.extract_strided_slice %224 {offsets = [0, 256], sizes = [8, 64], strides = [1, 1]} : vector<16x384xf32> to vector<8x64xf32>
    %232 = arith.truncf %231 : vector<8x64xf32> to vector<8x64xbf16>
    %cst_98 = arith.constant dense<0.000000e+00> : vector<8x8xf32>
    %233 = tpu.matmul %228, %230, %cst_98 {dimension_numbers = #tpu.dot_dimension_numbers<[1], [1], [0], [0], [0, 0, 1, 0], [], []>} : vector<8x64xbf16>, vector<8x64xbf16>, vector<8x8xf32> -> vector<8x8xf32>
    %cst_99 = arith.constant 1.250000e-01 : f32
    %234 = vector.broadcast %cst_99 : f32 to vector<8x8xf32>
    %235 = arith.mulf %233, %234 : vector<8x8xf32>
    %236 = vector.broadcast %226 : vector<1x8xf32> to vector<8x8xf32>
    %237 = arith.addf %235, %236 : vector<8x8xf32>
    %cst_100 = arith.constant dense<0xFF800000> : vector<8xf32>
    %238 = vector.multi_reduction <maximumf>, %237, %cst_100 [1] : vector<8x8xf32> to vector<8xf32>
    %239 = vector.shape_cast %238 : vector<8xf32> to vector<8x1xf32>
    %240 = vector.broadcast %239 : vector<8x1xf32> to vector<8x8xf32>
    %241 = arith.subf %237, %240 : vector<8x8xf32>
    %242 = math.exp %241 : vector<8x8xf32>
    %cst_101 = arith.constant dense<0.000000e+00> : vector<8xf32>
    %243 = vector.multi_reduction <add>, %242, %cst_101 [1] : vector<8x8xf32> to vector<8xf32>
    %244 = vector.shape_cast %243 : vector<8xf32> to vector<8x1xf32>
    %245 = tpu.reciprocal %244 {approx = true} : vector<8x1xf32> -> vector<8x1xf32>
    %246 = vector.broadcast %245 : vector<8x1xf32> to vector<8x8xf32>
    %247 = arith.mulf %242, %246 : vector<8x8xf32>
    %248 = arith.truncf %247 : vector<8x8xf32> to vector<8x8xbf16>
    %cst_102 = arith.constant dense<0.000000e+00> : vector<8x64xf32>
    %249 = tpu.matmul %248, %232, %cst_102 {dimension_numbers = #tpu.dot_dimension_numbers<[1], [0], [0], [1], [0, 0, 1, 1], [], []>} : vector<8x8xbf16>, vector<8x64xbf16>, vector<8x64xf32> -> vector<8x64xf32>
    %250 = vector.extract_strided_slice %224 {offsets = [0, 64], sizes = [8, 64], strides = [1, 1]} : vector<16x384xf32> to vector<8x64xf32>
    %251 = arith.truncf %250 : vector<8x64xf32> to vector<8x64xbf16>
    %252 = vector.extract_strided_slice %224 {offsets = [0, 192], sizes = [8, 64], strides = [1, 1]} : vector<16x384xf32> to vector<8x64xf32>
    %253 = arith.truncf %252 : vector<8x64xf32> to vector<8x64xbf16>
    %254 = vector.extract_strided_slice %224 {offsets = [0, 320], sizes = [8, 64], strides = [1, 1]} : vector<16x384xf32> to vector<8x64xf32>
    %255 = arith.truncf %254 : vector<8x64xf32> to vector<8x64xbf16>
    %cst_103 = arith.constant dense<0.000000e+00> : vector<8x8xf32>
    %256 = tpu.matmul %251, %253, %cst_103 {dimension_numbers = #tpu.dot_dimension_numbers<[1], [1], [0], [0], [0, 0, 1, 0], [], []>} : vector<8x64xbf16>, vector<8x64xbf16>, vector<8x8xf32> -> vector<8x8xf32>
    %cst_104 = arith.constant 1.250000e-01 : f32
    %257 = vector.broadcast %cst_104 : f32 to vector<8x8xf32>
    %258 = arith.mulf %256, %257 : vector<8x8xf32>
    %259 = vector.broadcast %226 : vector<1x8xf32> to vector<8x8xf32>
    %260 = arith.addf %258, %259 : vector<8x8xf32>
    %cst_105 = arith.constant dense<0xFF800000> : vector<8xf32>
    %261 = vector.multi_reduction <maximumf>, %260, %cst_105 [1] : vector<8x8xf32> to vector<8xf32>
    %262 = vector.shape_cast %261 : vector<8xf32> to vector<8x1xf32>
    %263 = vector.broadcast %262 : vector<8x1xf32> to vector<8x8xf32>
    %264 = arith.subf %260, %263 : vector<8x8xf32>
    %265 = math.exp %264 : vector<8x8xf32>
    %cst_106 = arith.constant dense<0.000000e+00> : vector<8xf32>
    %266 = vector.multi_reduction <add>, %265, %cst_106 [1] : vector<8x8xf32> to vector<8xf32>
    %267 = vector.shape_cast %266 : vector<8xf32> to vector<8x1xf32>
    %268 = tpu.reciprocal %267 {approx = true} : vector<8x1xf32> -> vector<8x1xf32>
    %269 = vector.broadcast %268 : vector<8x1xf32> to vector<8x8xf32>
    %270 = arith.mulf %265, %269 : vector<8x8xf32>
    %271 = arith.truncf %270 : vector<8x8xf32> to vector<8x8xbf16>
    %cst_107 = arith.constant dense<0.000000e+00> : vector<8x64xf32>
    %272 = tpu.matmul %271, %255, %cst_107 {dimension_numbers = #tpu.dot_dimension_numbers<[1], [0], [0], [1], [0, 0, 1, 1], [], []>} : vector<8x8xbf16>, vector<8x64xbf16>, vector<8x64xf32> -> vector<8x64xf32>
    %273 = tpu.concatenate %249, %272 in 1 : vector<8x64xf32>, vector<8x64xf32> -> vector<8x128xf32>
    %c1_108 = arith.constant 1 : index
    %c0_109 = arith.constant 0 : index
    %c0_110 = arith.constant 0 : index
    %274 = vector.load %arg2[%c1_108, %c0_109, %c0_110] : memref<2x1x8xf32, #tpu.memory_space<vmem>>, vector<1x1x8xf32>
    %275 = vector.shape_cast %274 : vector<1x1x8xf32> to vector<1x8xf32>
    %276 = vector.extract_strided_slice %224 {offsets = [8, 0], sizes = [8, 64], strides = [1, 1]} : vector<16x384xf32> to vector<8x64xf32>
    %277 = arith.truncf %276 : vector<8x64xf32> to vector<8x64xbf16>
    %278 = vector.extract_strided_slice %224 {offsets = [8, 128], sizes = [8, 64], strides = [1, 1]} : vector<16x384xf32> to vector<8x64xf32>
    %279 = arith.truncf %278 : vector<8x64xf32> to vector<8x64xbf16>
    %280 = vector.extract_strided_slice %224 {offsets = [8, 256], sizes = [8, 64], strides = [1, 1]} : vector<16x384xf32> to vector<8x64xf32>
    %281 = arith.truncf %280 : vector<8x64xf32> to vector<8x64xbf16>
    %cst_111 = arith.constant dense<0.000000e+00> : vector<8x8xf32>
    %282 = tpu.matmul %277, %279, %cst_111 {dimension_numbers = #tpu.dot_dimension_numbers<[1], [1], [0], [0], [0, 0, 1, 0], [], []>} : vector<8x64xbf16>, vector<8x64xbf16>, vector<8x8xf32> -> vector<8x8xf32>
    %cst_112 = arith.constant 1.250000e-01 : f32
    %283 = vector.broadcast %cst_112 : f32 to vector<8x8xf32>
    %284 = arith.mulf %282, %283 : vector<8x8xf32>
    %285 = vector.broadcast %275 : vector<1x8xf32> to vector<8x8xf32>
    %286 = arith.addf %284, %285 : vector<8x8xf32>
    %cst_113 = arith.constant dense<0xFF800000> : vector<8xf32>
    %287 = vector.multi_reduction <maximumf>, %286, %cst_113 [1] : vector<8x8xf32> to vector<8xf32>
    %288 = vector.shape_cast %287 : vector<8xf32> to vector<8x1xf32>
    %289 = vector.broadcast %288 : vector<8x1xf32> to vector<8x8xf32>
    %290 = arith.subf %286, %289 : vector<8x8xf32>
    %291 = math.exp %290 : vector<8x8xf32>
    %cst_114 = arith.constant dense<0.000000e+00> : vector<8xf32>
    %292 = vector.multi_reduction <add>, %291, %cst_114 [1] : vector<8x8xf32> to vector<8xf32>
    %293 = vector.shape_cast %292 : vector<8xf32> to vector<8x1xf32>
    %294 = tpu.reciprocal %293 {approx = true} : vector<8x1xf32> -> vector<8x1xf32>
    %295 = vector.broadcast %294 : vector<8x1xf32> to vector<8x8xf32>
    %296 = arith.mulf %291, %295 : vector<8x8xf32>
    %297 = arith.truncf %296 : vector<8x8xf32> to vector<8x8xbf16>
    %cst_115 = arith.constant dense<0.000000e+00> : vector<8x64xf32>
    %298 = tpu.matmul %297, %281, %cst_115 {dimension_numbers = #tpu.dot_dimension_numbers<[1], [0], [0], [1], [0, 0, 1, 1], [], []>} : vector<8x8xbf16>, vector<8x64xbf16>, vector<8x64xf32> -> vector<8x64xf32>
    %299 = vector.extract_strided_slice %224 {offsets = [8, 64], sizes = [8, 64], strides = [1, 1]} : vector<16x384xf32> to vector<8x64xf32>
    %300 = arith.truncf %299 : vector<8x64xf32> to vector<8x64xbf16>
    %301 = vector.extract_strided_slice %224 {offsets = [8, 192], sizes = [8, 64], strides = [1, 1]} : vector<16x384xf32> to vector<8x64xf32>
    %302 = arith.truncf %301 : vector<8x64xf32> to vector<8x64xbf16>
    %303 = vector.extract_strided_slice %224 {offsets = [8, 320], sizes = [8, 64], strides = [1, 1]} : vector<16x384xf32> to vector<8x64xf32>
    %304 = arith.truncf %303 : vector<8x64xf32> to vector<8x64xbf16>
    %cst_116 = arith.constant dense<0.000000e+00> : vector<8x8xf32>
    %305 = tpu.matmul %300, %302, %cst_116 {dimension_numbers = #tpu.dot_dimension_numbers<[1], [1], [0], [0], [0, 0, 1, 0], [], []>} : vector<8x64xbf16>, vector<8x64xbf16>, vector<8x8xf32> -> vector<8x8xf32>
    %cst_117 = arith.constant 1.250000e-01 : f32
    %306 = vector.broadcast %cst_117 : f32 to vector<8x8xf32>
    %307 = arith.mulf %305, %306 : vector<8x8xf32>
    %308 = vector.broadcast %275 : vector<1x8xf32> to vector<8x8xf32>
    %309 = arith.addf %307, %308 : vector<8x8xf32>
    %cst_118 = arith.constant dense<0xFF800000> : vector<8xf32>
    %310 = vector.multi_reduction <maximumf>, %309, %cst_118 [1] : vector<8x8xf32> to vector<8xf32>
    %311 = vector.shape_cast %310 : vector<8xf32> to vector<8x1xf32>
    %312 = vector.broadcast %311 : vector<8x1xf32> to vector<8x8xf32>
    %313 = arith.subf %309, %312 : vector<8x8xf32>
    %314 = math.exp %313 : vector<8x8xf32>
    %cst_119 = arith.constant dense<0.000000e+00> : vector<8xf32>
    %315 = vector.multi_reduction <add>, %314, %cst_119 [1] : vector<8x8xf32> to vector<8xf32>
    %316 = vector.shape_cast %315 : vector<8xf32> to vector<8x1xf32>
    %317 = tpu.reciprocal %316 {approx = true} : vector<8x1xf32> -> vector<8x1xf32>
    %318 = vector.broadcast %317 : vector<8x1xf32> to vector<8x8xf32>
    %319 = arith.mulf %314, %318 : vector<8x8xf32>
    %320 = arith.truncf %319 : vector<8x8xf32> to vector<8x8xbf16>
    %cst_120 = arith.constant dense<0.000000e+00> : vector<8x64xf32>
    %321 = tpu.matmul %320, %304, %cst_120 {dimension_numbers = #tpu.dot_dimension_numbers<[1], [0], [0], [1], [0, 0, 1, 1], [], []>} : vector<8x8xbf16>, vector<8x64xbf16>, vector<8x64xf32> -> vector<8x64xf32>
    %322 = tpu.concatenate %298, %321 in 1 : vector<8x64xf32>, vector<8x64xf32> -> vector<8x128xf32>
    %323 = tpu.concatenate %273, %322 in 0 : vector<8x128xf32>, vector<8x128xf32> -> vector<16x128xf32>
    %c1_121 = arith.constant 1 : index
    %c0_122 = arith.constant 0 : index
    %c0_123 = arith.constant 0 : index
    %324 = vector.load %arg7[%c1_121, %c0_122, %c0_123] : memref<2x128x128xbf16, #tpu.memory_space<vmem>>, vector<1x128x128xbf16>
    %325 = vector.shape_cast %324 : vector<1x128x128xbf16> to vector<128x128xbf16>
    %c1_124 = arith.constant 1 : index
    %c0_125 = arith.constant 0 : index
    %c0_126 = arith.constant 0 : index
    %326 = vector.load %arg8[%c1_124, %c0_125, %c0_126] : memref<2x1x128xf32, #tpu.memory_space<vmem>>, vector<1x1x128xf32>
    %327 = vector.shape_cast %326 : vector<1x1x128xf32> to vector<1x128xf32>
    %328 = arith.truncf %323 : vector<16x128xf32> to vector<16x128xbf16>
    %cst_127 = arith.constant dense<0.000000e+00> : vector<16x128xf32>
    %329 = tpu.matmul %328, %325, %cst_127 {dimension_numbers = #tpu.dot_dimension_numbers<[1], [0], [0], [1], [0, 0, 1, 1], [], []>} : vector<16x128xbf16>, vector<128x128xbf16>, vector<16x128xf32> -> vector<16x128xf32>
    %330 = vector.broadcast %327 : vector<1x128xf32> to vector<16x128xf32>
    %331 = arith.addf %329, %330 : vector<16x128xf32>
    %332 = arith.addf %331, %216 : vector<16x128xf32>
    %c1_128 = arith.constant 1 : index
    %c0_129 = arith.constant 0 : index
    %c0_130 = arith.constant 0 : index
    %333 = vector.load %arg9[%c1_128, %c0_129, %c0_130] : memref<2x1x128xf32, #tpu.memory_space<vmem>>, vector<1x1x128xf32>
    %334 = vector.shape_cast %333 : vector<1x1x128xf32> to vector<1x128xf32>
    %c1_131 = arith.constant 1 : index
    %c0_132 = arith.constant 0 : index
    %c0_133 = arith.constant 0 : index
    %335 = vector.load %arg10[%c1_131, %c0_132, %c0_133] : memref<2x1x128xf32, #tpu.memory_space<vmem>>, vector<1x1x128xf32>
    %336 = vector.shape_cast %335 : vector<1x1x128xf32> to vector<1x128xf32>
    %cst_134 = arith.constant dense<0.000000e+00> : vector<16xf32>
    %337 = vector.multi_reduction <add>, %332, %cst_134 [1] : vector<16x128xf32> to vector<16xf32>
    %338 = vector.shape_cast %337 : vector<16xf32> to vector<16x1xf32>
    %cst_135 = arith.constant 1.280000e+02 : f32
    %339 = vector.broadcast %cst_135 : f32 to vector<16x1xf32>
    %340 = arith.divf %338, %339 : vector<16x1xf32>
    %341 = vector.broadcast %340 : vector<16x1xf32> to vector<16x128xf32>
    %342 = arith.subf %332, %341 : vector<16x128xf32>
    %343 = arith.mulf %342, %342 : vector<16x128xf32>
    %cst_136 = arith.constant dense<0.000000e+00> : vector<16xf32>
    %344 = vector.multi_reduction <add>, %343, %cst_136 [1] : vector<16x128xf32> to vector<16xf32>
    %345 = vector.shape_cast %344 : vector<16xf32> to vector<16x1xf32>
    %cst_137 = arith.constant 1.280000e+02 : f32
    %346 = vector.broadcast %cst_137 : f32 to vector<16x1xf32>
    %347 = arith.divf %345, %346 : vector<16x1xf32>
    %cst_138 = arith.constant 9.99999996E-13 : f32
    %348 = vector.broadcast %cst_138 : f32 to vector<16x1xf32>
    %349 = arith.addf %347, %348 : vector<16x1xf32>
    %350 = math.rsqrt %349 : vector<16x1xf32>
    %351 = vector.broadcast %350 : vector<16x1xf32> to vector<16x128xf32>
    %352 = arith.mulf %342, %351 : vector<16x128xf32>
    %353 = vector.broadcast %334 : vector<1x128xf32> to vector<16x128xf32>
    %354 = arith.mulf %352, %353 : vector<16x128xf32>
    %355 = vector.broadcast %336 : vector<1x128xf32> to vector<16x128xf32>
    %356 = arith.addf %354, %355 : vector<16x128xf32>
    %c1_139 = arith.constant 1 : index
    %c0_140 = arith.constant 0 : index
    %c0_141 = arith.constant 0 : index
    %357 = vector.load %arg11[%c1_139, %c0_140, %c0_141] : memref<2x128x512xbf16, #tpu.memory_space<vmem>>, vector<1x128x512xbf16>
    %358 = vector.shape_cast %357 : vector<1x128x512xbf16> to vector<128x512xbf16>
    %c1_142 = arith.constant 1 : index
    %c0_143 = arith.constant 0 : index
    %c0_144 = arith.constant 0 : index
    %359 = vector.load %arg12[%c1_142, %c0_143, %c0_144] : memref<2x1x512xf32, #tpu.memory_space<vmem>>, vector<1x1x512xf32>
    %360 = vector.shape_cast %359 : vector<1x1x512xf32> to vector<1x512xf32>
    %361 = arith.truncf %356 : vector<16x128xf32> to vector<16x128xbf16>
    %cst_145 = arith.constant dense<0.000000e+00> : vector<16x512xf32>
    %362 = tpu.matmul %361, %358, %cst_145 {dimension_numbers = #tpu.dot_dimension_numbers<[1], [0], [0], [1], [0, 0, 1, 1], [], []>} : vector<16x128xbf16>, vector<128x512xbf16>, vector<16x512xf32> -> vector<16x512xf32>
    %363 = vector.broadcast %360 : vector<1x512xf32> to vector<16x512xf32>
    %364 = arith.addf %362, %363 : vector<16x512xf32>
    %cst_146 = arith.constant 5.000000e-01 : f32
    %365 = vector.broadcast %cst_146 : f32 to vector<16x512xf32>
    %366 = arith.mulf %365, %364 : vector<16x512xf32>
    %cst_147 = arith.constant 4.471500e-02 : f32
    %367 = vector.broadcast %cst_147 : f32 to vector<16x512xf32>
    %368 = arith.mulf %367, %364 : vector<16x512xf32>
    %369 = arith.mulf %368, %364 : vector<16x512xf32>
    %370 = arith.mulf %369, %364 : vector<16x512xf32>
    %371 = arith.addf %364, %370 : vector<16x512xf32>
    %cst_148 = arith.constant 0.797884583 : f32
    %372 = vector.broadcast %cst_148 : f32 to vector<16x512xf32>
    %373 = arith.mulf %372, %371 : vector<16x512xf32>
    %374 = math.tanh %373 : vector<16x512xf32>
    %cst_149 = arith.constant 1.000000e+00 : f32
    %375 = vector.broadcast %cst_149 : f32 to vector<16x512xf32>
    %376 = arith.addf %375, %374 : vector<16x512xf32>
    %377 = arith.mulf %366, %376 : vector<16x512xf32>
    %c1_150 = arith.constant 1 : index
    %c0_151 = arith.constant 0 : index
    %c0_152 = arith.constant 0 : index
    %378 = vector.load %arg13[%c1_150, %c0_151, %c0_152] : memref<2x512x128xbf16, #tpu.memory_space<vmem>>, vector<1x512x128xbf16>
    %379 = vector.shape_cast %378 : vector<1x512x128xbf16> to vector<512x128xbf16>
    %c1_153 = arith.constant 1 : index
    %c0_154 = arith.constant 0 : index
    %c0_155 = arith.constant 0 : index
    %380 = vector.load %arg14[%c1_153, %c0_154, %c0_155] : memref<2x1x128xf32, #tpu.memory_space<vmem>>, vector<1x1x128xf32>
    %381 = vector.shape_cast %380 : vector<1x1x128xf32> to vector<1x128xf32>
    %382 = arith.truncf %377 : vector<16x512xf32> to vector<16x512xbf16>
    %cst_156 = arith.constant dense<0.000000e+00> : vector<16x128xf32>
    %383 = tpu.matmul %382, %379, %cst_156 {dimension_numbers = #tpu.dot_dimension_numbers<[1], [0], [0], [1], [0, 0, 1, 1], [], []>} : vector<16x512xbf16>, vector<512x128xbf16>, vector<16x128xf32> -> vector<16x128xf32>
    %384 = vector.broadcast %381 : vector<1x128xf32> to vector<16x128xf32>
    %385 = arith.addf %383, %384 : vector<16x128xf32>
    %386 = arith.addf %385, %356 : vector<16x128xf32>
    %c1_157 = arith.constant 1 : index
    %c0_158 = arith.constant 0 : index
    %c0_159 = arith.constant 0 : index
    %387 = vector.load %arg15[%c1_157, %c0_158, %c0_159] : memref<2x1x128xf32, #tpu.memory_space<vmem>>, vector<1x1x128xf32>
    %388 = vector.shape_cast %387 : vector<1x1x128xf32> to vector<1x128xf32>
    %c1_160 = arith.constant 1 : index
    %c0_161 = arith.constant 0 : index
    %c0_162 = arith.constant 0 : index
    %389 = vector.load %arg16[%c1_160, %c0_161, %c0_162] : memref<2x1x128xf32, #tpu.memory_space<vmem>>, vector<1x1x128xf32>
    %390 = vector.shape_cast %389 : vector<1x1x128xf32> to vector<1x128xf32>
    %cst_163 = arith.constant dense<0.000000e+00> : vector<16xf32>
    %391 = vector.multi_reduction <add>, %386, %cst_163 [1] : vector<16x128xf32> to vector<16xf32>
    %392 = vector.shape_cast %391 : vector<16xf32> to vector<16x1xf32>
    %cst_164 = arith.constant 1.280000e+02 : f32
    %393 = vector.broadcast %cst_164 : f32 to vector<16x1xf32>
    %394 = arith.divf %392, %393 : vector<16x1xf32>
    %395 = vector.broadcast %394 : vector<16x1xf32> to vector<16x128xf32>
    %396 = arith.subf %386, %395 : vector<16x128xf32>
    %397 = arith.mulf %396, %396 : vector<16x128xf32>
    %cst_165 = arith.constant dense<0.000000e+00> : vector<16xf32>
    %398 = vector.multi_reduction <add>, %397, %cst_165 [1] : vector<16x128xf32> to vector<16xf32>
    %399 = vector.shape_cast %398 : vector<16xf32> to vector<16x1xf32>
    %cst_166 = arith.constant 1.280000e+02 : f32
    %400 = vector.broadcast %cst_166 : f32 to vector<16x1xf32>
    %401 = arith.divf %399, %400 : vector<16x1xf32>
    %cst_167 = arith.constant 9.99999996E-13 : f32
    %402 = vector.broadcast %cst_167 : f32 to vector<16x1xf32>
    %403 = arith.addf %401, %402 : vector<16x1xf32>
    %404 = math.rsqrt %403 : vector<16x1xf32>
    %405 = vector.broadcast %404 : vector<16x1xf32> to vector<16x128xf32>
    %406 = arith.mulf %396, %405 : vector<16x128xf32>
    %407 = vector.broadcast %388 : vector<1x128xf32> to vector<16x128xf32>
    %408 = arith.mulf %406, %407 : vector<16x128xf32>
    %409 = vector.broadcast %390 : vector<1x128xf32> to vector<16x128xf32>
    %410 = arith.addf %408, %409 : vector<16x128xf32>
    %411 = vector.extract_strided_slice %410 {offsets = [0, 0], sizes = [1, 128], strides = [1, 1]} : vector<16x128xf32> to vector<1x128xf32>
    %412 = vector.extract_strided_slice %410 {offsets = [8, 0], sizes = [1, 128], strides = [1, 1]} : vector<16x128xf32> to vector<1x128xf32>
    %413 = tpu.concatenate %411, %412 in 0 : vector<1x128xf32>, vector<1x128xf32> -> vector<2x128xf32>
    %c0_168 = arith.constant 0 : index
    %c0_169 = arith.constant 0 : index
    %414 = vector.load %arg17[%c0_168, %c0_169] : memref<128x128xbf16, #tpu.memory_space<vmem>>, vector<128x128xbf16>
    %c0_170 = arith.constant 0 : index
    %c0_171 = arith.constant 0 : index
    %415 = vector.load %arg18[%c0_170, %c0_171] : memref<1x128xf32, #tpu.memory_space<vmem>>, vector<1x128xf32>
    %416 = arith.truncf %413 : vector<2x128xf32> to vector<2x128xbf16>
    %cst_172 = arith.constant dense<0.000000e+00> : vector<2x128xf32>
    %417 = tpu.matmul %416, %414, %cst_172 {dimension_numbers = #tpu.dot_dimension_numbers<[1], [0], [0], [1], [0, 0, 1, 1], [], []>} : vector<2x128xbf16>, vector<128x128xbf16>, vector<2x128xf32> -> vector<2x128xf32>
    %418 = vector.broadcast %415 : vector<1x128xf32> to vector<2x128xf32>
    %419 = arith.addf %417, %418 : vector<2x128xf32>
    %420 = math.tanh %419 : vector<2x128xf32>
    %c0_173 = arith.constant 0 : index
    %c0_174 = arith.constant 0 : index
    %421 = vector.load %arg19[%c0_173, %c0_174] : memref<128x1xf32, #tpu.memory_space<vmem>>, vector<128x1xf32>
    %cst_175 = arith.constant dense<0.000000e+00> : vector<2x1xf32>
    %422 = tpu.matmul %420, %421, %cst_175 {dimension_numbers = #tpu.dot_dimension_numbers<[1], [0], [0], [1], [0, 0, 1, 1], [], []>} : vector<2x128xf32>, vector<128x1xf32>, vector<2x1xf32> -> vector<2x1xf32>
    %c0_176 = arith.constant 0 : index
    %c0_177 = arith.constant 0 : index
    %423 = vector.load %arg20[%c0_176, %c0_177] : memref<1x1xf32, #tpu.memory_space<vmem>>, vector<1x1xf32>
    %424 = vector.broadcast %423 : vector<1x1xf32> to vector<2x1xf32>
    %425 = arith.addf %422, %424 : vector<2x1xf32>
    %cst_178 = arith.constant 5.000000e-01 : f32
    %426 = vector.broadcast %cst_178 : f32 to vector<2x1xf32>
    %427 = arith.mulf %426, %425 : vector<2x1xf32>
    %428 = math.tanh %427 : vector<2x1xf32>
    %cst_179 = arith.constant 1.000000e+00 : f32
    %429 = vector.broadcast %cst_179 : f32 to vector<2x1xf32>
    %430 = arith.addf %428, %429 : vector<2x1xf32>
    %cst_180 = arith.constant 5.000000e-01 : f32
    %431 = vector.broadcast %cst_180 : f32 to vector<2x1xf32>
    %432 = arith.mulf %431, %430 : vector<2x1xf32>
    %c0_181 = arith.constant 0 : index
    %c0_182 = arith.constant 0 : index
    %433 = vector.load %arg21[%c0_181, %c0_182] : memref<2x1xf32, #tpu.memory_space<vmem>>, vector<2x1xf32>
    tpu.vector_store %arg21[%c0_181, %c0_182], %432 {strides = array<i32>} : memref<2x1xf32, #tpu.memory_space<vmem>>, vector<2x1xf32>,
    return
  }
  func.func @transform_0(%arg0: i32) -> (i32, i32) {
    %c0_i32 = arith.constant 0 : i32
    %c0_i32_0 = arith.constant 0 : i32
    %c0_i32_1 = arith.constant 0 : i32
    return %c0_i32, %c0_i32_0 : i32, i32
  }
  func.func @transform_1(%arg0: i32) -> (i32, i32, i32) {
    %c0_i32 = arith.constant 0 : i32
    %c0_i32_0 = arith.constant 0 : i32
    %c0_i32_1 = arith.constant 0 : i32
    %c0_i32_2 = arith.constant 0 : i32
    return %c0_i32, %c0_i32_0, %c0_i32_1 : i32, i32, i32
  }
  func.func @transform_2(%arg0: i32) -> (i32, i32) {
    %c0_i32 = arith.constant 0 : i32
    %c0_i32_0 = arith.constant 0 : i32
    %c0_i32_1 = arith.constant 0 : i32
    return %c0_i32, %c0_i32_0 : i32, i32
  }
  func.func @transform_3(%arg0: i32) -> (i32, i32) {
    %c0_i32 = arith.constant 0 : i32
    %c0_i32_0 = arith.constant 0 : i32
    %c0_i32_1 = arith.constant 0 : i32
    return %c0_i32, %c0_i32_0 : i32, i32
  }
  func.func @transform_4(%arg0: i32) -> (i32, i32, i32) {
    %c0_i32 = arith.constant 0 : i32
    %c0_i32_0 = arith.constant 0 : i32
    %c0_i32_1 = arith.constant 0 : i32
    %c0_i32_2 = arith.constant 0 : i32
    return %c0_i32, %c0_i32_0, %c0_i32_1 : i32, i32, i32
  }
  func.func @transform_5(%arg0: i32) -> (i32, i32, i32) {
    %c0_i32 = arith.constant 0 : i32
    %c0_i32_0 = arith.constant 0 : i32
    %c0_i32_1 = arith.constant 0 : i32
    %c0_i32_2 = arith.constant 0 : i32
    return %c0_i32, %c0_i32_0, %c0_i32_1 : i32, i32, i32
  }
  func.func @transform_6(%arg0: i32) -> (i32, i32, i32) {
    %c0_i32 = arith.constant 0 : i32
    %c0_i32_0 = arith.constant 0 : i32
    %c0_i32_1 = arith.constant 0 : i32
    %c0_i32_2 = arith.constant 0 : i32
    return %c0_i32, %c0_i32_0, %c0_i32_1 : i32, i32, i32
  }
  func.func @transform_7(%arg0: i32) -> (i32, i32, i32) {
    %c0_i32 = arith.constant 0 : i32
    %c0_i32_0 = arith.constant 0 : i32
    %c0_i32_1 = arith.constant 0 : i32
    %c0_i32_2 = arith.constant 0 : i32
    return %c0_i32, %c0_i32_0, %c0_i32_1 : i32, i32, i32
  }
  func.func @transform_8(%arg0: i32) -> (i32, i32, i32) {
    %c0_i32 = arith.constant 0 : i32
    %c0_i32_0 = arith.constant 0 : i32
    %c0_i32_1 = arith.constant 0 : i32
    %c0_i32_2 = arith.constant 0 : i32
    return %c0_i32, %c0_i32_0, %c0_i32_1 : i32, i32, i32
  }
  func.func @transform_9(%arg0: i32) -> (i32, i32, i32) {
    %c0_i32 = arith.constant 0 : i32
    %c0_i32_0 = arith.constant 0 : i32
    %c0_i32_1 = arith.constant 0 : i32
    %c0_i32_2 = arith.constant 0 : i32
    return %c0_i32, %c0_i32_0, %c0_i32_1 : i32, i32, i32
  }
  func.func @transform_10(%arg0: i32) -> (i32, i32, i32) {
    %c0_i32 = arith.constant 0 : i32
    %c0_i32_0 = arith.constant 0 : i32
    %c0_i32_1 = arith.constant 0 : i32
    %c0_i32_2 = arith.constant 0 : i32
    return %c0_i32, %c0_i32_0, %c0_i32_1 : i32, i32, i32
  }
  func.func @transform_11(%arg0: i32) -> (i32, i32, i32) {
    %c0_i32 = arith.constant 0 : i32
    %c0_i32_0 = arith.constant 0 : i32
    %c0_i32_1 = arith.constant 0 : i32
    %c0_i32_2 = arith.constant 0 : i32
    return %c0_i32, %c0_i32_0, %c0_i32_1 : i32, i32, i32
  }
  func.func @transform_12(%arg0: i32) -> (i32, i32, i32) {
    %c0_i32 = arith.constant 0 : i32
    %c0_i32_0 = arith.constant 0 : i32
    %c0_i32_1 = arith.constant 0 : i32
    %c0_i32_2 = arith.constant 0 : i32
    return %c0_i32, %c0_i32_0, %c0_i32_1 : i32, i32, i32
  }
  func.func @transform_13(%arg0: i32) -> (i32, i32, i32) {
    %c0_i32 = arith.constant 0 : i32
    %c0_i32_0 = arith.constant 0 : i32
    %c0_i32_1 = arith.constant 0 : i32
    %c0_i32_2 = arith.constant 0 : i32
    return %c0_i32, %c0_i32_0, %c0_i32_1 : i32, i32, i32
  }
  func.func @transform_14(%arg0: i32) -> (i32, i32, i32) {
    %c0_i32 = arith.constant 0 : i32
    %c0_i32_0 = arith.constant 0 : i32
    %c0_i32_1 = arith.constant 0 : i32
    %c0_i32_2 = arith.constant 0 : i32
    return %c0_i32, %c0_i32_0, %c0_i32_1 : i32, i32, i32
  }
  func.func @transform_15(%arg0: i32) -> (i32, i32, i32) {
    %c0_i32 = arith.constant 0 : i32
    %c0_i32_0 = arith.constant 0 : i32
    %c0_i32_1 = arith.constant 0 : i32
    %c0_i32_2 = arith.constant 0 : i32
    return %c0_i32, %c0_i32_0, %c0_i32_1 : i32, i32, i32
  }
  func.func @transform_16(%arg0: i32) -> (i32, i32) {
    %c0_i32 = arith.constant 0 : i32
    %c0_i32_0 = arith.constant 0 : i32
    %c0_i32_1 = arith.constant 0 : i32
    return %c0_i32, %c0_i32_0 : i32, i32
  }
  func.func @transform_17(%arg0: i32) -> (i32, i32) {
    %c0_i32 = arith.constant 0 : i32
    %c0_i32_0 = arith.constant 0 : i32
    %c0_i32_1 = arith.constant 0 : i32
    return %c0_i32, %c0_i32_0 : i32, i32
  }
  func.func @transform_18(%arg0: i32) -> (i32, i32) {
    %c0_i32 = arith.constant 0 : i32
    %c0_i32_0 = arith.constant 0 : i32
    %c0_i32_1 = arith.constant 0 : i32
    return %c0_i32, %c0_i32_0 : i32, i32
  }
  func.func @transform_19(%arg0: i32) -> (i32, i32) {
    %c0_i32 = arith.constant 0 : i32
    %c0_i32_0 = arith.constant 0 : i32
    %c0_i32_1 = arith.constant 0 : i32
    return %c0_i32, %c0_i32_0 : i32, i32
  }
  func.func @transform_20(%arg0: i32) -> (i32, i32) {
    %c0_i32 = arith.constant 0 : i32
    %c0_i32_0 = arith.constant 0 : i32
    %c0_i32_1 = arith.constant 0 : i32
    return %c0_i32, %c0_i32_0 : i32, i32
  }
}

</mosaic_0001>

<llo_original>
// kernel: bert_class_forward.1
$region0: #{bert_class_forward.1}
  #allocation0 [shape = 'u32[]', space=smem, size = 0x4, offset = 0x4, fixed_abs, tag = 'smem constant byte address 0x4 - core index']
  #allocation1 [shape = 'u32[144,128]{1,0:T(1,128)}', space=vmem, size = 0x12000, scoped, tag = 'internal scratch']
  #allocation2 [shape = 'f32[1,1]{1,0:T(1,128)S(1)}', space=vmem, size = 0x200, scoped, tag = 'scoped memory for bert_class_forward.1']
  %s0 = inlined_call_operand.vmem [shape: f32[16,128], index: 0, kind: input, shape index: {}]
  %s1 = inlined_call_operand.vmem [shape: f32[2,1,8], index: 1, kind: input, shape index: {}]
  %s2 = inlined_call_operand.vmem [shape: f32[1,128], index: 2, kind: input, shape index: {}]
  %s3 = inlined_call_operand.vmem [shape: f32[1,128], index: 3, kind: input, shape index: {}]
  %s4 = inlined_call_operand.vmem [shape: bf16[2,128,384], index: 4, kind: input, shape index: {}]
  %s5 = inlined_call_operand.vmem [shape: f32[2,1,384], index: 5, kind: input, shape index: {}]
  %s6 = inlined_call_operand.vmem [shape: bf16[2,128,128], index: 6, kind: input, shape index: {}]
  %s7 = inlined_call_operand.vmem [shape: f32[2,1,128], index: 7, kind: input, shape index: {}]
  %s8 = inlined_call_operand.vmem [shape: f32[2,1,128], index: 8, kind: input, shape index: {}]
  %s9 = inlined_call_operand.vmem [shape: f32[2,1,128], index: 9, kind: input, shape index: {}]
  %s10 = inlined_call_operand.vmem [shape: bf16[2,128,512], index: 10, kind: input, shape index: {}]
  %s11 = inlined_call_operand.vmem [shape: f32[2,1,512], index: 11, kind: input, shape index: {}]
  %s12 = inlined_call_operand.vmem [shape: bf16[2,512,128], index: 12, kind: input, shape index: {}]
  %s13 = inlined_call_operand.vmem [shape: f32[2,1,128], index: 13, kind: input, shape index: {}]
  %s14 = inlined_call_operand.vmem [shape: f32[2,1,128], index: 14, kind: input, shape index: {}]
  %s15 = inlined_call_operand.vmem [shape: f32[2,1,128], index: 15, kind: input, shape index: {}]
  %s16 = inlined_call_operand.vmem [shape: bf16[128,128], index: 16, kind: input, shape index: {}]
  %s17 = inlined_call_operand.vmem [shape: f32[1,128], index: 17, kind: input, shape index: {}]
  %s18 = inlined_call_operand.vmem [shape: f32[128,1], index: 18, kind: input, shape index: {}]
  %s19 = inlined_call_operand.<no memory space> [shape: f32[1,1], index: 19, kind: input, shape index: {}]
  %s20 = inlined_call_operand.vmem [shape: f32[2,1], index: 20, kind: output, shape index: {}]
  %s21 = sld [smem:[#allocation0]]
  $region90: #{bert_class_forward.1} parent=0
    _
  %s23 = ssub.s32 1, %s21
  %s24 = scalar_select 0, %s23, %s21
  %v25 = vstv %s19
  %26 = vst [vmem:[#allocation2] sm:$0x1] %v25
  // Predicated region
  $region2: #{bert_class_forward.1} parent=0 // pred_check
    _
  $region3: #{bert_class_forward.1} parent=0 // pred_check_branch
    %28 = sbr.rel (0) target = $region5
  $region4: #{bert_class_forward.1} parent=0 // pred_region
    _
  $region5: #{bert_class_forward.1} parent=0 // pred_fallthru
    _
  // Predicated region
  $region6: #{bert_class_forward.1} parent=0 // pred_check
    _
  $region7: #{bert_class_forward.1} parent=0 // pred_check_branch
    %30 = sbr.rel (0) target = $region9
  $region8: #{bert_class_forward.1} parent=0 // pred_region
    _
  $region9: #{bert_class_forward.1} parent=0 // pred_fallthru
    _
  // Predicated region
  $region10: #{bert_class_forward.1} parent=0 // pred_check
    _
  $region11: #{bert_class_forward.1} parent=0 // pred_check_branch
    %32 = sbr.rel (0) target = $region13
  $region12: #{bert_class_forward.1} parent=0 // pred_region
    _
  $region13: #{bert_class_forward.1} parent=0 // pred_fallthru
    _
  // Predicated region
  $region14: #{bert_class_forward.1} parent=0 // pred_check
    _
  $region15: #{bert_class_forward.1} parent=0 // pred_check_branch
    %34 = sbr.rel (0) target = $region17
  $region16: #{bert_class_forward.1} parent=0 // pred_region
    _
  $region17: #{bert_class_forward.1} parent=0 // pred_fallthru
    _
  // Predicated region
  $region18: #{bert_class_forward.1} parent=0 // pred_check
    _
  $region19: #{bert_class_forward.1} parent=0 // pred_check_branch
    %36 = sbr.rel (0) target = $region21
  $region20: #{bert_class_forward.1} parent=0 // pred_region
    _
  $region21: #{bert_class_forward.1} parent=0 // pred_fallthru
    _
  // Predicated region
  $region22: #{bert_class_forward.1} parent=0 // pred_check
    _
  $region23: #{bert_class_forward.1} parent=0 // pred_check_branch
    %38 = sbr.rel (0) target = $region25
  $region24: #{bert_class_forward.1} parent=0 // pred_region
    _
  $region25: #{bert_class_forward.1} parent=0 // pred_fallthru
    _
  // Predicated region
  $region26: #{bert_class_forward.1} parent=0 // pred_check
    _
  $region27: #{bert_class_forward.1} parent=0 // pred_check_branch
    %40 = sbr.rel (0) target = $region29
  $region28: #{bert_class_forward.1} parent=0 // pred_region
    _
  $region29: #{bert_class_forward.1} parent=0 // pred_fallthru
    _
  // Predicated region
  $region30: #{bert_class_forward.1} parent=0 // pred_check
    _
  $region31: #{bert_class_forward.1} parent=0 // pred_check_branch
    %42 = sbr.rel (0) target = $region33
  $region32: #{bert_class_forward.1} parent=0 // pred_region
    _
  $region33: #{bert_class_forward.1} parent=0 // pred_fallthru
    _
  // Predicated region
  $region34: #{bert_class_forward.1} parent=0 // pred_check
    _
  $region35: #{bert_class_forward.1} parent=0 // pred_check_branch
    %44 = sbr.rel (0) target = $region37
  $region36: #{bert_class_forward.1} parent=0 // pred_region
    _
  $region37: #{bert_class_forward.1} parent=0 // pred_fallthru
    _
  // Predicated region
  $region38: #{bert_class_forward.1} parent=0 // pred_check
    _
  $region39: #{bert_class_forward.1} parent=0 // pred_check_branch
    %46 = sbr.rel (0) target = $region41
  $region40: #{bert_class_forward.1} parent=0 // pred_region
    _
  $region41: #{bert_class_forward.1} parent=0 // pred_fallthru
    _
  // Predicated region
  $region42: #{bert_class_forward.1} parent=0 // pred_check
    _
  $region43: #{bert_class_forward.1} parent=0 // pred_check_branch
    %48 = sbr.rel (0) target = $region45
  $region44: #{bert_class_forward.1} parent=0 // pred_region
    _
  $region45: #{bert_class_forward.1} parent=0 // pred_fallthru
    _
  // Predicated region
  $region46: #{bert_class_forward.1} parent=0 // pred_check
    _
  $region47: #{bert_class_forward.1} parent=0 // pred_check_branch
    %50 = sbr.rel (0) target = $region49
  $region48: #{bert_class_forward.1} parent=0 // pred_region
    _
  $region49: #{bert_class_forward.1} parent=0 // pred_fallthru
    _
  // Predicated region
  $region50: #{bert_class_forward.1} parent=0 // pred_check
    _
  $region51: #{bert_class_forward.1} parent=0 // pred_check_branch
    %52 = sbr.rel (0) target = $region53
  $region52: #{bert_class_forward.1} parent=0 // pred_region
    _
  $region53: #{bert_class_forward.1} parent=0 // pred_fallthru
    _
  // Predicated region
  $region54: #{bert_class_forward.1} parent=0 // pred_check
    _
  $region55: #{bert_class_forward.1} parent=0 // pred_check_branch
    %54 = sbr.rel (0) target = $region57
  $region56: #{bert_class_forward.1} parent=0 // pred_region
    _
  $region57: #{bert_class_forward.1} parent=0 // pred_fallthru
    _
  // Predicated region
  $region58: #{bert_class_forward.1} parent=0 // pred_check
    _
  $region59: #{bert_class_forward.1} parent=0 // pred_check_branch
    %56 = sbr.rel (0) target = $region61
  $region60: #{bert_class_forward.1} parent=0 // pred_region
    _
  $region61: #{bert_class_forward.1} parent=0 // pred_fallthru
    _
  // Predicated region
  $region62: #{bert_class_forward.1} parent=0 // pred_check
    _
  $region63: #{bert_class_forward.1} parent=0 // pred_check_branch
    %58 = sbr.rel (0) target = $region65
  $region64: #{bert_class_forward.1} parent=0 // pred_region
    _
  $region65: #{bert_class_forward.1} parent=0 // pred_fallthru
    _
  // Predicated region
  $region66: #{bert_class_forward.1} parent=0 // pred_check
    _
  $region67: #{bert_class_forward.1} parent=0 // pred_check_branch
    %60 = sbr.rel (0) target = $region69
  $region68: #{bert_class_forward.1} parent=0 // pred_region
    _
  $region69: #{bert_class_forward.1} parent=0 // pred_fallthru
    _
  // Predicated region
  $region70: #{bert_class_forward.1} parent=0 // pred_check
    _
  $region71: #{bert_class_forward.1} parent=0 // pred_check_branch
    %62 = sbr.rel (0) target = $region73
  $region72: #{bert_class_forward.1} parent=0 // pred_region
    _
  $region73: #{bert_class_forward.1} parent=0 // pred_fallthru
    _
  // Predicated region
  $region74: #{bert_class_forward.1} parent=0 // pred_check
    _
  $region75: #{bert_class_forward.1} parent=0 // pred_check_branch
    %64 = sbr.rel (0) target = $region77
  $region76: #{bert_class_forward.1} parent=0 // pred_region
    _
  $region77: #{bert_class_forward.1} parent=0 // pred_fallthru
    _
  // Predicated region
  $region78: #{bert_class_forward.1} parent=0 // pred_check
    _
  $region79: #{bert_class_forward.1} parent=0 // pred_check_branch
    %66 = sbr.rel (0) target = $region81
  $region80: #{bert_class_forward.1} parent=0 // pred_region
    _
  $region81: #{bert_class_forward.1} parent=0 // pred_fallthru
    _
  %v68 = vld [vmem:[%s0] sm:$0xff]
  %v69 = vld [vmem:[%s0 + $0x8] sm:$0xff]
  %v70 = vld [vmem:[%s2] sm:$0x1]
  %v71 = vld [vmem:[%s3] sm:$0x1]
  %72 = vadd.xlane.f32.xlu0 %v68
  %v73 = vpop.xlane.xlu0 %72
  %74 = vadd.xlane.f32.xlu0 %v69
  %v75 = vpop.xlane.xlu0 %74
  %v76 = vrcp.pop 128.0
  %v77 = vmul.f32 %v73, %v76
  %v78 = vmul.f32 %v75, %v76
  %v79 = vsub.f32 %v68, %v77
  %v80 = vsub.f32 %v69, %v78
  %v81 = vmul.f32 %v79, %v79
  %v82 = vmul.f32 %v80, %v80
  %83 = vadd.xlane.f32.xlu0 %v81
  %v84 = vpop.xlane.xlu0 %83
  %85 = vadd.xlane.f32.xlu0 %v82
  %v86 = vpop.xlane.xlu0 %85
  %v87 = vmul.f32 %v84, %v76
  %v88 = vmul.f32 %v86, %v76
  %v89 = vadd.f32 %v87, 1e-12
  %v90 = vadd.f32 %v88, 1e-12
  %v91 = vrsqrt.pop %v89
  %v92 = vrsqrt.pop %v90
  %v93 = vmul.f32 %v79, %v91
  %v94 = vmul.f32 %v80, %v92
  %v96 = vlaneseq
  %v97 = vshrl.u32 %v96, 7
  %v98 = vsub.s32 0, %v97
  %v99 = vrot.slane %v70, %v98
  %v101 = vmul.f32 %v93, %v99
  %v102 = vmul.f32 %v94, %v99
  %v104 = vlaneseq
  %v105 = vshrl.u32 %v104, 7
  %v106 = vsub.s32 0, %v105
  %v107 = vrot.slane %v71, %v106
  %v109 = vadd.f32 %v101, %v107
  %v110 = vadd.f32 %v102, %v107
  %v111 = vld [vmem:[%s4] sm:$0xff]
  %v112 = vld [vmem:[%s4 + $0x8] sm:$0xf]
  %v113 = vld [vmem:[%s4 + $0xc] sm:$0xff]
  %v114 = vld [vmem:[%s4 + $0x14] sm:$0xf]
  %v115 = vld [vmem:[%s4 + $0x18] sm:$0xff]
  %v116 = vld [vmem:[%s4 + $0x20] sm:$0xf]
  %v117 = vld [vmem:[%s4 + $0x24] sm:$0xff]
  %v118 = vld [vmem:[%s4 + $0x2c] sm:$0xf]
  %v119 = vld [vmem:[%s4 + $0x30] sm:$0xff]
  %v120 = vld [vmem:[%s4 + $0x38] sm:$0xf]
  %v121 = vld [vmem:[%s4 + $0x3c] sm:$0xff]
  %v122 = vld [vmem:[%s4 + $0x44] sm:$0xf]
  %v123 = vld [vmem:[%s4 + $0x48] sm:$0xff]
  %v124 = vld [vmem:[%s4 + $0x50] sm:$0xf]
  %v125 = vld [vmem:[%s4 + $0x54] sm:$0xff]
  %v126 = vld [vmem:[%s4 + $0x5c] sm:$0xf]
  %v127 = vld [vmem:[%s4 + $0x60] sm:$0xff]
  %v128 = vld [vmem:[%s4 + $0x68] sm:$0xf]
  %v129 = vld [vmem:[%s4 + $0x6c] sm:$0xff]
  %v130 = vld [vmem:[%s4 + $0x74] sm:$0xf]
  %v131 = vld [vmem:[%s4 + $0x78] sm:$0xff]
  %v132 = vld [vmem:[%s4 + $0x80] sm:$0xf]
  %v133 = vld [vmem:[%s4 + $0x84] sm:$0xff]
  %v134 = vld [vmem:[%s4 + $0x8c] sm:$0xf]
  %v135 = vld [vmem:[%s4 + $0x90] sm:$0xff]
  %v136 = vld [vmem:[%s4 + $0x98] sm:$0xf]
  %v137 = vld [vmem:[%s4 + $0x9c] sm:$0xff]
  %v138 = vld [vmem:[%s4 + $0xa4] sm:$0xf]
  %v139 = vld [vmem:[%s4 + $0xa8] sm:$0xff]
  %v140 = vld [vmem:[%s4 + $0xb0] sm:$0xf]
  %v141 = vld [vmem:[%s4 + $0xb4] sm:$0xff]
  %v142 = vld [vmem:[%s4 + $0xbc] sm:$0xf]
  %v143 = vld [vmem:[%s5] sm:$0x7]
  %v144 = vpack.c.bf16 %v110, %v109
  %v146 = vlaneseq
  %v147 = vshrl.u32 %v146, 7
  %v148 = vsub.s32 0, %v147
  %v149 = vrot.slane %v143, %v148
  %v150 = vlaneseq
  %v151 = vshrl.u32 %v150, 7
  %v152 = vsub.s32 1, %v151
  %v153 = vrot.slane %v143, %v152
  %v154 = vlaneseq
  %v155 = vshrl.u32 %v154, 7
  %v156 = vsub.s32 2, %v155
  %v157 = vrot.slane %v143, %v156
  %v193 = vunpack.c.l.b16 %v111
  %v194 = vunpack.c.h.b16 %v111
  %v195 = vunpack.c.l.b16 %v112
  %v196 = vunpack.c.l.b16 %v113
  %v197 = vunpack.c.h.b16 %v113
  %v198 = vunpack.c.l.b16 %v114
  %v199 = vunpack.c.l.b16 %v115
  %v200 = vunpack.c.h.b16 %v115
  %v201 = vunpack.c.l.b16 %v116
  %v202 = vunpack.c.l.b16 %v117
  %v203 = vunpack.c.h.b16 %v117
  %v204 = vunpack.c.l.b16 %v118
  %v205 = vunpack.c.l.b16 %v119
  %v206 = vunpack.c.h.b16 %v119
  %v207 = vunpack.c.l.b16 %v120
  %v208 = vunpack.c.l.b16 %v121
  %v209 = vunpack.c.h.b16 %v121
  %v210 = vunpack.c.l.b16 %v122
  %v211 = vunpack.c.l.b16 %v123
  %v212 = vunpack.c.h.b16 %v123
  %v213 = vunpack.c.l.b16 %v124
  %v214 = vunpack.c.l.b16 %v125
  %v215 = vunpack.c.h.b16 %v125
  %v216 = vunpack.c.l.b16 %v126
  %v217 = vunpack.c.l.b16 %v127
  %v218 = vunpack.c.h.b16 %v127
  %v219 = vunpack.c.l.b16 %v128
  %v220 = vunpack.c.l.b16 %v129
  %v221 = vunpack.c.h.b16 %v129
  %v222 = vunpack.c.l.b16 %v130
  %v223 = vunpack.c.l.b16 %v131
  %v224 = vunpack.c.h.b16 %v131
  %v225 = vunpack.c.l.b16 %v132
  %v226 = vunpack.c.l.b16 %v133
  %v227 = vunpack.c.h.b16 %v133
  %v228 = vunpack.c.l.b16 %v134
  %v229 = vunpack.c.l.b16 %v135
  %v230 = vunpack.c.h.b16 %v135
  %v231 = vunpack.c.l.b16 %v136
  %v232 = vunpack.c.l.b16 %v137
  %v233 = vunpack.c.h.b16 %v137
  %v234 = vunpack.c.l.b16 %v138
  %v235 = vunpack.c.l.b16 %v139
  %v236 = vunpack.c.h.b16 %v139
  %v237 = vunpack.c.l.b16 %v140
  %v238 = vunpack.c.l.b16 %v141
  %v239 = vunpack.c.h.b16 %v141
  %v240 = vunpack.c.l.b16 %v142
  %v241 = vpack.c.b16 %v196, %v193
  %v242 = vpack.c.b16 %v197, %v194
  %v243 = vpack.c.b16 %v198, %v195
  %v244 = vpack.c.b16 %v202, %v199
  %v245 = vpack.c.b16 %v203, %v200
  %v246 = vpack.c.b16 %v204, %v201
  %v247 = vpack.c.b16 %v208, %v205
  %v248 = vpack.c.b16 %v209, %v206
  %v249 = vpack.c.b16 %v210, %v207
  %v250 = vpack.c.b16 %v214, %v211
  %v251 = vpack.c.b16 %v215, %v212
  %v252 = vpack.c.b16 %v216, %v213
  %v253 = vpack.c.b16 %v220, %v217
  %v254 = vpack.c.b16 %v221, %v218
  %v255 = vpack.c.b16 %v222, %v219
  %v256 = vpack.c.b16 %v226, %v223
  %v257 = vpack.c.b16 %v227, %v224
  %v258 = vpack.c.b16 %v228, %v225
  %v259 = vpack.c.b16 %v232, %v229
  %v260 = vpack.c.b16 %v233, %v230
  %v261 = vpack.c.b16 %v234, %v231
  %v262 = vpack.c.b16 %v238, %v235
  %v263 = vpack.c.b16 %v239, %v236
  %v264 = vpack.c.b16 %v240, %v237
  %289 = vmatprep.subr.bf16.mxu0 %v263
  %290 = vmatpush1.bf16.msra.mxu0 %v262
  %291 = vmatprep.subr.bf16.mxu0 %v260
  %292 = vmatpush1.bf16.msra.mxu0 %v259
  %293 = vmatprep.subr.bf16.mxu0 %v257
  %294 = vmatpush1.bf16.msra.mxu0 %v256
  %295 = vmatprep.subr.bf16.mxu0 %v254
  %296 = vmatpush1.bf16.msra.mxu0 %v253
  %297 = vmatprep.subr.bf16.mxu0 %v251
  %298 = vmatpush1.bf16.msra.mxu0 %v250
  %299 = vmatprep.subr.bf16.mxu0 %v248
  %300 = vmatpush1.bf16.msra.mxu0 %v247
  %301 = vmatprep.subr.bf16.mxu0 %v245
  %302 = vmatpush1.bf16.msra.mxu0 %v244
  %303 = vmatprep.subr.bf16.mxu0 %v242
  %304 = vmatpush1.bf16.msra.mxu0 %v241
  %305 = vmatprep.subr.bf16.mxu0 0
  %306 = vmatpush2.bf16.msra.mxu0 0
  %307 = vmatprep.subr.bf16.mxu0 0
  %308 = vmatpush2.bf16.msra.mxu0 0
  %309 = vmatprep.subr.bf16.mxu0 0
  %310 = vmatpush2.bf16.msra.mxu0 0
  %311 = vmatprep.subr.bf16.mxu0 0
  %312 = vmatpush2.bf16.msra.mxu0 0
  %313 = vmatprep.subr.bf16.mxu0 0
  %314 = vmatpush2.bf16.msra.mxu0 0
  %315 = vmatprep.subr.bf16.mxu0 0
  %316 = vmatpush2.bf16.msra.mxu0 0
  %317 = vmatprep.subr.bf16.mxu0 0
  %318 = vmatpush2.bf16.msra.mxu0 0
  %319 = vmatprep.subr.bf16.mxu0 0
  %320 = vmatpush2.bf16.msra.mxu0 0
  %321 = vmatprep.mubr.bf16.mxu0 0
  %322 = vmatmul.mubr.bf16.gmra.mxu0 %v144
  %v323 = vpop.f32.mrf.mxu0
  %v324 = vadd.f32 %v149, %v323
  %v325 = vpop.f32.mrf.mxu0
  %v326 = vadd.f32 %v153, %v325
  %v327 = vpop.f32.mrf.mxu0
  %v328 = vadd.f32 %v149, %v327
  %v329 = vpop.f32.mrf.mxu0
  %v330 = vadd.f32 %v153, %v329
  %331 = vdwg.mxu0
  %332 = vmatprep.subr.bf16.mxu0 0
  %333 = vmatpush1.bf16.msra.mxu0 %v264
  %334 = vmatprep.subr.bf16.mxu0 0
  %335 = vmatpush1.bf16.msra.mxu0 %v261
  %336 = vmatprep.subr.bf16.mxu0 0
  %337 = vmatpush1.bf16.msra.mxu0 %v258
  %338 = vmatprep.subr.bf16.mxu0 0
  %339 = vmatpush1.bf16.msra.mxu0 %v255
  %340 = vmatprep.subr.bf16.mxu0 0
  %341 = vmatpush1.bf16.msra.mxu0 %v252
  %342 = vmatprep.subr.bf16.mxu0 0
  %343 = vmatpush1.bf16.msra.mxu0 %v249
  %344 = vmatprep.subr.bf16.mxu0 0
  %345 = vmatpush1.bf16.msra.mxu0 %v246
  %346 = vmatprep.subr.bf16.mxu0 0
  %347 = vmatpush1.bf16.msra.mxu0 %v243
  %348 = vmatprep.subr.bf16.mxu0 0
  %349 = vmatpush2.bf16.msra.mxu0 0
  %350 = vmatprep.subr.bf16.mxu0 0
  %351 = vmatpush2.bf16.msra.mxu0 0
  %352 = vmatprep.subr.bf16.mxu0 0
  %353 = vmatpush2.bf16.msra.mxu0 0
  %354 = vmatprep.subr.bf16.mxu0 0
  %355 = vmatpush2.bf16.msra.mxu0 0
  %356 = vmatprep.subr.bf16.mxu0 0
  %357 = vmatpush2.bf16.msra.mxu0 0
  %358 = vmatprep.subr.bf16.mxu0 0
  %359 = vmatpush2.bf16.msra.mxu0 0
  %360 = vmatprep.subr.bf16.mxu0 0
  %361 = vmatpush2.bf16.msra.mxu0 0
  %362 = vmatprep.subr.bf16.mxu0 0
  %363 = vmatpush2.bf16.msra.mxu0 0
  %364 = vmatprep.mubr.bf16.mxu0 0
  %365 = vmatmul.mubr.bf16.gmra.mxu0 %v144
  %v366 = vpop.f32.mrf.mxu0
  %v367 = vadd.f32 %v157, %v366
  %v368 = vpop.f32.mrf.mxu0
  %v369 = vpop.f32.mrf.mxu0
  %v370 = vadd.f32 %v157, %v369
  %v371 = vpop.f32.mrf.mxu0
  %372 = vdwg.mxu0
  %v373 = vld [vmem:[%s1] sm:$0x1]
  %v374 = vpack.c.bf16 %v324, %v324
  %v375 = vpack.c.bf16 %v326, %v326
  %v376 = vpack.c.bf16 %v367, %v367
  %vm377 = vcmask 523264
  %v379 = vsel %vm377, %v374, 0
  %v382 = vsel %vm377, %v375, 0
  %384 = vmatprep.subr.bf16.mxu0 0
  %385 = vmatpush1.bf16.xpose.msra.mxu0 0
  %386 = vmatprep.subr.bf16.mxu0 0
  %387 = vmatpush1.bf16.xpose.msra.mxu0 0
  %388 = vmatprep.subr.bf16.mxu0 0
  %389 = vmatpush1.bf16.xpose.msra.mxu0 0
  %390 = vmatprep.subr.bf16.mxu0 0
  %391 = vmatpush1.bf16.xpose.msra.mxu0 0
  %392 = vmatprep.subr.bf16.mxu0 0
  %393 = vmatpush1.bf16.xpose.msra.mxu0 0
  %394 = vmatprep.subr.bf16.mxu0 0
  %395 = vmatpush1.bf16.xpose.msra.mxu0 0
  %396 = vmatprep.subr.bf16.mxu0 0
  %397 = vmatpush1.bf16.xpose.msra.mxu0 0
  %398 = vmatprep.subr.bf16.mxu0 0
  %399 = vmatpush1.bf16.xpose.msra.mxu0 %v382
  %400 = vmatprep.subr.bf16.mxu0 0
  %401 = vmatpush2.bf16.xpose.msra.mxu0 0
  %402 = vmatprep.subr.bf16.mxu0 0
  %403 = vmatpush2.bf16.xpose.msra.mxu0 0
  %404 = vmatprep.subr.bf16.mxu0 0
  %405 = vmatpush2.bf16.xpose.msra.mxu0 0
  %406 = vmatprep.subr.bf16.mxu0 0
  %407 = vmatpush2.bf16.xpose.msra.mxu0 0
  %408 = vmatprep.subr.bf16.mxu0 0
  %409 = vmatpush2.bf16.xpose.msra.mxu0 0
  %410 = vmatprep.subr.bf16.mxu0 0
  %411 = vmatpush2.bf16.xpose.msra.mxu0 0
  %412 = vmatprep.subr.bf16.mxu0 0
  %413 = vmatpush2.bf16.xpose.msra.mxu0 0
  %414 = vmatprep.subr.bf16.mxu0 0
  %415 = vmatpush2.bf16.xpose.msra.mxu0 0
  %416 = vmatprep.mubr.bf16.mxu0 0
  %417 = vmatmul.mubr.bf16.gmra.mxu0 %v379
  %v418 = vpop.f32.mrf.mxu0
  %v419 = vadd.f32 0.0, %v418
  %v420 = vpop.f32.mrf.mxu0
  %v421 = vpop.f32.mrf.mxu0
  %v422 = vpop.f32.mrf.mxu0
  %423 = vdwg.mxu0
  %v424 = vmul.f32 %v419, 0.125
  %v426 = vlaneseq
  %v427 = vshrl.u32 %v426, 7
  %v428 = vsub.s32 0, %v427
  %v429 = vrot.slane %v373, %v428
  %v431 = vadd.f32 %v424, %v429
  %vm432 = vcmask 64512
  %v433 = vsel %vm432, %v431, -inf
  %434 = vmax.xlane.f32.xlu0 %v433
  %v435 = vpop.xlane.xlu0 %434
  %v436 = vsub.f32 %v431, %v435
  %v437 = vmul.f32 %v436, 1.442695
  %v438 = vpow.pop %v437
  %v439 = vsel %vm432, %v438, 0.0
  %440 = vadd.xlane.f32.xlu0 %v439
  %v441 = vpop.xlane.xlu0 %440
  %v442 = vrcp.pop %v441
  %v443 = vmul.f32 %v438, %v442
  %v444 = vpack.c.bf16 %v443, %v443
  %v446 = vsel %vm432, %v444, 0
  %vm448 = vcmask 1043456
  %v450 = vsel %vm448, %v376, 0
  %452 = vmatprep.subr.bf16.mxu0 0
  %453 = vmatpush1.bf16.msra.mxu0 0
  %454 = vmatprep.subr.bf16.mxu0 0
  %455 = vmatpush1.bf16.msra.mxu0 0
  %456 = vmatprep.subr.bf16.mxu0 0
  %457 = vmatpush1.bf16.msra.mxu0 0
  %458 = vmatprep.subr.bf16.mxu0 0
  %459 = vmatpush1.bf16.msra.mxu0 0
  %460 = vmatprep.subr.bf16.mxu0 0
  %461 = vmatpush1.bf16.msra.mxu0 0
  %462 = vmatprep.subr.bf16.mxu0 0
  %463 = vmatpush1.bf16.msra.mxu0 0
  %464 = vmatprep.subr.bf16.mxu0 0
  %465 = vmatpush1.bf16.msra.mxu0 0
  %466 = vmatprep.subr.bf16.mxu0 0
  %467 = vmatpush1.bf16.msra.mxu0 %v450
  %468 = vmatprep.subr.bf16.mxu0 0
  %469 = vmatpush2.bf16.msra.mxu0 0
  %470 = vmatprep.subr.bf16.mxu0 0
  %471 = vmatpush2.bf16.msra.mxu0 0
  %472 = vmatprep.subr.bf16.mxu0 0
  %473 = vmatpush2.bf16.msra.mxu0 0
  %474 = vmatprep.subr.bf16.mxu0 0
  %475 = vmatpush2.bf16.msra.mxu0 0
  %476 = vmatprep.subr.bf16.mxu0 0
  %477 = vmatpush2.bf16.msra.mxu0 0
  %478 = vmatprep.subr.bf16.mxu0 0
  %479 = vmatpush2.bf16.msra.mxu0 0
  %480 = vmatprep.subr.bf16.mxu0 0
  %481 = vmatpush2.bf16.msra.mxu0 0
  %482 = vmatprep.subr.bf16.mxu0 0
  %483 = vmatpush2.bf16.msra.mxu0 0
  %484 = vmatprep.mubr.bf16.mxu0 0
  %485 = vmatmul.mubr.bf16.gmra.mxu0 %v446
  %v486 = vpop.f32.mrf.mxu0
  %v487 = vadd.f32 0.0, %v486
  %v488 = vpop.f32.mrf.mxu0
  %v489 = vpop.f32.mrf.mxu0
  %v490 = vpop.f32.mrf.mxu0
  %491 = vdwg.mxu0
  %493 = vrot.lane.b32.xlu0 %v374, 64
  %v494 = vpop.permute.xlu0 %493
  %496 = vrot.lane.b32.xlu0 %v375, 64
  %v497 = vpop.permute.xlu0 %496
  %v499 = vsel %vm377, %v494, 0
  %v502 = vsel %vm377, %v497, 0
  %504 = vmatprep.subr.bf16.mxu0 0
  %505 = vmatpush1.bf16.xpose.msra.mxu0 0
  %506 = vmatprep.subr.bf16.mxu0 0
  %507 = vmatpush1.bf16.xpose.msra.mxu0 0
  %508 = vmatprep.subr.bf16.mxu0 0
  %509 = vmatpush1.bf16.xpose.msra.mxu0 0
  %510 = vmatprep.subr.bf16.mxu0 0
  %511 = vmatpush1.bf16.xpose.msra.mxu0 0
  %512 = vmatprep.subr.bf16.mxu0 0
  %513 = vmatpush1.bf16.xpose.msra.mxu0 0
  %514 = vmatprep.subr.bf16.mxu0 0
  %515 = vmatpush1.bf16.xpose.msra.mxu0 0
  %516 = vmatprep.subr.bf16.mxu0 0
  %517 = vmatpush1.bf16.xpose.msra.mxu0 0
  %518 = vmatprep.subr.bf16.mxu0 0
  %519 = vmatpush1.bf16.xpose.msra.mxu0 %v502
  %520 = vmatprep.subr.bf16.mxu0 0
  %521 = vmatpush2.bf16.xpose.msra.mxu0 0
  %522 = vmatprep.subr.bf16.mxu0 0
  %523 = vmatpush2.bf16.xpose.msra.mxu0 0
  %524 = vmatprep.subr.bf16.mxu0 0
  %525 = vmatpush2.bf16.xpose.msra.mxu0 0
  %526 = vmatprep.subr.bf16.mxu0 0
  %527 = vmatpush2.bf16.xpose.msra.mxu0 0
  %528 = vmatprep.subr.bf16.mxu0 0
  %529 = vmatpush2.bf16.xpose.msra.mxu0 0
  %530 = vmatprep.subr.bf16.mxu0 0
  %531 = vmatpush2.bf16.xpose.msra.mxu0 0
  %532 = vmatprep.subr.bf16.mxu0 0
  %533 = vmatpush2.bf16.xpose.msra.mxu0 0
  %534 = vmatprep.subr.bf16.mxu0 0
  %535 = vmatpush2.bf16.xpose.msra.mxu0 0
  %536 = vmatprep.mubr.bf16.mxu0 0
  %537 = vmatmul.mubr.bf16.gmra.mxu0 %v499
  %v538 = vpop.f32.mrf.mxu0
  %v539 = vadd.f32 0.0, %v538
  %v540 = vpop.f32.mrf.mxu0
  %v541 = vpop.f32.mrf.mxu0
  %v542 = vpop.f32.mrf.mxu0
  %543 = vdwg.mxu0
  %v544 = vmul.f32 %v539, 0.125
  %v545 = vadd.f32 %v544, %v429
  %v546 = vsel %vm432, %v545, -inf
  %547 = vmax.xlane.f32.xlu0 %v546
  %v548 = vpop.xlane.xlu0 %547
  %v549 = vsub.f32 %v545, %v548
  %v550 = vmul.f32 %v549, 1.442695
  %v551 = vpow.pop %v550
  %v552 = vsel %vm432, %v551, 0.0
  %553 = vadd.xlane.f32.xlu0 %v552
  %v554 = vpop.xlane.xlu0 %553
  %v555 = vrcp.pop %v554
  %v556 = vmul.f32 %v551, %v555
  %v557 = vpack.c.bf16 %v556, %v556
  %559 = vrot.lane.b32.xlu0 %v376, 64
  %v560 = vpop.permute.xlu0 %559
  %v562 = vsel %vm432, %v557, 0
  %v565 = vsel %vm448, %v560, 0
  %567 = vmatprep.subr.bf16.mxu0 0
  %568 = vmatpush1.bf16.msra.mxu0 0
  %569 = vmatprep.subr.bf16.mxu0 0
  %570 = vmatpush1.bf16.msra.mxu0 0
  %571 = vmatprep.subr.bf16.mxu0 0
  %572 = vmatpush1.bf16.msra.mxu0 0
  %573 = vmatprep.subr.bf16.mxu0 0
  %574 = vmatpush1.bf16.msra.mxu0 0
  %575 = vmatprep.subr.bf16.mxu0 0
  %576 = vmatpush1.bf16.msra.mxu0 0
  %577 = vmatprep.subr.bf16.mxu0 0
  %578 = vmatpush1.bf16.msra.mxu0 0
  %579 = vmatprep.subr.bf16.mxu0 0
  %580 = vmatpush1.bf16.msra.mxu0 0
  %581 = vmatprep.subr.bf16.mxu0 0
  %582 = vmatpush1.bf16.msra.mxu0 %v565
  %583 = vmatprep.subr.bf16.mxu0 0
  %584 = vmatpush2.bf16.msra.mxu0 0
  %585 = vmatprep.subr.bf16.mxu0 0
  %586 = vmatpush2.bf16.msra.mxu0 0
  %587 = vmatprep.subr.bf16.mxu0 0
  %588 = vmatpush2.bf16.msra.mxu0 0
  %589 = vmatprep.subr.bf16.mxu0 0
  %590 = vmatpush2.bf16.msra.mxu0 0
  %591 = vmatprep.subr.bf16.mxu0 0
  %592 = vmatpush2.bf16.msra.mxu0 0
  %593 = vmatprep.subr.bf16.mxu0 0
  %594 = vmatpush2.bf16.msra.mxu0 0
  %595 = vmatprep.subr.bf16.mxu0 0
  %596 = vmatpush2.bf16.msra.mxu0 0
  %597 = vmatprep.subr.bf16.mxu0 0
  %598 = vmatpush2.bf16.msra.mxu0 0
  %599 = vmatprep.mubr.bf16.mxu0 0
  %600 = vmatmul.mubr.bf16.gmra.mxu0 %v562
  %v601 = vpop.f32.mrf.mxu0
  %v602 = vadd.f32 0.0, %v601
  %v603 = vpop.f32.mrf.mxu0
  %v604 = vpop.f32.mrf.mxu0
  %v605 = vpop.f32.mrf.mxu0
  %606 = vdwg.mxu0
  %608 = vrot.lane.b32.xlu0 %v602, 64
  %v609 = vpop.permute.xlu0 %608
  %v611 = vsel %vm377, %v487, %v609
  %s612 = scalar_lea.vmem %s1, 1
  %v613 = vld [vmem:[%s612] sm:$0x1]
  %v614 = vpack.c.bf16 %v328, %v328
  %v615 = vpack.c.bf16 %v330, %v330
  %v616 = vpack.c.bf16 %v370, %v370
  %v618 = vsel %vm377, %v614, 0
  %v621 = vsel %vm377, %v615, 0
  %623 = vmatprep.subr.bf16.mxu0 0
  %624 = vmatpush1.bf16.xpose.msra.mxu0 0
  %625 = vmatprep.subr.bf16.mxu0 0
  %626 = vmatpush1.bf16.xpose.msra.mxu0 0
  %627 = vmatprep.subr.bf16.mxu0 0
  %628 = vmatpush1.bf16.xpose.msra.mxu0 0
  %629 = vmatprep.subr.bf16.mxu0 0
  %630 = vmatpush1.bf16.xpose.msra.mxu0 0
  %631 = vmatprep.subr.bf16.mxu0 0
  %632 = vmatpush1.bf16.xpose.msra.mxu0 0
  %633 = vmatprep.subr.bf16.mxu0 0
  %634 = vmatpush1.bf16.xpose.msra.mxu0 0
  %635 = vmatprep.subr.bf16.mxu0 0
  %636 = vmatpush1.bf16.xpose.msra.mxu0 0
  %637 = vmatprep.subr.bf16.mxu0 0
  %638 = vmatpush1.bf16.xpose.msra.mxu0 %v621
  %639 = vmatprep.subr.bf16.mxu0 0
  %640 = vmatpush2.bf16.xpose.msra.mxu0 0
  %641 = vmatprep.subr.bf16.mxu0 0
  %642 = vmatpush2.bf16.xpose.msra.mxu0 0
  %643 = vmatprep.subr.bf16.mxu0 0
  %644 = vmatpush2.bf16.xpose.msra.mxu0 0
  %645 = vmatprep.subr.bf16.mxu0 0
  %646 = vmatpush2.bf16.xpose.msra.mxu0 0
  %647 = vmatprep.subr.bf16.mxu0 0
  %648 = vmatpush2.bf16.xpose.msra.mxu0 0
  %649 = vmatprep.subr.bf16.mxu0 0
  %650 = vmatpush2.bf16.xpose.msra.mxu0 0
  %651 = vmatprep.subr.bf16.mxu0 0
  %652 = vmatpush2.bf16.xpose.msra.mxu0 0
  %653 = vmatprep.subr.bf16.mxu0 0
  %654 = vmatpush2.bf16.xpose.msra.mxu0 0
  %655 = vmatprep.mubr.bf16.mxu0 0
  %656 = vmatmul.mubr.bf16.gmra.mxu0 %v618
  %v657 = vpop.f32.mrf.mxu0
  %v658 = vadd.f32 0.0, %v657
  %v659 = vpop.f32.mrf.mxu0
  %v660 = vpop.f32.mrf.mxu0
  %v661 = vpop.f32.mrf.mxu0
  %662 = vdwg.mxu0
  %v663 = vmul.f32 %v658, 0.125
  %v665 = vlaneseq
  %v666 = vshrl.u32 %v665, 7
  %v667 = vsub.s32 0, %v666
  %v668 = vrot.slane %v613, %v667
  %v670 = vadd.f32 %v663, %v668
  %v671 = vsel %vm432, %v670, -inf
  %672 = vmax.xlane.f32.xlu0 %v671
  %v673 = vpop.xlane.xlu0 %672
  %v674 = vsub.f32 %v670, %v673
  %v675 = vmul.f32 %v674, 1.442695
  %v676 = vpow.pop %v675
  %v677 = vsel %vm432, %v676, 0.0
  %678 = vadd.xlane.f32.xlu0 %v677
  %v679 = vpop.xlane.xlu0 %678
  %v680 = vrcp.pop %v679
  %v681 = vmul.f32 %v676, %v680
  %v682 = vpack.c.bf16 %v681, %v681
  %v684 = vsel %vm432, %v682, 0
  %v687 = vsel %vm448, %v616, 0
  %689 = vmatprep.subr.bf16.mxu0 0
  %690 = vmatpush1.bf16.msra.mxu0 0
  %691 = vmatprep.subr.bf16.mxu0 0
  %692 = vmatpush1.bf16.msra.mxu0 0
  %693 = vmatprep.subr.bf16.mxu0 0
  %694 = vmatpush1.bf16.msra.mxu0 0
  %695 = vmatprep.subr.bf16.mxu0 0
  %696 = vmatpush1.bf16.msra.mxu0 0
  %697 = vmatprep.subr.bf16.mxu0 0
  %698 = vmatpush1.bf16.msra.mxu0 0
  %699 = vmatprep.subr.bf16.mxu0 0
  %700 = vmatpush1.bf16.msra.mxu0 0
  %701 = vmatprep.subr.bf16.mxu0 0
  %702 = vmatpush1.bf16.msra.mxu0 0
  %703 = vmatprep.subr.bf16.mxu0 0
  %704 = vmatpush1.bf16.msra.mxu0 %v687
  %705 = vmatprep.subr.bf16.mxu0 0
  %706 = vmatpush2.bf16.msra.mxu0 0
  %707 = vmatprep.subr.bf16.mxu0 0
  %708 = vmatpush2.bf16.msra.mxu0 0
  %709 = vmatprep.subr.bf16.mxu0 0
  %710 = vmatpush2.bf16.msra.mxu0 0
  %711 = vmatprep.subr.bf16.mxu0 0
  %712 = vmatpush2.bf16.msra.mxu0 0
  %713 = vmatprep.subr.bf16.mxu0 0
  %714 = vmatpush2.bf16.msra.mxu0 0
  %715 = vmatprep.subr.bf16.mxu0 0
  %716 = vmatpush2.bf16.msra.mxu0 0
  %717 = vmatprep.subr.bf16.mxu0 0
  %718 = vmatpush2.bf16.msra.mxu0 0
  %719 = vmatprep.subr.bf16.mxu0 0
  %720 = vmatpush2.bf16.msra.mxu0 0
  %721 = vmatprep.mubr.bf16.mxu0 0
  %722 = vmatmul.mubr.bf16.gmra.mxu0 %v684
  %v723 = vpop.f32.mrf.mxu0
  %v724 = vadd.f32 0.0, %v723
  %v725 = vpop.f32.mrf.mxu0
  %v726 = vpop.f32.mrf.mxu0
  %v727 = vpop.f32.mrf.mxu0
  %728 = vdwg.mxu0
  %730 = vrot.lane.b32.xlu0 %v614, 64
  %v731 = vpop.permute.xlu0 %730
  %733 = vrot.lane.b32.xlu0 %v615, 64
  %v734 = vpop.permute.xlu0 %733
  %v736 = vsel %vm377, %v731, 0
  %v739 = vsel %vm377, %v734, 0
  %741 = vmatprep.subr.bf16.mxu0 0
  %742 = vmatpush1.bf16.xpose.msra.mxu0 0
  %743 = vmatprep.subr.bf16.mxu0 0
  %744 = vmatpush1.bf16.xpose.msra.mxu0 0
  %745 = vmatprep.subr.bf16.mxu0 0
  %746 = vmatpush1.bf16.xpose.msra.mxu0 0
  %747 = vmatprep.subr.bf16.mxu0 0
  %748 = vmatpush1.bf16.xpose.msra.mxu0 0
  %749 = vmatprep.subr.bf16.mxu0 0
  %750 = vmatpush1.bf16.xpose.msra.mxu0 0
  %751 = vmatprep.subr.bf16.mxu0 0
  %752 = vmatpush1.bf16.xpose.msra.mxu0 0
  %753 = vmatprep.subr.bf16.mxu0 0
  %754 = vmatpush1.bf16.xpose.msra.mxu0 0
  %755 = vmatprep.subr.bf16.mxu0 0
  %756 = vmatpush1.bf16.xpose.msra.mxu0 %v739
  %757 = vmatprep.subr.bf16.mxu0 0
  %758 = vmatpush2.bf16.xpose.msra.mxu0 0
  %759 = vmatprep.subr.bf16.mxu0 0
  %760 = vmatpush2.bf16.xpose.msra.mxu0 0
  %761 = vmatprep.subr.bf16.mxu0 0
  %762 = vmatpush2.bf16.xpose.msra.mxu0 0
  %763 = vmatprep.subr.bf16.mxu0 0
  %764 = vmatpush2.bf16.xpose.msra.mxu0 0
  %765 = vmatprep.subr.bf16.mxu0 0
  %766 = vmatpush2.bf16.xpose.msra.mxu0 0
  %767 = vmatprep.subr.bf16.mxu0 0
  %768 = vmatpush2.bf16.xpose.msra.mxu0 0
  %769 = vmatprep.subr.bf16.mxu0 0
  %770 = vmatpush2.bf16.xpose.msra.mxu0 0
  %771 = vmatprep.subr.bf16.mxu0 0
  %772 = vmatpush2.bf16.xpose.msra.mxu0 0
  %773 = vmatprep.mubr.bf16.mxu0 0
  %774 = vmatmul.mubr.bf16.gmra.mxu0 %v736
  %v775 = vpop.f32.mrf.mxu0
  %v776 = vadd.f32 0.0, %v775
  %v777 = vpop.f32.mrf.mxu0
  %v778 = vpop.f32.mrf.mxu0
  %v779 = vpop.f32.mrf.mxu0
  %780 = vdwg.mxu0
  %v781 = vmul.f32 %v776, 0.125
  %v782 = vadd.f32 %v781, %v668
  %v783 = vsel %vm432, %v782, -inf
  %784 = vmax.xlane.f32.xlu0 %v783
  %v785 = vpop.xlane.xlu0 %784
  %v786 = vsub.f32 %v782, %v785
  %v787 = vmul.f32 %v786, 1.442695
  %v788 = vpow.pop %v787
  %v789 = vsel %vm432, %v788, 0.0
  %790 = vadd.xlane.f32.xlu0 %v789
  %v791 = vpop.xlane.xlu0 %790
  %v792 = vrcp.pop %v791
  %v793 = vmul.f32 %v788, %v792
  %v794 = vpack.c.bf16 %v793, %v793
  %796 = vrot.lane.b32.xlu0 %v616, 64
  %v797 = vpop.permute.xlu0 %796
  %v799 = vsel %vm432, %v794, 0
  %v802 = vsel %vm448, %v797, 0
  %804 = vmatprep.subr.bf16.mxu0 0
  %805 = vmatpush1.bf16.msra.mxu0 0
  %806 = vmatprep.subr.bf16.mxu0 0
  %807 = vmatpush1.bf16.msra.mxu0 0
  %808 = vmatprep.subr.bf16.mxu0 0
  %809 = vmatpush1.bf16.msra.mxu0 0
  %810 = vmatprep.subr.bf16.mxu0 0
  %811 = vmatpush1.bf16.msra.mxu0 0
  %812 = vmatprep.subr.bf16.mxu0 0
  %813 = vmatpush1.bf16.msra.mxu0 0
  %814 = vmatprep.subr.bf16.mxu0 0
  %815 = vmatpush1.bf16.msra.mxu0 0
  %816 = vmatprep.subr.bf16.mxu0 0
  %817 = vmatpush1.bf16.msra.mxu0 0
  %818 = vmatprep.subr.bf16.mxu0 0
  %819 = vmatpush1.bf16.msra.mxu0 %v802
  %820 = vmatprep.subr.bf16.mxu0 0
  %821 = vmatpush2.bf16.msra.mxu0 0
  %822 = vmatprep.subr.bf16.mxu0 0
  %823 = vmatpush2.bf16.msra.mxu0 0
  %824 = vmatprep.subr.bf16.mxu0 0
  %825 = vmatpush2.bf16.msra.mxu0 0
  %826 = vmatprep.subr.bf16.mxu0 0
  %827 = vmatpush2.bf16.msra.mxu0 0
  %828 = vmatprep.subr.bf16.mxu0 0
  %829 = vmatpush2.bf16.msra.mxu0 0
  %830 = vmatprep.subr.bf16.mxu0 0
  %831 = vmatpush2.bf16.msra.mxu0 0
  %832 = vmatprep.subr.bf16.mxu0 0
  %833 = vmatpush2.bf16.msra.mxu0 0
  %834 = vmatprep.subr.bf16.mxu0 0
  %835 = vmatpush2.bf16.msra.mxu0 0
  %836 = vmatprep.mubr.bf16.mxu0 0
  %837 = vmatmul.mubr.bf16.gmra.mxu0 %v799
  %v838 = vpop.f32.mrf.mxu0
  %v839 = vadd.f32 0.0, %v838
  %v840 = vpop.f32.mrf.mxu0
  %v841 = vpop.f32.mrf.mxu0
  %v842 = vpop.f32.mrf.mxu0
  %843 = vdwg.mxu0
  %845 = vrot.lane.b32.xlu0 %v839, 64
  %v846 = vpop.permute.xlu0 %845
  %v848 = vsel %vm377, %v724, %v846
  %v849 = vld [vmem:[%s6] sm:$0xf]
  %v850 = vld [vmem:[%s6 + $0x4] sm:$0xf]
  %v851 = vld [vmem:[%s6 + $0x8] sm:$0xf]
  %v852 = vld [vmem:[%s6 + $0xc] sm:$0xf]
  %v853 = vld [vmem:[%s6 + $0x10] sm:$0xf]
  %v854 = vld [vmem:[%s6 + $0x14] sm:$0xf]
  %v855 = vld [vmem:[%s6 + $0x18] sm:$0xf]
  %v856 = vld [vmem:[%s6 + $0x1c] sm:$0xf]
  %v857 = vld [vmem:[%s6 + $0x20] sm:$0xf]
  %v858 = vld [vmem:[%s6 + $0x24] sm:$0xf]
  %v859 = vld [vmem:[%s6 + $0x28] sm:$0xf]
  %v860 = vld [vmem:[%s6 + $0x2c] sm:$0xf]
  %v861 = vld [vmem:[%s6 + $0x30] sm:$0xf]
  %v862 = vld [vmem:[%s6 + $0x34] sm:$0xf]
  %v863 = vld [vmem:[%s6 + $0x38] sm:$0xf]
  %v864 = vld [vmem:[%s6 + $0x3c] sm:$0xf]
  %v865 = vld [vmem:[%s7] sm:$0x1]
  %v866 = vpack.c.bf16 %v848, %v611
  %v868 = vlaneseq
  %v869 = vshrl.u32 %v868, 7
  %v870 = vsub.s32 0, %v869
  %v871 = vrot.slane %v865, %v870
  %v889 = vunpack.c.l.b16 %v849
  %v890 = vunpack.c.l.b16 %v850
  %v891 = vunpack.c.l.b16 %v851
  %v892 = vunpack.c.l.b16 %v852
  %v893 = vunpack.c.l.b16 %v853
  %v894 = vunpack.c.l.b16 %v854
  %v895 = vunpack.c.l.b16 %v855
  %v896 = vunpack.c.l.b16 %v856
  %v897 = vunpack.c.l.b16 %v857
  %v898 = vunpack.c.l.b16 %v858
  %v899 = vunpack.c.l.b16 %v859
  %v900 = vunpack.c.l.b16 %v860
  %v901 = vunpack.c.l.b16 %v861
  %v902 = vunpack.c.l.b16 %v862
  %v903 = vunpack.c.l.b16 %v863
  %v904 = vunpack.c.l.b16 %v864
  %v905 = vpack.c.b16 %v890, %v889
  %v906 = vpack.c.b16 %v892, %v891
  %v907 = vpack.c.b16 %v894, %v893
  %v908 = vpack.c.b16 %v896, %v895
  %v909 = vpack.c.b16 %v898, %v897
  %v910 = vpack.c.b16 %v900, %v899
  %v911 = vpack.c.b16 %v902, %v901
  %v912 = vpack.c.b16 %v904, %v903
  %921 = vmatprep.subr.bf16.mxu0 0
  %922 = vmatpush1.bf16.msra.mxu0 %v912
  %923 = vmatprep.subr.bf16.mxu0 0
  %924 = vmatpush1.bf16.msra.mxu0 %v911
  %925 = vmatprep.subr.bf16.mxu0 0
  %926 = vmatpush1.bf16.msra.mxu0 %v910
  %927 = vmatprep.subr.bf16.mxu0 0
  %928 = vmatpush1.bf16.msra.mxu0 %v909
  %929 = vmatprep.subr.bf16.mxu0 0
  %930 = vmatpush1.bf16.msra.mxu0 %v908
  %931 = vmatprep.subr.bf16.mxu0 0
  %932 = vmatpush1.bf16.msra.mxu0 %v907
  %933 = vmatprep.subr.bf16.mxu0 0
  %934 = vmatpush1.bf16.msra.mxu0 %v906
  %935 = vmatprep.subr.bf16.mxu0 0
  %936 = vmatpush1.bf16.msra.mxu0 %v905
  %937 = vmatprep.subr.bf16.mxu0 0
  %938 = vmatpush2.bf16.msra.mxu0 0
  %939 = vmatprep.subr.bf16.mxu0 0
  %940 = vmatpush2.bf16.msra.mxu0 0
  %941 = vmatprep.subr.bf16.mxu0 0
  %942 = vmatpush2.bf16.msra.mxu0 0
  %943 = vmatprep.subr.bf16.mxu0 0
  %944 = vmatpush2.bf16.msra.mxu0 0
  %945 = vmatprep.subr.bf16.mxu0 0
  %946 = vmatpush2.bf16.msra.mxu0 0
  %947 = vmatprep.subr.bf16.mxu0 0
  %948 = vmatpush2.bf16.msra.mxu0 0
  %949 = vmatprep.subr.bf16.mxu0 0
  %950 = vmatpush2.bf16.msra.mxu0 0
  %951 = vmatprep.subr.bf16.mxu0 0
  %952 = vmatpush2.bf16.msra.mxu0 0
  %953 = vmatprep.mubr.bf16.mxu0 0
  %954 = vmatmul.mubr.bf16.gmra.mxu0 %v866
  %v955 = vpop.f32.mrf.mxu0
  %v956 = vadd.f32 %v871, %v955
  %v957 = vpop.f32.mrf.mxu0
  %v958 = vpop.f32.mrf.mxu0
  %v959 = vadd.f32 %v871, %v958
  %v960 = vpop.f32.mrf.mxu0
  %961 = vdwg.mxu0
  %v962 = vadd.f32 %v956, %v109
  %v963 = vadd.f32 %v959, %v110
  %v964 = vld [vmem:[%s8] sm:$0x1]
  %v965 = vld [vmem:[%s9] sm:$0x1]
  %966 = vadd.xlane.f32.xlu0 %v962
  %v967 = vpop.xlane.xlu0 %966
  %968 = vadd.xlane.f32.xlu0 %v963
  %v969 = vpop.xlane.xlu0 %968
  %v970 = vmul.f32 %v967, %v76
  %v971 = vmul.f32 %v969, %v76
  %v972 = vsub.f32 %v962, %v970
  %v973 = vsub.f32 %v963, %v971
  %v974 = vmul.f32 %v972, %v972
  %v975 = vmul.f32 %v973, %v973
  %976 = vadd.xlane.f32.xlu0 %v974
  %v977 = vpop.xlane.xlu0 %976
  %978 = vadd.xlane.f32.xlu0 %v975
  %v979 = vpop.xlane.xlu0 %978
  %v980 = vmul.f32 %v977, %v76
  %v981 = vmul.f32 %v979, %v76
  %v982 = vadd.f32 %v980, 1e-12
  %v983 = vadd.f32 %v981, 1e-12
  %v984 = vrsqrt.pop %v982
  %v985 = vrsqrt.pop %v983
  %v986 = vmul.f32 %v972, %v984
  %v987 = vmul.f32 %v973, %v985
  %v989 = vlaneseq
  %v990 = vshrl.u32 %v989, 7
  %v991 = vsub.s32 0, %v990
  %v992 = vrot.slane %v964, %v991
  %v994 = vmul.f32 %v986, %v992
  %v995 = vmul.f32 %v987, %v992
  %v997 = vlaneseq
  %v998 = vshrl.u32 %v997, 7
  %v999 = vsub.s32 0, %v998
  %v1000 = vrot.slane %v965, %v999
  %v1002 = vadd.f32 %v994, %v1000
  %v1003 = vadd.f32 %v995, %v1000
  %v1004 = vld [vmem:[%s10] sm:$0xff]
  %v1005 = vld [vmem:[%s10 + $0x8] sm:$0xff]
  %v1006 = vld [vmem:[%s10 + $0x10] sm:$0xff]
  %v1007 = vld [vmem:[%s10 + $0x18] sm:$0xff]
  %v1008 = vld [vmem:[%s10 + $0x20] sm:$0xff]
  %v1009 = vld [vmem:[%s10 + $0x28] sm:$0xff]
  %v1010 = vld [vmem:[%s10 + $0x30] sm:$0xff]
  %v1011 = vld [vmem:[%s10 + $0x38] sm:$0xff]
  %v1012 = vld [vmem:[%s10 + $0x40] sm:$0xff]
  %v1013 = vld [vmem:[%s10 + $0x48] sm:$0xff]
  %v1014 = vld [vmem:[%s10 + $0x50] sm:$0xff]
  %v1015 = vld [vmem:[%s10 + $0x58] sm:$0xff]
  %v1016 = vld [vmem:[%s10 + $0x60] sm:$0xff]
  %v1017 = vld [vmem:[%s10 + $0x68] sm:$0xff]
  %v1018 = vld [vmem:[%s10 + $0x70] sm:$0xff]
  %v1019 = vld [vmem:[%s10 + $0x78] sm:$0xff]
  %v1020 = vld [vmem:[%s10 + $0x80] sm:$0xff]
  %v1021 = vld [vmem:[%s10 + $0x88] sm:$0xff]
  %v1022 = vld [vmem:[%s10 + $0x90] sm:$0xff]
  %v1023 = vld [vmem:[%s10 + $0x98] sm:$0xff]
  %v1024 = vld [vmem:[%s10 + $0xa0] sm:$0xff]
  %v1025 = vld [vmem:[%s10 + $0xa8] sm:$0xff]
  %v1026 = vld [vmem:[%s10 + $0xb0] sm:$0xff]
  %v1027 = vld [vmem:[%s10 + $0xb8] sm:$0xff]
  %v1028 = vld [vmem:[%s10 + $0xc0] sm:$0xff]
  %v1029 = vld [vmem:[%s10 + $0xc8] sm:$0xff]
  %v1030 = vld [vmem:[%s10 + $0xd0] sm:$0xff]
  %v1031 = vld [vmem:[%s10 + $0xd8] sm:$0xff]
  %v1032 = vld [vmem:[%s10 + $0xe0] sm:$0xff]
  %v1033 = vld [vmem:[%s10 + $0xe8] sm:$0xff]
  %v1034 = vld [vmem:[%s10 + $0xf0] sm:$0xff]
  %v1035 = vld [vmem:[%s10 + $0xf8] sm:$0xff]
  %v1036 = vld [vmem:[%s11] sm:$0xf]
  %v1037 = vpack.c.bf16 %v1003, %v1002
  %v1039 = vlaneseq
  %v1040 = vshrl.u32 %v1039, 7
  %v1041 = vsub.s32 0, %v1040
  %v1042 = vrot.slane %v1036, %v1041
  %v1043 = vlaneseq
  %v1044 = vshrl.u32 %v1043, 7
  %v1045 = vsub.s32 1, %v1044
  %v1046 = vrot.slane %v1036, %v1045
  %v1047 = vlaneseq
  %v1048 = vshrl.u32 %v1047, 7
  %v1049 = vsub.s32 2, %v1048
  %v1050 = vrot.slane %v1036, %v1049
  %v1051 = vlaneseq
  %v1052 = vshrl.u32 %v1051, 7
  %v1053 = vsub.s32 3, %v1052
  %v1054 = vrot.slane %v1036, %v1053
  %v1091 = vunpack.c.l.b16 %v1004
  %v1092 = vunpack.c.h.b16 %v1004
  %v1093 = vunpack.c.l.b16 %v1005
  %v1094 = vunpack.c.h.b16 %v1005
  %v1095 = vunpack.c.l.b16 %v1006
  %v1096 = vunpack.c.h.b16 %v1006
  %v1097 = vunpack.c.l.b16 %v1007
  %v1098 = vunpack.c.h.b16 %v1007
  %v1099 = vunpack.c.l.b16 %v1008
  %v1100 = vunpack.c.h.b16 %v1008
  %v1101 = vunpack.c.l.b16 %v1009
  %v1102 = vunpack.c.h.b16 %v1009
  %v1103 = vunpack.c.l.b16 %v1010
  %v1104 = vunpack.c.h.b16 %v1010
  %v1105 = vunpack.c.l.b16 %v1011
  %v1106 = vunpack.c.h.b16 %v1011
  %v1107 = vunpack.c.l.b16 %v1012
  %v1108 = vunpack.c.h.b16 %v1012
  %v1109 = vunpack.c.l.b16 %v1013
  %v1110 = vunpack.c.h.b16 %v1013
  %v1111 = vunpack.c.l.b16 %v1014
  %v1112 = vunpack.c.h.b16 %v1014
  %v1113 = vunpack.c.l.b16 %v1015
  %v1114 = vunpack.c.h.b16 %v1015
  %v1115 = vunpack.c.l.b16 %v1016
  %v1116 = vunpack.c.h.b16 %v1016
  %v1117 = vunpack.c.l.b16 %v1017
  %v1118 = vunpack.c.h.b16 %v1017
  %v1119 = vunpack.c.l.b16 %v1018
  %v1120 = vunpack.c.h.b16 %v1018
  %v1121 = vunpack.c.l.b16 %v1019
  %v1122 = vunpack.c.h.b16 %v1019
  %v1123 = vunpack.c.l.b16 %v1020
  %v1124 = vunpack.c.h.b16 %v1020
  %v1125 = vunpack.c.l.b16 %v1021
  %v1126 = vunpack.c.h.b16 %v1021
  %v1127 = vunpack.c.l.b16 %v1022
  %v1128 = vunpack.c.h.b16 %v1022
  %v1129 = vunpack.c.l.b16 %v1023
  %v1130 = vunpack.c.h.b16 %v1023
  %v1131 = vunpack.c.l.b16 %v1024
  %v1132 = vunpack.c.h.b16 %v1024
  %v1133 = vunpack.c.l.b16 %v1025
  %v1134 = vunpack.c.h.b16 %v1025
  %v1135 = vunpack.c.l.b16 %v1026
  %v1136 = vunpack.c.h.b16 %v1026
  %v1137 = vunpack.c.l.b16 %v1027
  %v1138 = vunpack.c.h.b16 %v1027
  %v1139 = vunpack.c.l.b16 %v1028
  %v1140 = vunpack.c.h.b16 %v1028
  %v1141 = vunpack.c.l.b16 %v1029
  %v1142 = vunpack.c.h.b16 %v1029
  %v1143 = vunpack.c.l.b16 %v1030
  %v1144 = vunpack.c.h.b16 %v1030
  %v1145 = vunpack.c.l.b16 %v1031
  %v1146 = vunpack.c.h.b16 %v1031
  %v1147 = vunpack.c.l.b16 %v1032
  %v1148 = vunpack.c.h.b16 %v1032
  %v1149 = vunpack.c.l.b16 %v1033
  %v1150 = vunpack.c.h.b16 %v1033
  %v1151 = vunpack.c.l.b16 %v1034
  %v1152 = vunpack.c.h.b16 %v1034
  %v1153 = vunpack.c.l.b16 %v1035
  %v1154 = vunpack.c.h.b16 %v1035
  %v1155 = vpack.c.b16 %v1095, %v1091
  %v1156 = vpack.c.b16 %v1096, %v1092
  %v1157 = vpack.c.b16 %v1097, %v1093
  %v1158 = vpack.c.b16 %v1098, %v1094
  %v1159 = vpack.c.b16 %v1103, %v1099
  %v1160 = vpack.c.b16 %v1104, %v1100
  %v1161 = vpack.c.b16 %v1105, %v1101
  %v1162 = vpack.c.b16 %v1106, %v1102
  %v1163 = vpack.c.b16 %v1111, %v1107
  %v1164 = vpack.c.b16 %v1112, %v1108
  %v1165 = vpack.c.b16 %v1113, %v1109
  %v1166 = vpack.c.b16 %v1114, %v1110
  %v1167 = vpack.c.b16 %v1119, %v1115
  %v1168 = vpack.c.b16 %v1120, %v1116
  %v1169 = vpack.c.b16 %v1121, %v1117
  %v1170 = vpack.c.b16 %v1122, %v1118
  %v1171 = vpack.c.b16 %v1127, %v1123
  %v1172 = vpack.c.b16 %v1128, %v1124
  %v1173 = vpack.c.b16 %v1129, %v1125
  %v1174 = vpack.c.b16 %v1130, %v1126
  %v1175 = vpack.c.b16 %v1135, %v1131
  %v1176 = vpack.c.b16 %v1136, %v1132
  %v1177 = vpack.c.b16 %v1137, %v1133
  %v1178 = vpack.c.b16 %v1138, %v1134
  %v1179 = vpack.c.b16 %v1143, %v1139
  %v1180 = vpack.c.b16 %v1144, %v1140
  %v1181 = vpack.c.b16 %v1145, %v1141
  %v1182 = vpack.c.b16 %v1146, %v1142
  %v1183 = vpack.c.b16 %v1151, %v1147
  %v1184 = vpack.c.b16 %v1152, %v1148
  %v1185 = vpack.c.b16 %v1153, %v1149
  %v1186 = vpack.c.b16 %v1154, %v1150
  %1219 = vmatprep.subr.bf16.mxu0 %v1184
  %1220 = vmatpush1.bf16.msra.mxu0 %v1183
  %1221 = vmatprep.subr.bf16.mxu0 %v1180
  %1222 = vmatpush1.bf16.msra.mxu0 %v1179
  %1223 = vmatprep.subr.bf16.mxu0 %v1176
  %1224 = vmatpush1.bf16.msra.mxu0 %v1175
  %1225 = vmatprep.subr.bf16.mxu0 %v1172
  %1226 = vmatpush1.bf16.msra.mxu0 %v1171
  %1227 = vmatprep.subr.bf16.mxu0 %v1168
  %1228 = vmatpush1.bf16.msra.mxu0 %v1167
  %1229 = vmatprep.subr.bf16.mxu0 %v1164
  %1230 = vmatpush1.bf16.msra.mxu0 %v1163
  %1231 = vmatprep.subr.bf16.mxu0 %v1160
  %1232 = vmatpush1.bf16.msra.mxu0 %v1159
  %1233 = vmatprep.subr.bf16.mxu0 %v1156
  %1234 = vmatpush1.bf16.msra.mxu0 %v1155
  %1235 = vmatprep.subr.bf16.mxu0 0
  %1236 = vmatpush2.bf16.msra.mxu0 0
  %1237 = vmatprep.subr.bf16.mxu0 0
  %1238 = vmatpush2.bf16.msra.mxu0 0
  %1239 = vmatprep.subr.bf16.mxu0 0
  %1240 = vmatpush2.bf16.msra.mxu0 0
  %1241 = vmatprep.subr.bf16.mxu0 0
  %1242 = vmatpush2.bf16.msra.mxu0 0
  %1243 = vmatprep.subr.bf16.mxu0 0
  %1244 = vmatpush2.bf16.msra.mxu0 0
  %1245 = vmatprep.subr.bf16.mxu0 0
  %1246 = vmatpush2.bf16.msra.mxu0 0
  %1247 = vmatprep.subr.bf16.mxu0 0
  %1248 = vmatpush2.bf16.msra.mxu0 0
  %1249 = vmatprep.subr.bf16.mxu0 0
  %1250 = vmatpush2.bf16.msra.mxu0 0
  %1251 = vmatprep.mubr.bf16.mxu0 0
  %1252 = vmatmul.mubr.bf16.gmra.mxu0 %v1037
  %v1253 = vpop.f32.mrf.mxu0
  %v1254 = vadd.f32 %v1042, %v1253
  %v1255 = vpop.f32.mrf.mxu0
  %v1256 = vadd.f32 %v1046, %v1255
  %v1257 = vpop.f32.mrf.mxu0
  %v1258 = vadd.f32 %v1042, %v1257
  %v1259 = vpop.f32.mrf.mxu0
  %v1260 = vadd.f32 %v1046, %v1259
  %1261 = vdwg.mxu0
  %1262 = vmatprep.subr.bf16.mxu0 %v1186
  %1263 = vmatpush1.bf16.msra.mxu0 %v1185
  %1264 = vmatprep.subr.bf16.mxu0 %v1182
  %1265 = vmatpush1.bf16.msra.mxu0 %v1181
  %1266 = vmatprep.subr.bf16.mxu0 %v1178
  %1267 = vmatpush1.bf16.msra.mxu0 %v1177
  %1268 = vmatprep.subr.bf16.mxu0 %v1174
  %1269 = vmatpush1.bf16.msra.mxu0 %v1173
  %1270 = vmatprep.subr.bf16.mxu0 %v1170
  %1271 = vmatpush1.bf16.msra.mxu0 %v1169
  %1272 = vmatprep.subr.bf16.mxu0 %v1166
  %1273 = vmatpush1.bf16.msra.mxu0 %v1165
  %1274 = vmatprep.subr.bf16.mxu0 %v1162
  %1275 = vmatpush1.bf16.msra.mxu0 %v1161
  %1276 = vmatprep.subr.bf16.mxu0 %v1158
  %1277 = vmatpush1.bf16.msra.mxu0 %v1157
  %1278 = vmatprep.subr.bf16.mxu0 0
  %1279 = vmatpush2.bf16.msra.mxu0 0
  %1280 = vmatprep.subr.bf16.mxu0 0
  %1281 = vmatpush2.bf16.msra.mxu0 0
  %1282 = vmatprep.subr.bf16.mxu0 0
  %1283 = vmatpush2.bf16.msra.mxu0 0
  %1284 = vmatprep.subr.bf16.mxu0 0
  %1285 = vmatpush2.bf16.msra.mxu0 0
  %1286 = vmatprep.subr.bf16.mxu0 0
  %1287 = vmatpush2.bf16.msra.mxu0 0
  %1288 = vmatprep.subr.bf16.mxu0 0
  %1289 = vmatpush2.bf16.msra.mxu0 0
  %1290 = vmatprep.subr.bf16.mxu0 0
  %1291 = vmatpush2.bf16.msra.mxu0 0
  %1292 = vmatprep.subr.bf16.mxu0 0
  %1293 = vmatpush2.bf16.msra.mxu0 0
  %1294 = vmatprep.mubr.bf16.mxu0 0
  %1295 = vmatmul.mubr.bf16.gmra.mxu0 %v1037
  %v1296 = vpop.f32.mrf.mxu0
  %v1297 = vadd.f32 %v1050, %v1296
  %v1298 = vpop.f32.mrf.mxu0
  %v1299 = vadd.f32 %v1054, %v1298
  %v1300 = vpop.f32.mrf.mxu0
  %v1301 = vadd.f32 %v1050, %v1300
  %v1302 = vpop.f32.mrf.mxu0
  %v1303 = vadd.f32 %v1054, %v1302
  %1304 = vdwg.mxu0
  %v1305 = vmul.f32 %v1254, 0.5
  %v1306 = vmul.f32 %v1256, 0.5
  %v1307 = vmul.f32 %v1297, 0.5
  %v1308 = vmul.f32 %v1299, 0.5
  %v1309 = vmul.f32 %v1258, 0.5
  %v1310 = vmul.f32 %v1260, 0.5
  %v1311 = vmul.f32 %v1301, 0.5
  %v1312 = vmul.f32 %v1303, 0.5
  %v1313 = vmul.f32 %v1254, 0.044715
  %v1314 = vmul.f32 %v1256, 0.044715
  %v1315 = vmul.f32 %v1297, 0.044715
  %v1316 = vmul.f32 %v1299, 0.044715
  %v1317 = vmul.f32 %v1258, 0.044715
  %v1318 = vmul.f32 %v1260, 0.044715
  %v1319 = vmul.f32 %v1301, 0.044715
  %v1320 = vmul.f32 %v1303, 0.044715
  %v1321 = vmul.f32 %v1313, %v1254
  %v1322 = vmul.f32 %v1314, %v1256
  %v1323 = vmul.f32 %v1315, %v1297
  %v1324 = vmul.f32 %v1316, %v1299
  %v1325 = vmul.f32 %v1317, %v1258
  %v1326 = vmul.f32 %v1318, %v1260
  %v1327 = vmul.f32 %v1319, %v1301
  %v1328 = vmul.f32 %v1320, %v1303
  %v1329 = vmul.f32 %v1321, %v1254
  %v1330 = vmul.f32 %v1322, %v1256
  %v1331 = vmul.f32 %v1323, %v1297
  %v1332 = vmul.f32 %v1324, %v1299
  %v1333 = vmul.f32 %v1325, %v1258
  %v1334 = vmul.f32 %v1326, %v1260
  %v1335 = vmul.f32 %v1327, %v1301
  %v1336 = vmul.f32 %v1328, %v1303
  %v1337 = vadd.f32 %v1254, %v1329
  %v1338 = vadd.f32 %v1256, %v1330
  %v1339 = vadd.f32 %v1297, %v1331
  %v1340 = vadd.f32 %v1299, %v1332
  %v1341 = vadd.f32 %v1258, %v1333
  %v1342 = vadd.f32 %v1260, %v1334
  %v1343 = vadd.f32 %v1301, %v1335
  %v1344 = vadd.f32 %v1303, %v1336
  %v1345 = vmul.f32 %v1337, 0.7978846
  %v1346 = vmul.f32 %v1338, 0.7978846
  %v1347 = vmul.f32 %v1339, 0.7978846
  %v1348 = vmul.f32 %v1340, 0.7978846
  %v1349 = vmul.f32 %v1341, 0.7978846
  %v1350 = vmul.f32 %v1342, 0.7978846
  %v1351 = vmul.f32 %v1343, 0.7978846
  %v1352 = vmul.f32 %v1344, 0.7978846
  %v1353 = vtanh.pop %v1345
  %v1354 = vtanh.pop %v1346
  %v1355 = vtanh.pop %v1347
  %v1356 = vtanh.pop %v1348
  %v1357 = vtanh.pop %v1349
  %v1358 = vtanh.pop %v1350
  %v1359 = vtanh.pop %v1351
  %v1360 = vtanh.pop %v1352
  %v1361 = vadd.f32 %v1353, 1.0
  %v1362 = vadd.f32 %v1354, 1.0
  %v1363 = vadd.f32 %v1355, 1.0
  %v1364 = vadd.f32 %v1356, 1.0
  %v1365 = vadd.f32 %v1357, 1.0
  %v1366 = vadd.f32 %v1358, 1.0
  %v1367 = vadd.f32 %v1359, 1.0
  %v1368 = vadd.f32 %v1360, 1.0
  %v1369 = vmul.f32 %v1305, %v1361
  %v1370 = vmul.f32 %v1306, %v1362
  %v1371 = vmul.f32 %v1307, %v1363
  %v1372 = vmul.f32 %v1308, %v1364
  %v1373 = vmul.f32 %v1309, %v1365
  %v1374 = vmul.f32 %v1310, %v1366
  %v1375 = vmul.f32 %v1311, %v1367
  %v1376 = vmul.f32 %v1312, %v1368
  %v1377 = vld [vmem:[%s12] sm:$0xf]
  %v1378 = vld [vmem:[%s12 + $0x4] sm:$0xf]
  %v1379 = vld [vmem:[%s12 + $0x8] sm:$0xf]
  %v1380 = vld [vmem:[%s12 + $0xc] sm:$0xf]
  %v1381 = vld [vmem:[%s12 + $0x10] sm:$0xf]
  %v1382 = vld [vmem:[%s12 + $0x14] sm:$0xf]
  %v1383 = vld [vmem:[%s12 + $0x18] sm:$0xf]
  %v1384 = vld [vmem:[%s12 + $0x1c] sm:$0xf]
  %v1385 = vld [vmem:[%s12 + $0x20] sm:$0xf]
  %v1386 = vld [vmem:[%s12 + $0x24] sm:$0xf]
  %v1387 = vld [vmem:[%s12 + $0x28] sm:$0xf]
  %v1388 = vld [vmem:[%s12 + $0x2c] sm:$0xf]
  %v1389 = vld [vmem:[%s12 + $0x30] sm:$0xf]
  %v1390 = vld [vmem:[%s12 + $0x34] sm:$0xf]
  %v1391 = vld [vmem:[%s12 + $0x38] sm:$0xf]
  %v1392 = vld [vmem:[%s12 + $0x3c] sm:$0xf]
  %v1393 = vld [vmem:[%s12 + $0x40] sm:$0xf]
  %v1394 = vld [vmem:[%s12 + $0x44] sm:$0xf]
  %v1395 = vld [vmem:[%s12 + $0x48] sm:$0xf]
  %v1396 = vld [vmem:[%s12 + $0x4c] sm:$0xf]
  %v1397 = vld [vmem:[%s12 + $0x50] sm:$0xf]
  %v1398 = vld [vmem:[%s12 + $0x54] sm:$0xf]
  %v1399 = vld [vmem:[%s12 + $0x58] sm:$0xf]
  %v1400 = vld [vmem:[%s12 + $0x5c] sm:$0xf]
  %v1401 = vld [vmem:[%s12 + $0x60] sm:$0xf]
  %v1402 = vld [vmem:[%s12 + $0x64] sm:$0xf]
  %v1403 = vld [vmem:[%s12 + $0x68] sm:$0xf]
  %v1404 = vld [vmem:[%s12 + $0x6c] sm:$0xf]
  %v1405 = vld [vmem:[%s12 + $0x70] sm:$0xf]
  %v1406 = vld [vmem:[%s12 + $0x74] sm:$0xf]
  %v1407 = vld [vmem:[%s12 + $0x78] sm:$0xf]
  %v1408 = vld [vmem:[%s12 + $0x7c] sm:$0xf]
  %v1409 = vld [vmem:[%s12 + $0x80] sm:$0xf]
  %v1410 = vld [vmem:[%s12 + $0x84] sm:$0xf]
  %v1411 = vld [vmem:[%s12 + $0x88] sm:$0xf]
  %v1412 = vld [vmem:[%s12 + $0x8c] sm:$0xf]
  %v1413 = vld [vmem:[%s12 + $0x90] sm:$0xf]
  %v1414 = vld [vmem:[%s12 + $0x94] sm:$0xf]
  %v1415 = vld [vmem:[%s12 + $0x98] sm:$0xf]
  %v1416 = vld [vmem:[%s12 + $0x9c] sm:$0xf]
  %v1417 = vld [vmem:[%s12 + $0xa0] sm:$0xf]
  %v1418 = vld [vmem:[%s12 + $0xa4] sm:$0xf]
  %v1419 = vld [vmem:[%s12 + $0xa8] sm:$0xf]
  %v1420 = vld [vmem:[%s12 + $0xac] sm:$0xf]
  %v1421 = vld [vmem:[%s12 + $0xb0] sm:$0xf]
  %v1422 = vld [vmem:[%s12 + $0xb4] sm:$0xf]
  %v1423 = vld [vmem:[%s12 + $0xb8] sm:$0xf]
  %v1424 = vld [vmem:[%s12 + $0xbc] sm:$0xf]
  %v1425 = vld [vmem:[%s12 + $0xc0] sm:$0xf]
  %v1426 = vld [vmem:[%s12 + $0xc4] sm:$0xf]
  %v1427 = vld [vmem:[%s12 + $0xc8] sm:$0xf]
  %v1428 = vld [vmem:[%s12 + $0xcc] sm:$0xf]
  %v1429 = vld [vmem:[%s12 + $0xd0] sm:$0xf]
  %v1430 = vld [vmem:[%s12 + $0xd4] sm:$0xf]
  %v1431 = vld [vmem:[%s12 + $0xd8] sm:$0xf]
  %v1432 = vld [vmem:[%s12 + $0xdc] sm:$0xf]
  %v1433 = vld [vmem:[%s12 + $0xe0] sm:$0xf]
  %v1434 = vld [vmem:[%s12 + $0xe4] sm:$0xf]
  %v1435 = vld [vmem:[%s12 + $0xe8] sm:$0xf]
  %v1436 = vld [vmem:[%s12 + $0xec] sm:$0xf]
  %v1437 = vld [vmem:[%s12 + $0xf0] sm:$0xf]
  %v1438 = vld [vmem:[%s12 + $0xf4] sm:$0xf]
  %v1439 = vld [vmem:[%s12 + $0xf8] sm:$0xf]
  %v1440 = vld [vmem:[%s12 + $0xfc] sm:$0xf]
  %v1441 = vld [vmem:[%s13] sm:$0x1]
  %v1442 = vpack.c.bf16 %v1373, %v1369
  %v1443 = vpack.c.bf16 %v1374, %v1370
  %v1444 = vpack.c.bf16 %v1375, %v1371
  %v1445 = vpack.c.bf16 %v1376, %v1372
  %v1447 = vlaneseq
  %v1448 = vshrl.u32 %v1447, 7
  %v1449 = vsub.s32 0, %v1448
  %v1450 = vrot.slane %v1441, %v1449
  %v1516 = vunpack.c.l.b16 %v1377
  %v1517 = vunpack.c.l.b16 %v1378
  %v1518 = vunpack.c.l.b16 %v1379
  %v1519 = vunpack.c.l.b16 %v1380
  %v1520 = vunpack.c.l.b16 %v1381
  %v1521 = vunpack.c.l.b16 %v1382
  %v1522 = vunpack.c.l.b16 %v1383
  %v1523 = vunpack.c.l.b16 %v1384
  %v1524 = vunpack.c.l.b16 %v1385
  %v1525 = vunpack.c.l.b16 %v1386
  %v1526 = vunpack.c.l.b16 %v1387
  %v1527 = vunpack.c.l.b16 %v1388
  %v1528 = vunpack.c.l.b16 %v1389
  %v1529 = vunpack.c.l.b16 %v1390
  %v1530 = vunpack.c.l.b16 %v1391
  %v1531 = vunpack.c.l.b16 %v1392
  %v1532 = vunpack.c.l.b16 %v1393
  %v1533 = vunpack.c.l.b16 %v1394
  %v1534 = vunpack.c.l.b16 %v1395
  %v1535 = vunpack.c.l.b16 %v1396
  %v1536 = vunpack.c.l.b16 %v1397
  %v1537 = vunpack.c.l.b16 %v1398
  %v1538 = vunpack.c.l.b16 %v1399
  %v1539 = vunpack.c.l.b16 %v1400
  %v1540 = vunpack.c.l.b16 %v1401
  %v1541 = vunpack.c.l.b16 %v1402
  %v1542 = vunpack.c.l.b16 %v1403
  %v1543 = vunpack.c.l.b16 %v1404
  %v1544 = vunpack.c.l.b16 %v1405
  %v1545 = vunpack.c.l.b16 %v1406
  %v1546 = vunpack.c.l.b16 %v1407
  %v1547 = vunpack.c.l.b16 %v1408
  %v1548 = vunpack.c.l.b16 %v1409
  %v1549 = vunpack.c.l.b16 %v1410
  %v1550 = vunpack.c.l.b16 %v1411
  %v1551 = vunpack.c.l.b16 %v1412
  %v1552 = vunpack.c.l.b16 %v1413
  %v1553 = vunpack.c.l.b16 %v1414
  %v1554 = vunpack.c.l.b16 %v1415
  %v1555 = vunpack.c.l.b16 %v1416
  %v1556 = vunpack.c.l.b16 %v1417
  %v1557 = vunpack.c.l.b16 %v1418
  %v1558 = vunpack.c.l.b16 %v1419
  %v1559 = vunpack.c.l.b16 %v1420
  %v1560 = vunpack.c.l.b16 %v1421
  %v1561 = vunpack.c.l.b16 %v1422
  %v1562 = vunpack.c.l.b16 %v1423
  %v1563 = vunpack.c.l.b16 %v1424
  %v1564 = vunpack.c.l.b16 %v1425
  %v1565 = vunpack.c.l.b16 %v1426
  %v1566 = vunpack.c.l.b16 %v1427
  %v1567 = vunpack.c.l.b16 %v1428
  %v1568 = vunpack.c.l.b16 %v1429
  %v1569 = vunpack.c.l.b16 %v1430
  %v1570 = vunpack.c.l.b16 %v1431
  %v1571 = vunpack.c.l.b16 %v1432
  %v1572 = vunpack.c.l.b16 %v1433
  %v1573 = vunpack.c.l.b16 %v1434
  %v1574 = vunpack.c.l.b16 %v1435
  %v1575 = vunpack.c.l.b16 %v1436
  %v1576 = vunpack.c.l.b16 %v1437
  %v1577 = vunpack.c.l.b16 %v1438
  %v1578 = vunpack.c.l.b16 %v1439
  %v1579 = vunpack.c.l.b16 %v1440
  %v1580 = vpack.c.b16 %v1517, %v1516
  %v1581 = vpack.c.b16 %v1519, %v1518
  %v1582 = vpack.c.b16 %v1521, %v1520
  %v1583 = vpack.c.b16 %v1523, %v1522
  %v1584 = vpack.c.b16 %v1525, %v1524
  %v1585 = vpack.c.b16 %v1527, %v1526
  %v1586 = vpack.c.b16 %v1529, %v1528
  %v1587 = vpack.c.b16 %v1531, %v1530
  %v1588 = vpack.c.b16 %v1533, %v1532
  %v1589 = vpack.c.b16 %v1535, %v1534
  %v1590 = vpack.c.b16 %v1537, %v1536
  %v1591 = vpack.c.b16 %v1539, %v1538
  %v1592 = vpack.c.b16 %v1541, %v1540
  %v1593 = vpack.c.b16 %v1543, %v1542
  %v1594 = vpack.c.b16 %v1545, %v1544
  %v1595 = vpack.c.b16 %v1547, %v1546
  %v1596 = vpack.c.b16 %v1549, %v1548
  %v1597 = vpack.c.b16 %v1551, %v1550
  %v1598 = vpack.c.b16 %v1553, %v1552
  %v1599 = vpack.c.b16 %v1555, %v1554
  %v1600 = vpack.c.b16 %v1557, %v1556
  %v1601 = vpack.c.b16 %v1559, %v1558
  %v1602 = vpack.c.b16 %v1561, %v1560
  %v1603 = vpack.c.b16 %v1563, %v1562
  %v1604 = vpack.c.b16 %v1565, %v1564
  %v1605 = vpack.c.b16 %v1567, %v1566
  %v1606 = vpack.c.b16 %v1569, %v1568
  %v1607 = vpack.c.b16 %v1571, %v1570
  %v1608 = vpack.c.b16 %v1573, %v1572
  %v1609 = vpack.c.b16 %v1575, %v1574
  %v1610 = vpack.c.b16 %v1577, %v1576
  %v1611 = vpack.c.b16 %v1579, %v1578
  %1644 = vmatprep.subr.bf16.mxu0 0
  %1645 = vmatpush1.bf16.msra.mxu0 %v1587
  %1646 = vmatprep.subr.bf16.mxu0 0
  %1647 = vmatpush1.bf16.msra.mxu0 %v1586
  %1648 = vmatprep.subr.bf16.mxu0 0
  %1649 = vmatpush1.bf16.msra.mxu0 %v1585
  %1650 = vmatprep.subr.bf16.mxu0 0
  %1651 = vmatpush1.bf16.msra.mxu0 %v1584
  %1652 = vmatprep.subr.bf16.mxu0 0
  %1653 = vmatpush1.bf16.msra.mxu0 %v1583
  %1654 = vmatprep.subr.bf16.mxu0 0
  %1655 = vmatpush1.bf16.msra.mxu0 %v1582
  %1656 = vmatprep.subr.bf16.mxu0 0
  %1657 = vmatpush1.bf16.msra.mxu0 %v1581
  %1658 = vmatprep.subr.bf16.mxu0 0
  %1659 = vmatpush1.bf16.msra.mxu0 %v1580
  %1660 = vmatprep.subr.bf16.mxu0 0
  %1661 = vmatpush2.bf16.msra.mxu0 %v1595
  %1662 = vmatprep.subr.bf16.mxu0 0
  %1663 = vmatpush2.bf16.msra.mxu0 %v1594
  %1664 = vmatprep.subr.bf16.mxu0 0
  %1665 = vmatpush2.bf16.msra.mxu0 %v1593
  %1666 = vmatprep.subr.bf16.mxu0 0
  %1667 = vmatpush2.bf16.msra.mxu0 %v1592
  %1668 = vmatprep.subr.bf16.mxu0 0
  %1669 = vmatpush2.bf16.msra.mxu0 %v1591
  %1670 = vmatprep.subr.bf16.mxu0 0
  %1671 = vmatpush2.bf16.msra.mxu0 %v1590
  %1672 = vmatprep.subr.bf16.mxu0 0
  %1673 = vmatpush2.bf16.msra.mxu0 %v1589
  %1674 = vmatprep.subr.bf16.mxu0 0
  %1675 = vmatpush2.bf16.msra.mxu0 %v1588
  %1676 = vmatprep.mubr.bf16.mxu0 %v1443
  %1677 = vmatmul.mubr.bf16.gmra.mxu0 %v1442
  %v1678 = vpop.f32.mrf.mxu0
  %v1679 = vadd.f32 %v1450, %v1678
  %v1680 = vpop.f32.mrf.mxu0
  %v1681 = vpop.f32.mrf.mxu0
  %v1682 = vadd.f32 %v1450, %v1681
  %v1683 = vpop.f32.mrf.mxu0
  %1684 = vdwg.mxu0
  %1685 = vmatprep.subr.bf16.mxu0 0
  %1686 = vmatpush1.bf16.msra.mxu0 %v1603
  %1687 = vmatprep.subr.bf16.mxu0 0
  %1688 = vmatpush1.bf16.msra.mxu0 %v1602
  %1689 = vmatprep.subr.bf16.mxu0 0
  %1690 = vmatpush1.bf16.msra.mxu0 %v1601
  %1691 = vmatprep.subr.bf16.mxu0 0
  %1692 = vmatpush1.bf16.msra.mxu0 %v1600
  %1693 = vmatprep.subr.bf16.mxu0 0
  %1694 = vmatpush1.bf16.msra.mxu0 %v1599
  %1695 = vmatprep.subr.bf16.mxu0 0
  %1696 = vmatpush1.bf16.msra.mxu0 %v1598
  %1697 = vmatprep.subr.bf16.mxu0 0
  %1698 = vmatpush1.bf16.msra.mxu0 %v1597
  %1699 = vmatprep.subr.bf16.mxu0 0
  %1700 = vmatpush1.bf16.msra.mxu0 %v1596
  %1701 = vmatprep.subr.bf16.mxu0 0
  %1702 = vmatpush2.bf16.msra.mxu0 %v1611
  %1703 = vmatprep.subr.bf16.mxu0 0
  %1704 = vmatpush2.bf16.msra.mxu0 %v1610
  %1705 = vmatprep.subr.bf16.mxu0 0
  %1706 = vmatpush2.bf16.msra.mxu0 %v1609
  %1707 = vmatprep.subr.bf16.mxu0 0
  %1708 = vmatpush2.bf16.msra.mxu0 %v1608
  %1709 = vmatprep.subr.bf16.mxu0 0
  %1710 = vmatpush2.bf16.msra.mxu0 %v1607
  %1711 = vmatprep.subr.bf16.mxu0 0
  %1712 = vmatpush2.bf16.msra.mxu0 %v1606
  %1713 = vmatprep.subr.bf16.mxu0 0
  %1714 = vmatpush2.bf16.msra.mxu0 %v1605
  %1715 = vmatprep.subr.bf16.mxu0 0
  %1716 = vmatpush2.bf16.msra.mxu0 %v1604
  %1717 = vmatprep.mubr.bf16.mxu0 %v1445
  %1718 = vmatmul.mubr.bf16.gmra.mxu0 %v1444
  %v1719 = vpop.f32.mrf.mxu0
  %v1720 = vadd.f32 %v1679, %v1719
  %v1721 = vpop.f32.mrf.mxu0
  %v1722 = vpop.f32.mrf.mxu0
  %v1723 = vadd.f32 %v1682, %v1722
  %v1724 = vpop.f32.mrf.mxu0
  %1725 = vdwg.mxu0
  %v1726 = vadd.f32 %v1720, %v1002
  %v1727 = vadd.f32 %v1723, %v1003
  %v1728 = vld [vmem:[%s14] sm:$0x1]
  %v1729 = vld [vmem:[%s15] sm:$0x1]
  %1730 = vadd.xlane.f32.xlu0 %v1726
  %v1731 = vpop.xlane.xlu0 %1730
  %1732 = vadd.xlane.f32.xlu0 %v1727
  %v1733 = vpop.xlane.xlu0 %1732
  %v1734 = vmul.f32 %v1731, %v76
  %v1735 = vmul.f32 %v1733, %v76
  %v1736 = vsub.f32 %v1726, %v1734
  %v1737 = vsub.f32 %v1727, %v1735
  %v1738 = vmul.f32 %v1736, %v1736
  %v1739 = vmul.f32 %v1737, %v1737
  %1740 = vadd.xlane.f32.xlu0 %v1738
  %v1741 = vpop.xlane.xlu0 %1740
  %1742 = vadd.xlane.f32.xlu0 %v1739
  %v1743 = vpop.xlane.xlu0 %1742
  %v1744 = vmul.f32 %v1741, %v76
  %v1745 = vmul.f32 %v1743, %v76
  %v1746 = vadd.f32 %v1744, 1e-12
  %v1747 = vadd.f32 %v1745, 1e-12
  %v1748 = vrsqrt.pop %v1746
  %v1749 = vrsqrt.pop %v1747
  %v1750 = vmul.f32 %v1736, %v1748
  %v1751 = vmul.f32 %v1737, %v1749
  %v1753 = vlaneseq
  %v1754 = vshrl.u32 %v1753, 7
  %v1755 = vsub.s32 0, %v1754
  %v1756 = vrot.slane %v1728, %v1755
  %v1758 = vmul.f32 %v1750, %v1756
  %v1759 = vmul.f32 %v1751, %v1756
  %v1761 = vlaneseq
  %v1762 = vshrl.u32 %v1761, 7
  %v1763 = vsub.s32 0, %v1762
  %v1764 = vrot.slane %v1729, %v1763
  %v1766 = vadd.f32 %v1758, %v1764
  %v1767 = vadd.f32 %v1759, %v1764
  %s1768 = scalar_lea.vmem %s4, 192
  %v1769 = vld [vmem:[%s1768] sm:$0xff]
  %v1770 = vld [vmem:[%s1768 + $0x8] sm:$0xf]
  %v1771 = vld [vmem:[%s1768 + $0xc] sm:$0xff]
  %v1772 = vld [vmem:[%s1768 + $0x14] sm:$0xf]
  %v1773 = vld [vmem:[%s1768 + $0x18] sm:$0xff]
  %v1774 = vld [vmem:[%s1768 + $0x20] sm:$0xf]
  %v1775 = vld [vmem:[%s1768 + $0x24] sm:$0xff]
  %v1776 = vld [vmem:[%s1768 + $0x2c] sm:$0xf]
  %v1777 = vld [vmem:[%s1768 + $0x30] sm:$0xff]
  %v1778 = vld [vmem:[%s1768 + $0x38] sm:$0xf]
  %v1779 = vld [vmem:[%s1768 + $0x3c] sm:$0xff]
  %v1780 = vld [vmem:[%s1768 + $0x44] sm:$0xf]
  %v1781 = vld [vmem:[%s1768 + $0x48] sm:$0xff]
  %v1782 = vld [vmem:[%s1768 + $0x50] sm:$0xf]
  %v1783 = vld [vmem:[%s1768 + $0x54] sm:$0xff]
  %v1784 = vld [vmem:[%s1768 + $0x5c] sm:$0xf]
  %v1785 = vld [vmem:[%s1768 + $0x60] sm:$0xff]
  %v1786 = vld [vmem:[%s1768 + $0x68] sm:$0xf]
  %v1787 = vld [vmem:[%s1768 + $0x6c] sm:$0xff]
  %v1788 = vld [vmem:[%s1768 + $0x74] sm:$0xf]
  %v1789 = vld [vmem:[%s1768 + $0x78] sm:$0xff]
  %v1790 = vld [vmem:[%s1768 + $0x80] sm:$0xf]
  %v1791 = vld [vmem:[%s1768 + $0x84] sm:$0xff]
  %v1792 = vld [vmem:[%s1768 + $0x8c] sm:$0xf]
  %v1793 = vld [vmem:[%s1768 + $0x90] sm:$0xff]
  %v1794 = vld [vmem:[%s1768 + $0x98] sm:$0xf]
  %v1795 = vld [vmem:[%s1768 + $0x9c] sm:$0xff]
  %v1796 = vld [vmem:[%s1768 + $0xa4] sm:$0xf]
  %v1797 = vld [vmem:[%s1768 + $0xa8] sm:$0xff]
  %v1798 = vld [vmem:[%s1768 + $0xb0] sm:$0xf]
  %v1799 = vld [vmem:[%s1768 + $0xb4] sm:$0xff]
  %v1800 = vld [vmem:[%s1768 + $0xbc] sm:$0xf]
  %s1801 = scalar_lea.vmem %s5, 3
  %v1802 = vld [vmem:[%s1801] sm:$0x7]
  %v1803 = vpack.c.bf16 %v1767, %v1766
  %v1805 = vlaneseq
  %v1806 = vshrl.u32 %v1805, 7
  %v1807 = vsub.s32 0, %v1806
  %v1808 = vrot.slane %v1802, %v1807
  %v1809 = vlaneseq
  %v1810 = vshrl.u32 %v1809, 7
  %v1811 = vsub.s32 1, %v1810
  %v1812 = vrot.slane %v1802, %v1811
  %v1813 = vlaneseq
  %v1814 = vshrl.u32 %v1813, 7
  %v1815 = vsub.s32 2, %v1814
  %v1816 = vrot.slane %v1802, %v1815
  %v1852 = vunpack.c.l.b16 %v1769
  %v1853 = vunpack.c.h.b16 %v1769
  %v1854 = vunpack.c.l.b16 %v1770
  %v1855 = vunpack.c.l.b16 %v1771
  %v1856 = vunpack.c.h.b16 %v1771
  %v1857 = vunpack.c.l.b16 %v1772
  %v1858 = vunpack.c.l.b16 %v1773
  %v1859 = vunpack.c.h.b16 %v1773
  %v1860 = vunpack.c.l.b16 %v1774
  %v1861 = vunpack.c.l.b16 %v1775
  %v1862 = vunpack.c.h.b16 %v1775
  %v1863 = vunpack.c.l.b16 %v1776
  %v1864 = vunpack.c.l.b16 %v1777
  %v1865 = vunpack.c.h.b16 %v1777
  %v1866 = vunpack.c.l.b16 %v1778
  %v1867 = vunpack.c.l.b16 %v1779
  %v1868 = vunpack.c.h.b16 %v1779
  %v1869 = vunpack.c.l.b16 %v1780
  %v1870 = vunpack.c.l.b16 %v1781
  %v1871 = vunpack.c.h.b16 %v1781
  %v1872 = vunpack.c.l.b16 %v1782
  %v1873 = vunpack.c.l.b16 %v1783
  %v1874 = vunpack.c.h.b16 %v1783
  %v1875 = vunpack.c.l.b16 %v1784
  %v1876 = vunpack.c.l.b16 %v1785
  %v1877 = vunpack.c.h.b16 %v1785
  %v1878 = vunpack.c.l.b16 %v1786
  %v1879 = vunpack.c.l.b16 %v1787
  %v1880 = vunpack.c.h.b16 %v1787
  %v1881 = vunpack.c.l.b16 %v1788
  %v1882 = vunpack.c.l.b16 %v1789
  %v1883 = vunpack.c.h.b16 %v1789
  %v1884 = vunpack.c.l.b16 %v1790
  %v1885 = vunpack.c.l.b16 %v1791
  %v1886 = vunpack.c.h.b16 %v1791
  %v1887 = vunpack.c.l.b16 %v1792
  %v1888 = vunpack.c.l.b16 %v1793
  %v1889 = vunpack.c.h.b16 %v1793
  %v1890 = vunpack.c.l.b16 %v1794
  %v1891 = vunpack.c.l.b16 %v1795
  %v1892 = vunpack.c.h.b16 %v1795
  %v1893 = vunpack.c.l.b16 %v1796
  %v1894 = vunpack.c.l.b16 %v1797
  %v1895 = vunpack.c.h.b16 %v1797
  %v1896 = vunpack.c.l.b16 %v1798
  %v1897 = vunpack.c.l.b16 %v1799
  %v1898 = vunpack.c.h.b16 %v1799
  %v1899 = vunpack.c.l.b16 %v1800
  %v1900 = vpack.c.b16 %v1855, %v1852
  %v1901 = vpack.c.b16 %v1856, %v1853
  %v1902 = vpack.c.b16 %v1857, %v1854
  %v1903 = vpack.c.b16 %v1861, %v1858
  %v1904 = vpack.c.b16 %v1862, %v1859
  %v1905 = vpack.c.b16 %v1863, %v1860
  %v1906 = vpack.c.b16 %v1867, %v1864
  %v1907 = vpack.c.b16 %v1868, %v1865
  %v1908 = vpack.c.b16 %v1869, %v1866
  %v1909 = vpack.c.b16 %v1873, %v1870
  %v1910 = vpack.c.b16 %v1874, %v1871
  %v1911 = vpack.c.b16 %v1875, %v1872
  %v1912 = vpack.c.b16 %v1879, %v1876
  %v1913 = vpack.c.b16 %v1880, %v1877
  %v1914 = vpack.c.b16 %v1881, %v1878
  %v1915 = vpack.c.b16 %v1885, %v1882
  %v1916 = vpack.c.b16 %v1886, %v1883
  %v1917 = vpack.c.b16 %v1887, %v1884
  %v1918 = vpack.c.b16 %v1891, %v1888
  %v1919 = vpack.c.b16 %v1892, %v1889
  %v1920 = vpack.c.b16 %v1893, %v1890
  %v1921 = vpack.c.b16 %v1897, %v1894
  %v1922 = vpack.c.b16 %v1898, %v1895
  %v1923 = vpack.c.b16 %v1899, %v1896
  %1948 = vmatprep.subr.bf16.mxu0 %v1922
  %1949 = vmatpush1.bf16.msra.mxu0 %v1921
  %1950 = vmatprep.subr.bf16.mxu0 %v1919
  %1951 = vmatpush1.bf16.msra.mxu0 %v1918
  %1952 = vmatprep.subr.bf16.mxu0 %v1916
  %1953 = vmatpush1.bf16.msra.mxu0 %v1915
  %1954 = vmatprep.subr.bf16.mxu0 %v1913
  %1955 = vmatpush1.bf16.msra.mxu0 %v1912
  %1956 = vmatprep.subr.bf16.mxu0 %v1910
  %1957 = vmatpush1.bf16.msra.mxu0 %v1909
  %1958 = vmatprep.subr.bf16.mxu0 %v1907
  %1959 = vmatpush1.bf16.msra.mxu0 %v1906
  %1960 = vmatprep.subr.bf16.mxu0 %v1904
  %1961 = vmatpush1.bf16.msra.mxu0 %v1903
  %1962 = vmatprep.subr.bf16.mxu0 %v1901
  %1963 = vmatpush1.bf16.msra.mxu0 %v1900
  %1964 = vmatprep.subr.bf16.mxu0 0
  %1965 = vmatpush2.bf16.msra.mxu0 0
  %1966 = vmatprep.subr.bf16.mxu0 0
  %1967 = vmatpush2.bf16.msra.mxu0 0
  %1968 = vmatprep.subr.bf16.mxu0 0
  %1969 = vmatpush2.bf16.msra.mxu0 0
  %1970 = vmatprep.subr.bf16.mxu0 0
  %1971 = vmatpush2.bf16.msra.mxu0 0
  %1972 = vmatprep.subr.bf16.mxu0 0
  %1973 = vmatpush2.bf16.msra.mxu0 0
  %1974 = vmatprep.subr.bf16.mxu0 0
  %1975 = vmatpush2.bf16.msra.mxu0 0
  %1976 = vmatprep.subr.bf16.mxu0 0
  %1977 = vmatpush2.bf16.msra.mxu0 0
  %1978 = vmatprep.subr.bf16.mxu0 0
  %1979 = vmatpush2.bf16.msra.mxu0 0
  %1980 = vmatprep.mubr.bf16.mxu0 0
  %1981 = vmatmul.mubr.bf16.gmra.mxu0 %v1803
  %v1982 = vpop.f32.mrf.mxu0
  %v1983 = vadd.f32 %v1808, %v1982
  %v1984 = vpop.f32.mrf.mxu0
  %v1985 = vadd.f32 %v1812, %v1984
  %v1986 = vpop.f32.mrf.mxu0
  %v1987 = vadd.f32 %v1808, %v1986
  %v1988 = vpop.f32.mrf.mxu0
  %v1989 = vadd.f32 %v1812, %v1988
  %1990 = vdwg.mxu0
  %1991 = vmatprep.subr.bf16.mxu0 0
  %1992 = vmatpush1.bf16.msra.mxu0 %v1923
  %1993 = vmatprep.subr.bf16.mxu0 0
  %1994 = vmatpush1.bf16.msra.mxu0 %v1920
  %1995 = vmatprep.subr.bf16.mxu0 0
  %1996 = vmatpush1.bf16.msra.mxu0 %v1917
  %1997 = vmatprep.subr.bf16.mxu0 0
  %1998 = vmatpush1.bf16.msra.mxu0 %v1914
  %1999 = vmatprep.subr.bf16.mxu0 0
  %2000 = vmatpush1.bf16.msra.mxu0 %v1911
  %2001 = vmatprep.subr.bf16.mxu0 0
  %2002 = vmatpush1.bf16.msra.mxu0 %v1908
  %2003 = vmatprep.subr.bf16.mxu0 0
  %2004 = vmatpush1.bf16.msra.mxu0 %v1905
  %2005 = vmatprep.subr.bf16.mxu0 0
  %2006 = vmatpush1.bf16.msra.mxu0 %v1902
  %2007 = vmatprep.subr.bf16.mxu0 0
  %2008 = vmatpush2.bf16.msra.mxu0 0
  %2009 = vmatprep.subr.bf16.mxu0 0
  %2010 = vmatpush2.bf16.msra.mxu0 0
  %2011 = vmatprep.subr.bf16.mxu0 0
  %2012 = vmatpush2.bf16.msra.mxu0 0
  %2013 = vmatprep.subr.bf16.mxu0 0
  %2014 = vmatpush2.bf16.msra.mxu0 0
  %2015 = vmatprep.subr.bf16.mxu0 0
  %2016 = vmatpush2.bf16.msra.mxu0 0
  %2017 = vmatprep.subr.bf16.mxu0 0
  %2018 = vmatpush2.bf16.msra.mxu0 0
  %2019 = vmatprep.subr.bf16.mxu0 0
  %2020 = vmatpush2.bf16.msra.mxu0 0
  %2021 = vmatprep.subr.bf16.mxu0 0
  %2022 = vmatpush2.bf16.msra.mxu0 0
  %2023 = vmatprep.mubr.bf16.mxu0 0
  %2024 = vmatmul.mubr.bf16.gmra.mxu0 %v1803
  %v2025 = vpop.f32.mrf.mxu0
  %v2026 = vadd.f32 %v1816, %v2025
  %v2027 = vpop.f32.mrf.mxu0
  %v2028 = vpop.f32.mrf.mxu0
  %v2029 = vadd.f32 %v1816, %v2028
  %v2030 = vpop.f32.mrf.mxu0
  %2031 = vdwg.mxu0
  %v2032 = vpack.c.bf16 %v1983, %v1983
  %v2033 = vpack.c.bf16 %v1985, %v1985
  %v2034 = vpack.c.bf16 %v2026, %v2026
  %v2036 = vsel %vm377, %v2032, 0
  %v2039 = vsel %vm377, %v2033, 0
  %2041 = vmatprep.subr.bf16.mxu0 0
  %2042 = vmatpush1.bf16.xpose.msra.mxu0 0
  %2043 = vmatprep.subr.bf16.mxu0 0
  %2044 = vmatpush1.bf16.xpose.msra.mxu0 0
  %2045 = vmatprep.subr.bf16.mxu0 0
  %2046 = vmatpush1.bf16.xpose.msra.mxu0 0
  %2047 = vmatprep.subr.bf16.mxu0 0
  %2048 = vmatpush1.bf16.xpose.msra.mxu0 0
  %2049 = vmatprep.subr.bf16.mxu0 0
  %2050 = vmatpush1.bf16.xpose.msra.mxu0 0
  %2051 = vmatprep.subr.bf16.mxu0 0
  %2052 = vmatpush1.bf16.xpose.msra.mxu0 0
  %2053 = vmatprep.subr.bf16.mxu0 0
  %2054 = vmatpush1.bf16.xpose.msra.mxu0 0
  %2055 = vmatprep.subr.bf16.mxu0 0
  %2056 = vmatpush1.bf16.xpose.msra.mxu0 %v2039
  %2057 = vmatprep.subr.bf16.mxu0 0
  %2058 = vmatpush2.bf16.xpose.msra.mxu0 0
  %2059 = vmatprep.subr.bf16.mxu0 0
  %2060 = vmatpush2.bf16.xpose.msra.mxu0 0
  %2061 = vmatprep.subr.bf16.mxu0 0
  %2062 = vmatpush2.bf16.xpose.msra.mxu0 0
  %2063 = vmatprep.subr.bf16.mxu0 0
  %2064 = vmatpush2.bf16.xpose.msra.mxu0 0
  %2065 = vmatprep.subr.bf16.mxu0 0
  %2066 = vmatpush2.bf16.xpose.msra.mxu0 0
  %2067 = vmatprep.subr.bf16.mxu0 0
  %2068 = vmatpush2.bf16.xpose.msra.mxu0 0
  %2069 = vmatprep.subr.bf16.mxu0 0
  %2070 = vmatpush2.bf16.xpose.msra.mxu0 0
  %2071 = vmatprep.subr.bf16.mxu0 0
  %2072 = vmatpush2.bf16.xpose.msra.mxu0 0
  %2073 = vmatprep.mubr.bf16.mxu0 0
  %2074 = vmatmul.mubr.bf16.gmra.mxu0 %v2036
  %v2075 = vpop.f32.mrf.mxu0
  %v2076 = vadd.f32 0.0, %v2075
  %v2077 = vpop.f32.mrf.mxu0
  %v2078 = vpop.f32.mrf.mxu0
  %v2079 = vpop.f32.mrf.mxu0
  %2080 = vdwg.mxu0
  %v2081 = vmul.f32 %v2076, 0.125
  %v2082 = vadd.f32 %v2081, %v429
  %v2083 = vsel %vm432, %v2082, -inf
  %2084 = vmax.xlane.f32.xlu0 %v2083
  %v2085 = vpop.xlane.xlu0 %2084
  %v2086 = vsub.f32 %v2082, %v2085
  %v2087 = vmul.f32 %v2086, 1.442695
  %v2088 = vpow.pop %v2087
  %v2089 = vsel %vm432, %v2088, 0.0
  %2090 = vadd.xlane.f32.xlu0 %v2089
  %v2091 = vpop.xlane.xlu0 %2090
  %v2092 = vrcp.pop %v2091
  %v2093 = vmul.f32 %v2088, %v2092
  %v2094 = vpack.c.bf16 %v2093, %v2093
  %v2096 = vsel %vm432, %v2094, 0
  %v2099 = vsel %vm448, %v2034, 0
  %2101 = vmatprep.subr.bf16.mxu0 0
  %2102 = vmatpush1.bf16.msra.mxu0 0
  %2103 = vmatprep.subr.bf16.mxu0 0
  %2104 = vmatpush1.bf16.msra.mxu0 0
  %2105 = vmatprep.subr.bf16.mxu0 0
  %2106 = vmatpush1.bf16.msra.mxu0 0
  %2107 = vmatprep.subr.bf16.mxu0 0
  %2108 = vmatpush1.bf16.msra.mxu0 0
  %2109 = vmatprep.subr.bf16.mxu0 0
  %2110 = vmatpush1.bf16.msra.mxu0 0
  %2111 = vmatprep.subr.bf16.mxu0 0
  %2112 = vmatpush1.bf16.msra.mxu0 0
  %2113 = vmatprep.subr.bf16.mxu0 0
  %2114 = vmatpush1.bf16.msra.mxu0 0
  %2115 = vmatprep.subr.bf16.mxu0 0
  %2116 = vmatpush1.bf16.msra.mxu0 %v2099
  %2117 = vmatprep.subr.bf16.mxu0 0
  %2118 = vmatpush2.bf16.msra.mxu0 0
  %2119 = vmatprep.subr.bf16.mxu0 0
  %2120 = vmatpush2.bf16.msra.mxu0 0
  %2121 = vmatprep.subr.bf16.mxu0 0
  %2122 = vmatpush2.bf16.msra.mxu0 0
  %2123 = vmatprep.subr.bf16.mxu0 0
  %2124 = vmatpush2.bf16.msra.mxu0 0
  %2125 = vmatprep.subr.bf16.mxu0 0
  %2126 = vmatpush2.bf16.msra.mxu0 0
  %2127 = vmatprep.subr.bf16.mxu0 0
  %2128 = vmatpush2.bf16.msra.mxu0 0
  %2129 = vmatprep.subr.bf16.mxu0 0
  %2130 = vmatpush2.bf16.msra.mxu0 0
  %2131 = vmatprep.subr.bf16.mxu0 0
  %2132 = vmatpush2.bf16.msra.mxu0 0
  %2133 = vmatprep.mubr.bf16.mxu0 0
  %2134 = vmatmul.mubr.bf16.gmra.mxu0 %v2096
  %v2135 = vpop.f32.mrf.mxu0
  %v2136 = vadd.f32 0.0, %v2135
  %v2137 = vpop.f32.mrf.mxu0
  %v2138 = vpop.f32.mrf.mxu0
  %v2139 = vpop.f32.mrf.mxu0
  %2140 = vdwg.mxu0
  %2142 = vrot.lane.b32.xlu0 %v2032, 64
  %v2143 = vpop.permute.xlu0 %2142
  %2145 = vrot.lane.b32.xlu0 %v2033, 64
  %v2146 = vpop.permute.xlu0 %2145
  %v2148 = vsel %vm377, %v2143, 0
  %v2151 = vsel %vm377, %v2146, 0
  %2153 = vmatprep.subr.bf16.mxu0 0
  %2154 = vmatpush1.bf16.xpose.msra.mxu0 0
  %2155 = vmatprep.subr.bf16.mxu0 0
  %2156 = vmatpush1.bf16.xpose.msra.mxu0 0
  %2157 = vmatprep.subr.bf16.mxu0 0
  %2158 = vmatpush1.bf16.xpose.msra.mxu0 0
  %2159 = vmatprep.subr.bf16.mxu0 0
  %2160 = vmatpush1.bf16.xpose.msra.mxu0 0
  %2161 = vmatprep.subr.bf16.mxu0 0
  %2162 = vmatpush1.bf16.xpose.msra.mxu0 0
  %2163 = vmatprep.subr.bf16.mxu0 0
  %2164 = vmatpush1.bf16.xpose.msra.mxu0 0
  %2165 = vmatprep.subr.bf16.mxu0 0
  %2166 = vmatpush1.bf16.xpose.msra.mxu0 0
  %2167 = vmatprep.subr.bf16.mxu0 0
  %2168 = vmatpush1.bf16.xpose.msra.mxu0 %v2151
  %2169 = vmatprep.subr.bf16.mxu0 0
  %2170 = vmatpush2.bf16.xpose.msra.mxu0 0
  %2171 = vmatprep.subr.bf16.mxu0 0
  %2172 = vmatpush2.bf16.xpose.msra.mxu0 0
  %2173 = vmatprep.subr.bf16.mxu0 0
  %2174 = vmatpush2.bf16.xpose.msra.mxu0 0
  %2175 = vmatprep.subr.bf16.mxu0 0
  %2176 = vmatpush2.bf16.xpose.msra.mxu0 0
  %2177 = vmatprep.subr.bf16.mxu0 0
  %2178 = vmatpush2.bf16.xpose.msra.mxu0 0
  %2179 = vmatprep.subr.bf16.mxu0 0
  %2180 = vmatpush2.bf16.xpose.msra.mxu0 0
  %2181 = vmatprep.subr.bf16.mxu0 0
  %2182 = vmatpush2.bf16.xpose.msra.mxu0 0
  %2183 = vmatprep.subr.bf16.mxu0 0
  %2184 = vmatpush2.bf16.xpose.msra.mxu0 0
  %2185 = vmatprep.mubr.bf16.mxu0 0
  %2186 = vmatmul.mubr.bf16.gmra.mxu0 %v2148
  %v2187 = vpop.f32.mrf.mxu0
  %v2188 = vadd.f32 0.0, %v2187
  %v2189 = vpop.f32.mrf.mxu0
  %v2190 = vpop.f32.mrf.mxu0
  %v2191 = vpop.f32.mrf.mxu0
  %2192 = vdwg.mxu0
  %v2193 = vmul.f32 %v2188, 0.125
  %v2194 = vadd.f32 %v2193, %v429
  %v2195 = vsel %vm432, %v2194, -inf
  %2196 = vmax.xlane.f32.xlu0 %v2195
  %v2197 = vpop.xlane.xlu0 %2196
  %v2198 = vsub.f32 %v2194, %v2197
  %v2199 = vmul.f32 %v2198, 1.442695
  %v2200 = vpow.pop %v2199
  %v2201 = vsel %vm432, %v2200, 0.0
  %2202 = vadd.xlane.f32.xlu0 %v2201
  %v2203 = vpop.xlane.xlu0 %2202
  %v2204 = vrcp.pop %v2203
  %v2205 = vmul.f32 %v2200, %v2204
  %v2206 = vpack.c.bf16 %v2205, %v2205
  %2208 = vrot.lane.b32.xlu0 %v2034, 64
  %v2209 = vpop.permute.xlu0 %2208
  %v2211 = vsel %vm432, %v2206, 0
  %v2214 = vsel %vm448, %v2209, 0
  %2216 = vmatprep.subr.bf16.mxu0 0
  %2217 = vmatpush1.bf16.msra.mxu0 0
  %2218 = vmatprep.subr.bf16.mxu0 0
  %2219 = vmatpush1.bf16.msra.mxu0 0
  %2220 = vmatprep.subr.bf16.mxu0 0
  %2221 = vmatpush1.bf16.msra.mxu0 0
  %2222 = vmatprep.subr.bf16.mxu0 0
  %2223 = vmatpush1.bf16.msra.mxu0 0
  %2224 = vmatprep.subr.bf16.mxu0 0
  %2225 = vmatpush1.bf16.msra.mxu0 0
  %2226 = vmatprep.subr.bf16.mxu0 0
  %2227 = vmatpush1.bf16.msra.mxu0 0
  %2228 = vmatprep.subr.bf16.mxu0 0
  %2229 = vmatpush1.bf16.msra.mxu0 0
  %2230 = vmatprep.subr.bf16.mxu0 0
  %2231 = vmatpush1.bf16.msra.mxu0 %v2214
  %2232 = vmatprep.subr.bf16.mxu0 0
  %2233 = vmatpush2.bf16.msra.mxu0 0
  %2234 = vmatprep.subr.bf16.mxu0 0
  %2235 = vmatpush2.bf16.msra.mxu0 0
  %2236 = vmatprep.subr.bf16.mxu0 0
  %2237 = vmatpush2.bf16.msra.mxu0 0
  %2238 = vmatprep.subr.bf16.mxu0 0
  %2239 = vmatpush2.bf16.msra.mxu0 0
  %2240 = vmatprep.subr.bf16.mxu0 0
  %2241 = vmatpush2.bf16.msra.mxu0 0
  %2242 = vmatprep.subr.bf16.mxu0 0
  %2243 = vmatpush2.bf16.msra.mxu0 0
  %2244 = vmatprep.subr.bf16.mxu0 0
  %2245 = vmatpush2.bf16.msra.mxu0 0
  %2246 = vmatprep.subr.bf16.mxu0 0
  %2247 = vmatpush2.bf16.msra.mxu0 0
  %2248 = vmatprep.mubr.bf16.mxu0 0
  %2249 = vmatmul.mubr.bf16.gmra.mxu0 %v2211
  %v2250 = vpop.f32.mrf.mxu0
  %v2251 = vadd.f32 0.0, %v2250
  %v2252 = vpop.f32.mrf.mxu0
  %v2253 = vpop.f32.mrf.mxu0
  %v2254 = vpop.f32.mrf.mxu0
  %2255 = vdwg.mxu0
  %2257 = vrot.lane.b32.xlu0 %v2251, 64
  %v2258 = vpop.permute.xlu0 %2257
  %v2260 = vsel %vm377, %v2136, %v2258
  %v2261 = vpack.c.bf16 %v1987, %v1987
  %v2262 = vpack.c.bf16 %v1989, %v1989
  %v2263 = vpack.c.bf16 %v2029, %v2029
  %v2265 = vsel %vm377, %v2261, 0
  %v2268 = vsel %vm377, %v2262, 0
  %2270 = vmatprep.subr.bf16.mxu0 0
  %2271 = vmatpush1.bf16.xpose.msra.mxu0 0
  %2272 = vmatprep.subr.bf16.mxu0 0
  %2273 = vmatpush1.bf16.xpose.msra.mxu0 0
  %2274 = vmatprep.subr.bf16.mxu0 0
  %2275 = vmatpush1.bf16.xpose.msra.mxu0 0
  %2276 = vmatprep.subr.bf16.mxu0 0
  %2277 = vmatpush1.bf16.xpose.msra.mxu0 0
  %2278 = vmatprep.subr.bf16.mxu0 0
  %2279 = vmatpush1.bf16.xpose.msra.mxu0 0
  %2280 = vmatprep.subr.bf16.mxu0 0
  %2281 = vmatpush1.bf16.xpose.msra.mxu0 0
  %2282 = vmatprep.subr.bf16.mxu0 0
  %2283 = vmatpush1.bf16.xpose.msra.mxu0 0
  %2284 = vmatprep.subr.bf16.mxu0 0
  %2285 = vmatpush1.bf16.xpose.msra.mxu0 %v2268
  %2286 = vmatprep.subr.bf16.mxu0 0
  %2287 = vmatpush2.bf16.xpose.msra.mxu0 0
  %2288 = vmatprep.subr.bf16.mxu0 0
  %2289 = vmatpush2.bf16.xpose.msra.mxu0 0
  %2290 = vmatprep.subr.bf16.mxu0 0
  %2291 = vmatpush2.bf16.xpose.msra.mxu0 0
  %2292 = vmatprep.subr.bf16.mxu0 0
  %2293 = vmatpush2.bf16.xpose.msra.mxu0 0
  %2294 = vmatprep.subr.bf16.mxu0 0
  %2295 = vmatpush2.bf16.xpose.msra.mxu0 0
  %2296 = vmatprep.subr.bf16.mxu0 0
  %2297 = vmatpush2.bf16.xpose.msra.mxu0 0
  %2298 = vmatprep.subr.bf16.mxu0 0
  %2299 = vmatpush2.bf16.xpose.msra.mxu0 0
  %2300 = vmatprep.subr.bf16.mxu0 0
  %2301 = vmatpush2.bf16.xpose.msra.mxu0 0
  %2302 = vmatprep.mubr.bf16.mxu0 0
  %2303 = vmatmul.mubr.bf16.gmra.mxu0 %v2265
  %v2304 = vpop.f32.mrf.mxu0
  %v2305 = vadd.f32 0.0, %v2304
  %v2306 = vpop.f32.mrf.mxu0
  %v2307 = vpop.f32.mrf.mxu0
  %v2308 = vpop.f32.mrf.mxu0
  %2309 = vdwg.mxu0
  %v2310 = vmul.f32 %v2305, 0.125
  %v2311 = vadd.f32 %v2310, %v668
  %v2312 = vsel %vm432, %v2311, -inf
  %2313 = vmax.xlane.f32.xlu0 %v2312
  %v2314 = vpop.xlane.xlu0 %2313
  %v2315 = vsub.f32 %v2311, %v2314
  %v2316 = vmul.f32 %v2315, 1.442695
  %v2317 = vpow.pop %v2316
  %v2318 = vsel %vm432, %v2317, 0.0
  %2319 = vadd.xlane.f32.xlu0 %v2318
  %v2320 = vpop.xlane.xlu0 %2319
  %v2321 = vrcp.pop %v2320
  %v2322 = vmul.f32 %v2317, %v2321
  %v2323 = vpack.c.bf16 %v2322, %v2322
  %v2325 = vsel %vm432, %v2323, 0
  %v2328 = vsel %vm448, %v2263, 0
  %2330 = vmatprep.subr.bf16.mxu0 0
  %2331 = vmatpush1.bf16.msra.mxu0 0
  %2332 = vmatprep.subr.bf16.mxu0 0
  %2333 = vmatpush1.bf16.msra.mxu0 0
  %2334 = vmatprep.subr.bf16.mxu0 0
  %2335 = vmatpush1.bf16.msra.mxu0 0
  %2336 = vmatprep.subr.bf16.mxu0 0
  %2337 = vmatpush1.bf16.msra.mxu0 0
  %2338 = vmatprep.subr.bf16.mxu0 0
  %2339 = vmatpush1.bf16.msra.mxu0 0
  %2340 = vmatprep.subr.bf16.mxu0 0
  %2341 = vmatpush1.bf16.msra.mxu0 0
  %2342 = vmatprep.subr.bf16.mxu0 0
  %2343 = vmatpush1.bf16.msra.mxu0 0
  %2344 = vmatprep.subr.bf16.mxu0 0
  %2345 = vmatpush1.bf16.msra.mxu0 %v2328
  %2346 = vmatprep.subr.bf16.mxu0 0
  %2347 = vmatpush2.bf16.msra.mxu0 0
  %2348 = vmatprep.subr.bf16.mxu0 0
  %2349 = vmatpush2.bf16.msra.mxu0 0
  %2350 = vmatprep.subr.bf16.mxu0 0
  %2351 = vmatpush2.bf16.msra.mxu0 0
  %2352 = vmatprep.subr.bf16.mxu0 0
  %2353 = vmatpush2.bf16.msra.mxu0 0
  %2354 = vmatprep.subr.bf16.mxu0 0
  %2355 = vmatpush2.bf16.msra.mxu0 0
  %2356 = vmatprep.subr.bf16.mxu0 0
  %2357 = vmatpush2.bf16.msra.mxu0 0
  %2358 = vmatprep.subr.bf16.mxu0 0
  %2359 = vmatpush2.bf16.msra.mxu0 0
  %2360 = vmatprep.subr.bf16.mxu0 0
  %2361 = vmatpush2.bf16.msra.mxu0 0
  %2362 = vmatprep.mubr.bf16.mxu0 0
  %2363 = vmatmul.mubr.bf16.gmra.mxu0 %v2325
  %v2364 = vpop.f32.mrf.mxu0
  %v2365 = vadd.f32 0.0, %v2364
  %v2366 = vpop.f32.mrf.mxu0
  %v2367 = vpop.f32.mrf.mxu0
  %v2368 = vpop.f32.mrf.mxu0
  %2369 = vdwg.mxu0
  %2371 = vrot.lane.b32.xlu0 %v2261, 64
  %v2372 = vpop.permute.xlu0 %2371
  %2374 = vrot.lane.b32.xlu0 %v2262, 64
  %v2375 = vpop.permute.xlu0 %2374
  %v2377 = vsel %vm377, %v2372, 0
  %v2380 = vsel %vm377, %v2375, 0
  %2382 = vmatprep.subr.bf16.mxu0 0
  %2383 = vmatpush1.bf16.xpose.msra.mxu0 0
  %2384 = vmatprep.subr.bf16.mxu0 0
  %2385 = vmatpush1.bf16.xpose.msra.mxu0 0
  %2386 = vmatprep.subr.bf16.mxu0 0
  %2387 = vmatpush1.bf16.xpose.msra.mxu0 0
  %2388 = vmatprep.subr.bf16.mxu0 0
  %2389 = vmatpush1.bf16.xpose.msra.mxu0 0
  %2390 = vmatprep.subr.bf16.mxu0 0
  %2391 = vmatpush1.bf16.xpose.msra.mxu0 0
  %2392 = vmatprep.subr.bf16.mxu0 0
  %2393 = vmatpush1.bf16.xpose.msra.mxu0 0
  %2394 = vmatprep.subr.bf16.mxu0 0
  %2395 = vmatpush1.bf16.xpose.msra.mxu0 0
  %2396 = vmatprep.subr.bf16.mxu0 0
  %2397 = vmatpush1.bf16.xpose.msra.mxu0 %v2380
  %2398 = vmatprep.subr.bf16.mxu0 0
  %2399 = vmatpush2.bf16.xpose.msra.mxu0 0
  %2400 = vmatprep.subr.bf16.mxu0 0
  %2401 = vmatpush2.bf16.xpose.msra.mxu0 0
  %2402 = vmatprep.subr.bf16.mxu0 0
  %2403 = vmatpush2.bf16.xpose.msra.mxu0 0
  %2404 = vmatprep.subr.bf16.mxu0 0
  %2405 = vmatpush2.bf16.xpose.msra.mxu0 0
  %2406 = vmatprep.subr.bf16.mxu0 0
  %2407 = vmatpush2.bf16.xpose.msra.mxu0 0
  %2408 = vmatprep.subr.bf16.mxu0 0
  %2409 = vmatpush2.bf16.xpose.msra.mxu0 0
  %2410 = vmatprep.subr.bf16.mxu0 0
  %2411 = vmatpush2.bf16.xpose.msra.mxu0 0
  %2412 = vmatprep.subr.bf16.mxu0 0
  %2413 = vmatpush2.bf16.xpose.msra.mxu0 0
  %2414 = vmatprep.mubr.bf16.mxu0 0
  %2415 = vmatmul.mubr.bf16.gmra.mxu0 %v2377
  %v2416 = vpop.f32.mrf.mxu0
  %v2417 = vadd.f32 0.0, %v2416
  %v2418 = vpop.f32.mrf.mxu0
  %v2419 = vpop.f32.mrf.mxu0
  %v2420 = vpop.f32.mrf.mxu0
  %2421 = vdwg.mxu0
  %v2422 = vmul.f32 %v2417, 0.125
  %v2423 = vadd.f32 %v2422, %v668
  %v2424 = vsel %vm432, %v2423, -inf
  %2425 = vmax.xlane.f32.xlu0 %v2424
  %v2426 = vpop.xlane.xlu0 %2425
  %v2427 = vsub.f32 %v2423, %v2426
  %v2428 = vmul.f32 %v2427, 1.442695
  %v2429 = vpow.pop %v2428
  %v2430 = vsel %vm432, %v2429, 0.0
  %2431 = vadd.xlane.f32.xlu0 %v2430
  %v2432 = vpop.xlane.xlu0 %2431
  %v2433 = vrcp.pop %v2432
  %v2434 = vmul.f32 %v2429, %v2433
  %v2435 = vpack.c.bf16 %v2434, %v2434
  %2437 = vrot.lane.b32.xlu0 %v2263, 64
  %v2438 = vpop.permute.xlu0 %2437
  %v2440 = vsel %vm432, %v2435, 0
  %v2443 = vsel %vm448, %v2438, 0
  %2445 = vmatprep.subr.bf16.mxu0 0
  %2446 = vmatpush1.bf16.msra.mxu0 0
  %2447 = vmatprep.subr.bf16.mxu0 0
  %2448 = vmatpush1.bf16.msra.mxu0 0
  %2449 = vmatprep.subr.bf16.mxu0 0
  %2450 = vmatpush1.bf16.msra.mxu0 0
  %2451 = vmatprep.subr.bf16.mxu0 0
  %2452 = vmatpush1.bf16.msra.mxu0 0
  %2453 = vmatprep.subr.bf16.mxu0 0
  %2454 = vmatpush1.bf16.msra.mxu0 0
  %2455 = vmatprep.subr.bf16.mxu0 0
  %2456 = vmatpush1.bf16.msra.mxu0 0
  %2457 = vmatprep.subr.bf16.mxu0 0
  %2458 = vmatpush1.bf16.msra.mxu0 0
  %2459 = vmatprep.subr.bf16.mxu0 0
  %2460 = vmatpush1.bf16.msra.mxu0 %v2443
  %2461 = vmatprep.subr.bf16.mxu0 0
  %2462 = vmatpush2.bf16.msra.mxu0 0
  %2463 = vmatprep.subr.bf16.mxu0 0
  %2464 = vmatpush2.bf16.msra.mxu0 0
  %2465 = vmatprep.subr.bf16.mxu0 0
  %2466 = vmatpush2.bf16.msra.mxu0 0
  %2467 = vmatprep.subr.bf16.mxu0 0
  %2468 = vmatpush2.bf16.msra.mxu0 0
  %2469 = vmatprep.subr.bf16.mxu0 0
  %2470 = vmatpush2.bf16.msra.mxu0 0
  %2471 = vmatprep.subr.bf16.mxu0 0
  %2472 = vmatpush2.bf16.msra.mxu0 0
  %2473 = vmatprep.subr.bf16.mxu0 0
  %2474 = vmatpush2.bf16.msra.mxu0 0
  %2475 = vmatprep.subr.bf16.mxu0 0
  %2476 = vmatpush2.bf16.msra.mxu0 0
  %2477 = vmatprep.mubr.bf16.mxu0 0
  %2478 = vmatmul.mubr.bf16.gmra.mxu0 %v2440
  %v2479 = vpop.f32.mrf.mxu0
  %v2480 = vadd.f32 0.0, %v2479
  %v2481 = vpop.f32.mrf.mxu0
  %v2482 = vpop.f32.mrf.mxu0
  %v2483 = vpop.f32.mrf.mxu0
  %2484 = vdwg.mxu0
  %2486 = vrot.lane.b32.xlu0 %v2480, 64
  %v2487 = vpop.permute.xlu0 %2486
  %v2489 = vsel %vm377, %v2365, %v2487
  %s2490 = scalar_lea.vmem %s6, 64
  %v2491 = vld [vmem:[%s2490] sm:$0xf]
  %v2492 = vld [vmem:[%s2490 + $0x4] sm:$0xf]
  %v2493 = vld [vmem:[%s2490 + $0x8] sm:$0xf]
  %v2494 = vld [vmem:[%s2490 + $0xc] sm:$0xf]
  %v2495 = vld [vmem:[%s2490 + $0x10] sm:$0xf]
  %v2496 = vld [vmem:[%s2490 + $0x14] sm:$0xf]
  %v2497 = vld [vmem:[%s2490 + $0x18] sm:$0xf]
  %v2498 = vld [vmem:[%s2490 + $0x1c] sm:$0xf]
  %v2499 = vld [vmem:[%s2490 + $0x20] sm:$0xf]
  %v2500 = vld [vmem:[%s2490 + $0x24] sm:$0xf]
  %v2501 = vld [vmem:[%s2490 + $0x28] sm:$0xf]
  %v2502 = vld [vmem:[%s2490 + $0x2c] sm:$0xf]
  %v2503 = vld [vmem:[%s2490 + $0x30] sm:$0xf]
  %v2504 = vld [vmem:[%s2490 + $0x34] sm:$0xf]
  %v2505 = vld [vmem:[%s2490 + $0x38] sm:$0xf]
  %v2506 = vld [vmem:[%s2490 + $0x3c] sm:$0xf]
  %s2507 = scalar_lea.vmem %s7, 1
  %v2508 = vld [vmem:[%s2507] sm:$0x1]
  %v2509 = vpack.c.bf16 %v2489, %v2260
  %v2511 = vlaneseq
  %v2512 = vshrl.u32 %v2511, 7
  %v2513 = vsub.s32 0, %v2512
  %v2514 = vrot.slane %v2508, %v2513
  %v2532 = vunpack.c.l.b16 %v2491
  %v2533 = vunpack.c.l.b16 %v2492
  %v2534 = vunpack.c.l.b16 %v2493
  %v2535 = vunpack.c.l.b16 %v2494
  %v2536 = vunpack.c.l.b16 %v2495
  %v2537 = vunpack.c.l.b16 %v2496
  %v2538 = vunpack.c.l.b16 %v2497
  %v2539 = vunpack.c.l.b16 %v2498
  %v2540 = vunpack.c.l.b16 %v2499
  %v2541 = vunpack.c.l.b16 %v2500
  %v2542 = vunpack.c.l.b16 %v2501
  %v2543 = vunpack.c.l.b16 %v2502
  %v2544 = vunpack.c.l.b16 %v2503
  %v2545 = vunpack.c.l.b16 %v2504
  %v2546 = vunpack.c.l.b16 %v2505
  %v2547 = vunpack.c.l.b16 %v2506
  %v2548 = vpack.c.b16 %v2533, %v2532
  %v2549 = vpack.c.b16 %v2535, %v2534
  %v2550 = vpack.c.b16 %v2537, %v2536
  %v2551 = vpack.c.b16 %v2539, %v2538
  %v2552 = vpack.c.b16 %v2541, %v2540
  %v2553 = vpack.c.b16 %v2543, %v2542
  %v2554 = vpack.c.b16 %v2545, %v2544
  %v2555 = vpack.c.b16 %v2547, %v2546
  %2564 = vmatprep.subr.bf16.mxu0 0
  %2565 = vmatpush1.bf16.msra.mxu0 %v2555
  %2566 = vmatprep.subr.bf16.mxu0 0
  %2567 = vmatpush1.bf16.msra.mxu0 %v2554
  %2568 = vmatprep.subr.bf16.mxu0 0
  %2569 = vmatpush1.bf16.msra.mxu0 %v2553
  %2570 = vmatprep.subr.bf16.mxu0 0
  %2571 = vmatpush1.bf16.msra.mxu0 %v2552
  %2572 = vmatprep.subr.bf16.mxu0 0
  %2573 = vmatpush1.bf16.msra.mxu0 %v2551
  %2574 = vmatprep.subr.bf16.mxu0 0
  %2575 = vmatpush1.bf16.msra.mxu0 %v2550
  %2576 = vmatprep.subr.bf16.mxu0 0
  %2577 = vmatpush1.bf16.msra.mxu0 %v2549
  %2578 = vmatprep.subr.bf16.mxu0 0
  %2579 = vmatpush1.bf16.msra.mxu0 %v2548
  %2580 = vmatprep.subr.bf16.mxu0 0
  %2581 = vmatpush2.bf16.msra.mxu0 0
  %2582 = vmatprep.subr.bf16.mxu0 0
  %2583 = vmatpush2.bf16.msra.mxu0 0
  %2584 = vmatprep.subr.bf16.mxu0 0
  %2585 = vmatpush2.bf16.msra.mxu0 0
  %2586 = vmatprep.subr.bf16.mxu0 0
  %2587 = vmatpush2.bf16.msra.mxu0 0
  %2588 = vmatprep.subr.bf16.mxu0 0
  %2589 = vmatpush2.bf16.msra.mxu0 0
  %2590 = vmatprep.subr.bf16.mxu0 0
  %2591 = vmatpush2.bf16.msra.mxu0 0
  %2592 = vmatprep.subr.bf16.mxu0 0
  %2593 = vmatpush2.bf16.msra.mxu0 0
  %2594 = vmatprep.subr.bf16.mxu0 0
  %2595 = vmatpush2.bf16.msra.mxu0 0
  %2596 = vmatprep.mubr.bf16.mxu0 0
  %2597 = vmatmul.mubr.bf16.gmra.mxu0 %v2509
  %v2598 = vpop.f32.mrf.mxu0
  %v2599 = vadd.f32 %v2514, %v2598
  %v2600 = vpop.f32.mrf.mxu0
  %v2601 = vpop.f32.mrf.mxu0
  %v2602 = vadd.f32 %v2514, %v2601
  %v2603 = vpop.f32.mrf.mxu0
  %2604 = vdwg.mxu0
  %v2605 = vadd.f32 %v2599, %v1766
  %v2606 = vadd.f32 %v2602, %v1767
  %s2607 = scalar_lea.vmem %s8, 1
  %v2608 = vld [vmem:[%s2607] sm:$0x1]
  %s2609 = scalar_lea.vmem %s9, 1
  %v2610 = vld [vmem:[%s2609] sm:$0x1]
  %2611 = vadd.xlane.f32.xlu0 %v2605
  %v2612 = vpop.xlane.xlu0 %2611
  %2613 = vadd.xlane.f32.xlu0 %v2606
  %v2614 = vpop.xlane.xlu0 %2613
  %v2615 = vmul.f32 %v2612, %v76
  %v2616 = vmul.f32 %v2614, %v76
  %v2617 = vsub.f32 %v2605, %v2615
  %v2618 = vsub.f32 %v2606, %v2616
  %v2619 = vmul.f32 %v2617, %v2617
  %v2620 = vmul.f32 %v2618, %v2618
  %2621 = vadd.xlane.f32.xlu0 %v2619
  %v2622 = vpop.xlane.xlu0 %2621
  %2623 = vadd.xlane.f32.xlu0 %v2620
  %v2624 = vpop.xlane.xlu0 %2623
  %v2625 = vmul.f32 %v2622, %v76
  %v2626 = vmul.f32 %v2624, %v76
  %v2627 = vadd.f32 %v2625, 1e-12
  %v2628 = vadd.f32 %v2626, 1e-12
  %v2629 = vrsqrt.pop %v2627
  %v2630 = vrsqrt.pop %v2628
  %v2631 = vmul.f32 %v2617, %v2629
  %v2632 = vmul.f32 %v2618, %v2630
  %v2634 = vlaneseq
  %v2635 = vshrl.u32 %v2634, 7
  %v2636 = vsub.s32 0, %v2635
  %v2637 = vrot.slane %v2608, %v2636
  %v2639 = vmul.f32 %v2631, %v2637
  %v2640 = vmul.f32 %v2632, %v2637
  %v2642 = vlaneseq
  %v2643 = vshrl.u32 %v2642, 7
  %v2644 = vsub.s32 0, %v2643
  %v2645 = vrot.slane %v2610, %v2644
  %v2647 = vadd.f32 %v2639, %v2645
  %v2648 = vadd.f32 %v2640, %v2645
  %s2649 = scalar_lea.vmem %s10, 256
  %v2650 = vld [vmem:[%s2649] sm:$0xff]
  %v2651 = vld [vmem:[%s2649 + $0x8] sm:$0xff]
  %v2652 = vld [vmem:[%s2649 + $0x10] sm:$0xff]
  %v2653 = vld [vmem:[%s2649 + $0x18] sm:$0xff]
  %v2654 = vld [vmem:[%s2649 + $0x20] sm:$0xff]
  %v2655 = vld [vmem:[%s2649 + $0x28] sm:$0xff]
  %v2656 = vld [vmem:[%s2649 + $0x30] sm:$0xff]
  %v2657 = vld [vmem:[%s2649 + $0x38] sm:$0xff]
  %v2658 = vld [vmem:[%s2649 + $0x40] sm:$0xff]
  %v2659 = vld [vmem:[%s2649 + $0x48] sm:$0xff]
  %v2660 = vld [vmem:[%s2649 + $0x50] sm:$0xff]
  %v2661 = vld [vmem:[%s2649 + $0x58] sm:$0xff]
  %v2662 = vld [vmem:[%s2649 + $0x60] sm:$0xff]
  %v2663 = vld [vmem:[%s2649 + $0x68] sm:$0xff]
  %v2664 = vld [vmem:[%s2649 + $0x70] sm:$0xff]
  %v2665 = vld [vmem:[%s2649 + $0x78] sm:$0xff]
  %v2666 = vld [vmem:[%s2649 + $0x80] sm:$0xff]
  %v2667 = vld [vmem:[%s2649 + $0x88] sm:$0xff]
  %v2668 = vld [vmem:[%s2649 + $0x90] sm:$0xff]
  %v2669 = vld [vmem:[%s2649 + $0x98] sm:$0xff]
  %v2670 = vld [vmem:[%s2649 + $0xa0] sm:$0xff]
  %v2671 = vld [vmem:[%s2649 + $0xa8] sm:$0xff]
  %v2672 = vld [vmem:[%s2649 + $0xb0] sm:$0xff]
  %v2673 = vld [vmem:[%s2649 + $0xb8] sm:$0xff]
  %v2674 = vld [vmem:[%s2649 + $0xc0] sm:$0xff]
  %v2675 = vld [vmem:[%s2649 + $0xc8] sm:$0xff]
  %v2676 = vld [vmem:[%s2649 + $0xd0] sm:$0xff]
  %v2677 = vld [vmem:[%s2649 + $0xd8] sm:$0xff]
  %v2678 = vld [vmem:[%s2649 + $0xe0] sm:$0xff]
  %v2679 = vld [vmem:[%s2649 + $0xe8] sm:$0xff]
  %v2680 = vld [vmem:[%s2649 + $0xf0] sm:$0xff]
  %v2681 = vld [vmem:[%s2649 + $0xf8] sm:$0xff]
  %s2682 = scalar_lea.vmem %s11, 4
  %v2683 = vld [vmem:[%s2682] sm:$0xf]
  %v2684 = vpack.c.bf16 %v2648, %v2647
  %v2686 = vlaneseq
  %v2687 = vshrl.u32 %v2686, 7
  %v2688 = vsub.s32 0, %v2687
  %v2689 = vrot.slane %v2683, %v2688
  %v2690 = vlaneseq
  %v2691 = vshrl.u32 %v2690, 7
  %v2692 = vsub.s32 1, %v2691
  %v2693 = vrot.slane %v2683, %v2692
  %v2694 = vlaneseq
  %v2695 = vshrl.u32 %v2694, 7
  %v2696 = vsub.s32 2, %v2695
  %v2697 = vrot.slane %v2683, %v2696
  %v2698 = vlaneseq
  %v2699 = vshrl.u32 %v2698, 7
  %v2700 = vsub.s32 3, %v2699
  %v2701 = vrot.slane %v2683, %v2700
  %v2738 = vunpack.c.l.b16 %v2650
  %v2739 = vunpack.c.h.b16 %v2650
  %v2740 = vunpack.c.l.b16 %v2651
  %v2741 = vunpack.c.h.b16 %v2651
  %v2742 = vunpack.c.l.b16 %v2652
  %v2743 = vunpack.c.h.b16 %v2652
  %v2744 = vunpack.c.l.b16 %v2653
  %v2745 = vunpack.c.h.b16 %v2653
  %v2746 = vunpack.c.l.b16 %v2654
  %v2747 = vunpack.c.h.b16 %v2654
  %v2748 = vunpack.c.l.b16 %v2655
  %v2749 = vunpack.c.h.b16 %v2655
  %v2750 = vunpack.c.l.b16 %v2656
  %v2751 = vunpack.c.h.b16 %v2656
  %v2752 = vunpack.c.l.b16 %v2657
  %v2753 = vunpack.c.h.b16 %v2657
  %v2754 = vunpack.c.l.b16 %v2658
  %v2755 = vunpack.c.h.b16 %v2658
  %v2756 = vunpack.c.l.b16 %v2659
  %v2757 = vunpack.c.h.b16 %v2659
  %v2758 = vunpack.c.l.b16 %v2660
  %v2759 = vunpack.c.h.b16 %v2660
  %v2760 = vunpack.c.l.b16 %v2661
  %v2761 = vunpack.c.h.b16 %v2661
  %v2762 = vunpack.c.l.b16 %v2662
  %v2763 = vunpack.c.h.b16 %v2662
  %v2764 = vunpack.c.l.b16 %v2663
  %v2765 = vunpack.c.h.b16 %v2663
  %v2766 = vunpack.c.l.b16 %v2664
  %v2767 = vunpack.c.h.b16 %v2664
  %v2768 = vunpack.c.l.b16 %v2665
  %v2769 = vunpack.c.h.b16 %v2665
  %v2770 = vunpack.c.l.b16 %v2666
  %v2771 = vunpack.c.h.b16 %v2666
  %v2772 = vunpack.c.l.b16 %v2667
  %v2773 = vunpack.c.h.b16 %v2667
  %v2774 = vunpack.c.l.b16 %v2668
  %v2775 = vunpack.c.h.b16 %v2668
  %v2776 = vunpack.c.l.b16 %v2669
  %v2777 = vunpack.c.h.b16 %v2669
  %v2778 = vunpack.c.l.b16 %v2670
  %v2779 = vunpack.c.h.b16 %v2670
  %v2780 = vunpack.c.l.b16 %v2671
  %v2781 = vunpack.c.h.b16 %v2671
  %v2782 = vunpack.c.l.b16 %v2672
  %v2783 = vunpack.c.h.b16 %v2672
  %v2784 = vunpack.c.l.b16 %v2673
  %v2785 = vunpack.c.h.b16 %v2673
  %v2786 = vunpack.c.l.b16 %v2674
  %v2787 = vunpack.c.h.b16 %v2674
  %v2788 = vunpack.c.l.b16 %v2675
  %v2789 = vunpack.c.h.b16 %v2675
  %v2790 = vunpack.c.l.b16 %v2676
  %v2791 = vunpack.c.h.b16 %v2676
  %v2792 = vunpack.c.l.b16 %v2677
  %v2793 = vunpack.c.h.b16 %v2677
  %v2794 = vunpack.c.l.b16 %v2678
  %v2795 = vunpack.c.h.b16 %v2678
  %v2796 = vunpack.c.l.b16 %v2679
  %v2797 = vunpack.c.h.b16 %v2679
  %v2798 = vunpack.c.l.b16 %v2680
  %v2799 = vunpack.c.h.b16 %v2680
  %v2800 = vunpack.c.l.b16 %v2681
  %v2801 = vunpack.c.h.b16 %v2681
  %v2802 = vpack.c.b16 %v2742, %v2738
  %v2803 = vpack.c.b16 %v2743, %v2739
  %v2804 = vpack.c.b16 %v2744, %v2740
  %v2805 = vpack.c.b16 %v2745, %v2741
  %v2806 = vpack.c.b16 %v2750, %v2746
  %v2807 = vpack.c.b16 %v2751, %v2747
  %v2808 = vpack.c.b16 %v2752, %v2748
  %v2809 = vpack.c.b16 %v2753, %v2749
  %v2810 = vpack.c.b16 %v2758, %v2754
  %v2811 = vpack.c.b16 %v2759, %v2755
  %v2812 = vpack.c.b16 %v2760, %v2756
  %v2813 = vpack.c.b16 %v2761, %v2757
  %v2814 = vpack.c.b16 %v2766, %v2762
  %v2815 = vpack.c.b16 %v2767, %v2763
  %v2816 = vpack.c.b16 %v2768, %v2764
  %v2817 = vpack.c.b16 %v2769, %v2765
  %v2818 = vpack.c.b16 %v2774, %v2770
  %v2819 = vpack.c.b16 %v2775, %v2771
  %v2820 = vpack.c.b16 %v2776, %v2772
  %v2821 = vpack.c.b16 %v2777, %v2773
  %v2822 = vpack.c.b16 %v2782, %v2778
  %v2823 = vpack.c.b16 %v2783, %v2779
  %v2824 = vpack.c.b16 %v2784, %v2780
  %v2825 = vpack.c.b16 %v2785, %v2781
  %v2826 = vpack.c.b16 %v2790, %v2786
  %v2827 = vpack.c.b16 %v2791, %v2787
  %v2828 = vpack.c.b16 %v2792, %v2788
  %v2829 = vpack.c.b16 %v2793, %v2789
  %v2830 = vpack.c.b16 %v2798, %v2794
  %v2831 = vpack.c.b16 %v2799, %v2795
  %v2832 = vpack.c.b16 %v2800, %v2796
  %v2833 = vpack.c.b16 %v2801, %v2797
  %2866 = vmatprep.subr.bf16.mxu0 %v2831
  %2867 = vmatpush1.bf16.msra.mxu0 %v2830
  %2868 = vmatprep.subr.bf16.mxu0 %v2827
  %2869 = vmatpush1.bf16.msra.mxu0 %v2826
  %2870 = vmatprep.subr.bf16.mxu0 %v2823
  %2871 = vmatpush1.bf16.msra.mxu0 %v2822
  %2872 = vmatprep.subr.bf16.mxu0 %v2819
  %2873 = vmatpush1.bf16.msra.mxu0 %v2818
  %2874 = vmatprep.subr.bf16.mxu0 %v2815
  %2875 = vmatpush1.bf16.msra.mxu0 %v2814
  %2876 = vmatprep.subr.bf16.mxu0 %v2811
  %2877 = vmatpush1.bf16.msra.mxu0 %v2810
  %2878 = vmatprep.subr.bf16.mxu0 %v2807
  %2879 = vmatpush1.bf16.msra.mxu0 %v2806
  %2880 = vmatprep.subr.bf16.mxu0 %v2803
  %2881 = vmatpush1.bf16.msra.mxu0 %v2802
  %2882 = vmatprep.subr.bf16.mxu0 0
  %2883 = vmatpush2.bf16.msra.mxu0 0
  %2884 = vmatprep.subr.bf16.mxu0 0
  %2885 = vmatpush2.bf16.msra.mxu0 0
  %2886 = vmatprep.subr.bf16.mxu0 0
  %2887 = vmatpush2.bf16.msra.mxu0 0
  %2888 = vmatprep.subr.bf16.mxu0 0
  %2889 = vmatpush2.bf16.msra.mxu0 0
  %2890 = vmatprep.subr.bf16.mxu0 0
  %2891 = vmatpush2.bf16.msra.mxu0 0
  %2892 = vmatprep.subr.bf16.mxu0 0
  %2893 = vmatpush2.bf16.msra.mxu0 0
  %2894 = vmatprep.subr.bf16.mxu0 0
  %2895 = vmatpush2.bf16.msra.mxu0 0
  %2896 = vmatprep.subr.bf16.mxu0 0
  %2897 = vmatpush2.bf16.msra.mxu0 0
  %2898 = vmatprep.mubr.bf16.mxu0 0
  %2899 = vmatmul.mubr.bf16.gmra.mxu0 %v2684
  %v2900 = vpop.f32.mrf.mxu0
  %v2901 = vadd.f32 %v2689, %v2900
  %v2902 = vpop.f32.mrf.mxu0
  %v2903 = vadd.f32 %v2693, %v2902
  %v2904 = vpop.f32.mrf.mxu0
  %v2905 = vadd.f32 %v2689, %v2904
  %v2906 = vpop.f32.mrf.mxu0
  %v2907 = vadd.f32 %v2693, %v2906
  %2908 = vdwg.mxu0
  %2909 = vmatprep.subr.bf16.mxu0 %v2833
  %2910 = vmatpush1.bf16.msra.mxu0 %v2832
  %2911 = vmatprep.subr.bf16.mxu0 %v2829
  %2912 = vmatpush1.bf16.msra.mxu0 %v2828
  %2913 = vmatprep.subr.bf16.mxu0 %v2825
  %2914 = vmatpush1.bf16.msra.mxu0 %v2824
  %2915 = vmatprep.subr.bf16.mxu0 %v2821
  %2916 = vmatpush1.bf16.msra.mxu0 %v2820
  %2917 = vmatprep.subr.bf16.mxu0 %v2817
  %2918 = vmatpush1.bf16.msra.mxu0 %v2816
  %2919 = vmatprep.subr.bf16.mxu0 %v2813
  %2920 = vmatpush1.bf16.msra.mxu0 %v2812
  %2921 = vmatprep.subr.bf16.mxu0 %v2809
  %2922 = vmatpush1.bf16.msra.mxu0 %v2808
  %2923 = vmatprep.subr.bf16.mxu0 %v2805
  %2924 = vmatpush1.bf16.msra.mxu0 %v2804
  %2925 = vmatprep.subr.bf16.mxu0 0
  %2926 = vmatpush2.bf16.msra.mxu0 0
  %2927 = vmatprep.subr.bf16.mxu0 0
  %2928 = vmatpush2.bf16.msra.mxu0 0
  %2929 = vmatprep.subr.bf16.mxu0 0
  %2930 = vmatpush2.bf16.msra.mxu0 0
  %2931 = vmatprep.subr.bf16.mxu0 0
  %2932 = vmatpush2.bf16.msra.mxu0 0
  %2933 = vmatprep.subr.bf16.mxu0 0
  %2934 = vmatpush2.bf16.msra.mxu0 0
  %2935 = vmatprep.subr.bf16.mxu0 0
  %2936 = vmatpush2.bf16.msra.mxu0 0
  %2937 = vmatprep.subr.bf16.mxu0 0
  %2938 = vmatpush2.bf16.msra.mxu0 0
  %2939 = vmatprep.subr.bf16.mxu0 0
  %2940 = vmatpush2.bf16.msra.mxu0 0
  %2941 = vmatprep.mubr.bf16.mxu0 0
  %2942 = vmatmul.mubr.bf16.gmra.mxu0 %v2684
  %v2943 = vpop.f32.mrf.mxu0
  %v2944 = vadd.f32 %v2697, %v2943
  %v2945 = vpop.f32.mrf.mxu0
  %v2946 = vadd.f32 %v2701, %v2945
  %v2947 = vpop.f32.mrf.mxu0
  %v2948 = vadd.f32 %v2697, %v2947
  %v2949 = vpop.f32.mrf.mxu0
  %v2950 = vadd.f32 %v2701, %v2949
  %2951 = vdwg.mxu0
  %v2952 = vmul.f32 %v2901, 0.5
  %v2953 = vmul.f32 %v2903, 0.5
  %v2954 = vmul.f32 %v2944, 0.5
  %v2955 = vmul.f32 %v2946, 0.5
  %v2956 = vmul.f32 %v2905, 0.5
  %v2957 = vmul.f32 %v2907, 0.5
  %v2958 = vmul.f32 %v2948, 0.5
  %v2959 = vmul.f32 %v2950, 0.5
  %v2960 = vmul.f32 %v2901, 0.044715
  %v2961 = vmul.f32 %v2903, 0.044715
  %v2962 = vmul.f32 %v2944, 0.044715
  %v2963 = vmul.f32 %v2946, 0.044715
  %v2964 = vmul.f32 %v2905, 0.044715
  %v2965 = vmul.f32 %v2907, 0.044715
  %v2966 = vmul.f32 %v2948, 0.044715
  %v2967 = vmul.f32 %v2950, 0.044715
  %v2968 = vmul.f32 %v2960, %v2901
  %v2969 = vmul.f32 %v2961, %v2903
  %v2970 = vmul.f32 %v2962, %v2944
  %v2971 = vmul.f32 %v2963, %v2946
  %v2972 = vmul.f32 %v2964, %v2905
  %v2973 = vmul.f32 %v2965, %v2907
  %v2974 = vmul.f32 %v2966, %v2948
  %v2975 = vmul.f32 %v2967, %v2950
  %v2976 = vmul.f32 %v2968, %v2901
  %v2977 = vmul.f32 %v2969, %v2903
  %v2978 = vmul.f32 %v2970, %v2944
  %v2979 = vmul.f32 %v2971, %v2946
  %v2980 = vmul.f32 %v2972, %v2905
  %v2981 = vmul.f32 %v2973, %v2907
  %v2982 = vmul.f32 %v2974, %v2948
  %v2983 = vmul.f32 %v2975, %v2950
  %v2984 = vadd.f32 %v2901, %v2976
  %v2985 = vadd.f32 %v2903, %v2977
  %v2986 = vadd.f32 %v2944, %v2978
  %v2987 = vadd.f32 %v2946, %v2979
  %v2988 = vadd.f32 %v2905, %v2980
  %v2989 = vadd.f32 %v2907, %v2981
  %v2990 = vadd.f32 %v2948, %v2982
  %v2991 = vadd.f32 %v2950, %v2983
  %v2992 = vmul.f32 %v2984, 0.7978846
  %v2993 = vmul.f32 %v2985, 0.7978846
  %v2994 = vmul.f32 %v2986, 0.7978846
  %v2995 = vmul.f32 %v2987, 0.7978846
  %v2996 = vmul.f32 %v2988, 0.7978846
  %v2997 = vmul.f32 %v2989, 0.7978846
  %v2998 = vmul.f32 %v2990, 0.7978846
  %v2999 = vmul.f32 %v2991, 0.7978846
  %v3000 = vtanh.pop %v2992
  %v3001 = vtanh.pop %v2993
  %v3002 = vtanh.pop %v2994
  %v3003 = vtanh.pop %v2995
  %v3004 = vtanh.pop %v2996
  %v3005 = vtanh.pop %v2997
  %v3006 = vtanh.pop %v2998
  %v3007 = vtanh.pop %v2999
  %v3008 = vadd.f32 %v3000, 1.0
  %v3009 = vadd.f32 %v3001, 1.0
  %v3010 = vadd.f32 %v3002, 1.0
  %v3011 = vadd.f32 %v3003, 1.0
  %v3012 = vadd.f32 %v3004, 1.0
  %v3013 = vadd.f32 %v3005, 1.0
  %v3014 = vadd.f32 %v3006, 1.0
  %v3015 = vadd.f32 %v3007, 1.0
  %v3016 = vmul.f32 %v2952, %v3008
  %v3017 = vmul.f32 %v2953, %v3009
  %v3018 = vmul.f32 %v2954, %v3010
  %v3019 = vmul.f32 %v2955, %v3011
  %v3020 = vmul.f32 %v2956, %v3012
  %v3021 = vmul.f32 %v2957, %v3013
  %v3022 = vmul.f32 %v2958, %v3014
  %v3023 = vmul.f32 %v2959, %v3015
  %s3024 = scalar_lea.vmem %s12, 256
  %v3025 = vld [vmem:[%s3024] sm:$0xf]
  %v3026 = vld [vmem:[%s3024 + $0x4] sm:$0xf]
  %v3027 = vld [vmem:[%s3024 + $0x8] sm:$0xf]
  %v3028 = vld [vmem:[%s3024 + $0xc] sm:$0xf]
  %v3029 = vld [vmem:[%s3024 + $0x10] sm:$0xf]
  %v3030 = vld [vmem:[%s3024 + $0x14] sm:$0xf]
  %v3031 = vld [vmem:[%s3024 + $0x18] sm:$0xf]
  %v3032 = vld [vmem:[%s3024 + $0x1c] sm:$0xf]
  %v3033 = vld [vmem:[%s3024 + $0x20] sm:$0xf]
  %v3034 = vld [vmem:[%s3024 + $0x24] sm:$0xf]
  %v3035 = vld [vmem:[%s3024 + $0x28] sm:$0xf]
  %v3036 = vld [vmem:[%s3024 + $0x2c] sm:$0xf]
  %v3037 = vld [vmem:[%s3024 + $0x30] sm:$0xf]
  %v3038 = vld [vmem:[%s3024 + $0x34] sm:$0xf]
  %v3039 = vld [vmem:[%s3024 + $0x38] sm:$0xf]
  %v3040 = vld [vmem:[%s3024 + $0x3c] sm:$0xf]
  %v3041 = vld [vmem:[%s3024 + $0x40] sm:$0xf]
  %v3042 = vld [vmem:[%s3024 + $0x44] sm:$0xf]
  %v3043 = vld [vmem:[%s3024 + $0x48] sm:$0xf]
  %v3044 = vld [vmem:[%s3024 + $0x4c] sm:$0xf]
  %v3045 = vld [vmem:[%s3024 + $0x50] sm:$0xf]
  %v3046 = vld [vmem:[%s3024 + $0x54] sm:$0xf]
  %v3047 = vld [vmem:[%s3024 + $0x58] sm:$0xf]
  %v3048 = vld [vmem:[%s3024 + $0x5c] sm:$0xf]
  %v3049 = vld [vmem:[%s3024 + $0x60] sm:$0xf]
  %v3050 = vld [vmem:[%s3024 + $0x64] sm:$0xf]
  %v3051 = vld [vmem:[%s3024 + $0x68] sm:$0xf]
  %v3052 = vld [vmem:[%s3024 + $0x6c] sm:$0xf]
  %v3053 = vld [vmem:[%s3024 + $0x70] sm:$0xf]
  %v3054 = vld [vmem:[%s3024 + $0x74] sm:$0xf]
  %v3055 = vld [vmem:[%s3024 + $0x78] sm:$0xf]
  %v3056 = vld [vmem:[%s3024 + $0x7c] sm:$0xf]
  %v3057 = vld [vmem:[%s3024 + $0x80] sm:$0xf]
  %v3058 = vld [vmem:[%s3024 + $0x84] sm:$0xf]
  %v3059 = vld [vmem:[%s3024 + $0x88] sm:$0xf]
  %v3060 = vld [vmem:[%s3024 + $0x8c] sm:$0xf]
  %v3061 = vld [vmem:[%s3024 + $0x90] sm:$0xf]
  %v3062 = vld [vmem:[%s3024 + $0x94] sm:$0xf]
  %v3063 = vld [vmem:[%s3024 + $0x98] sm:$0xf]
  %v3064 = vld [vmem:[%s3024 + $0x9c] sm:$0xf]
  %v3065 = vld [vmem:[%s3024 + $0xa0] sm:$0xf]
  %v3066 = vld [vmem:[%s3024 + $0xa4] sm:$0xf]
  %v3067 = vld [vmem:[%s3024 + $0xa8] sm:$0xf]
  %v3068 = vld [vmem:[%s3024 + $0xac] sm:$0xf]
  %v3069 = vld [vmem:[%s3024 + $0xb0] sm:$0xf]
  %v3070 = vld [vmem:[%s3024 + $0xb4] sm:$0xf]
  %v3071 = vld [vmem:[%s3024 + $0xb8] sm:$0xf]
  %v3072 = vld [vmem:[%s3024 + $0xbc] sm:$0xf]
  %v3073 = vld [vmem:[%s3024 + $0xc0] sm:$0xf]
  %v3074 = vld [vmem:[%s3024 + $0xc4] sm:$0xf]
  %v3075 = vld [vmem:[%s3024 + $0xc8] sm:$0xf]
  %v3076 = vld [vmem:[%s3024 + $0xcc] sm:$0xf]
  %v3077 = vld [vmem:[%s3024 + $0xd0] sm:$0xf]
  %v3078 = vld [vmem:[%s3024 + $0xd4] sm:$0xf]
  %v3079 = vld [vmem:[%s3024 + $0xd8] sm:$0xf]
  %v3080 = vld [vmem:[%s3024 + $0xdc] sm:$0xf]
  %v3081 = vld [vmem:[%s3024 + $0xe0] sm:$0xf]
  %v3082 = vld [vmem:[%s3024 + $0xe4] sm:$0xf]
  %v3083 = vld [vmem:[%s3024 + $0xe8] sm:$0xf]
  %v3084 = vld [vmem:[%s3024 + $0xec] sm:$0xf]
  %v3085 = vld [vmem:[%s3024 + $0xf0] sm:$0xf]
  %v3086 = vld [vmem:[%s3024 + $0xf4] sm:$0xf]
  %v3087 = vld [vmem:[%s3024 + $0xf8] sm:$0xf]
  %v3088 = vld [vmem:[%s3024 + $0xfc] sm:$0xf]
  %s3089 = scalar_lea.vmem %s13, 1
  %v3090 = vld [vmem:[%s3089] sm:$0x1]
  %v3091 = vpack.c.bf16 %v3020, %v3016
  %v3092 = vpack.c.bf16 %v3021, %v3017
  %v3093 = vpack.c.bf16 %v3022, %v3018
  %v3094 = vpack.c.bf16 %v3023, %v3019
  %v3096 = vlaneseq
  %v3097 = vshrl.u32 %v3096, 7
  %v3098 = vsub.s32 0, %v3097
  %v3099 = vrot.slane %v3090, %v3098
  %v3165 = vunpack.c.l.b16 %v3025
  %v3166 = vunpack.c.l.b16 %v3026
  %v3167 = vunpack.c.l.b16 %v3027
  %v3168 = vunpack.c.l.b16 %v3028
  %v3169 = vunpack.c.l.b16 %v3029
  %v3170 = vunpack.c.l.b16 %v3030
  %v3171 = vunpack.c.l.b16 %v3031
  %v3172 = vunpack.c.l.b16 %v3032
  %v3173 = vunpack.c.l.b16 %v3033
  %v3174 = vunpack.c.l.b16 %v3034
  %v3175 = vunpack.c.l.b16 %v3035
  %v3176 = vunpack.c.l.b16 %v3036
  %v3177 = vunpack.c.l.b16 %v3037
  %v3178 = vunpack.c.l.b16 %v3038
  %v3179 = vunpack.c.l.b16 %v3039
  %v3180 = vunpack.c.l.b16 %v3040
  %v3181 = vunpack.c.l.b16 %v3041
  %v3182 = vunpack.c.l.b16 %v3042
  %v3183 = vunpack.c.l.b16 %v3043
  %v3184 = vunpack.c.l.b16 %v3044
  %v3185 = vunpack.c.l.b16 %v3045
  %v3186 = vunpack.c.l.b16 %v3046
  %v3187 = vunpack.c.l.b16 %v3047
  %v3188 = vunpack.c.l.b16 %v3048
  %v3189 = vunpack.c.l.b16 %v3049
  %v3190 = vunpack.c.l.b16 %v3050
  %v3191 = vunpack.c.l.b16 %v3051
  %v3192 = vunpack.c.l.b16 %v3052
  %v3193 = vunpack.c.l.b16 %v3053
  %v3194 = vunpack.c.l.b16 %v3054
  %v3195 = vunpack.c.l.b16 %v3055
  %v3196 = vunpack.c.l.b16 %v3056
  %v3197 = vunpack.c.l.b16 %v3057
  %v3198 = vunpack.c.l.b16 %v3058
  %v3199 = vunpack.c.l.b16 %v3059
  %v3200 = vunpack.c.l.b16 %v3060
  %v3201 = vunpack.c.l.b16 %v3061
  %v3202 = vunpack.c.l.b16 %v3062
  %v3203 = vunpack.c.l.b16 %v3063
  %v3204 = vunpack.c.l.b16 %v3064
  %v3205 = vunpack.c.l.b16 %v3065
  %v3206 = vunpack.c.l.b16 %v3066
  %v3207 = vunpack.c.l.b16 %v3067
  %v3208 = vunpack.c.l.b16 %v3068
  %v3209 = vunpack.c.l.b16 %v3069
  %v3210 = vunpack.c.l.b16 %v3070
  %v3211 = vunpack.c.l.b16 %v3071
  %v3212 = vunpack.c.l.b16 %v3072
  %v3213 = vunpack.c.l.b16 %v3073
  %v3214 = vunpack.c.l.b16 %v3074
  %v3215 = vunpack.c.l.b16 %v3075
  %v3216 = vunpack.c.l.b16 %v3076
  %v3217 = vunpack.c.l.b16 %v3077
  %v3218 = vunpack.c.l.b16 %v3078
  %v3219 = vunpack.c.l.b16 %v3079
  %v3220 = vunpack.c.l.b16 %v3080
  %v3221 = vunpack.c.l.b16 %v3081
  %v3222 = vunpack.c.l.b16 %v3082
  %v3223 = vunpack.c.l.b16 %v3083
  %v3224 = vunpack.c.l.b16 %v3084
  %v3225 = vunpack.c.l.b16 %v3085
  %v3226 = vunpack.c.l.b16 %v3086
  %v3227 = vunpack.c.l.b16 %v3087
  %v3228 = vunpack.c.l.b16 %v3088
  %v3229 = vpack.c.b16 %v3166, %v3165
  %v3230 = vpack.c.b16 %v3168, %v3167
  %v3231 = vpack.c.b16 %v3170, %v3169
  %v3232 = vpack.c.b16 %v3172, %v3171
  %v3233 = vpack.c.b16 %v3174, %v3173
  %v3234 = vpack.c.b16 %v3176, %v3175
  %v3235 = vpack.c.b16 %v3178, %v3177
  %v3236 = vpack.c.b16 %v3180, %v3179
  %v3237 = vpack.c.b16 %v3182, %v3181
  %v3238 = vpack.c.b16 %v3184, %v3183
  %v3239 = vpack.c.b16 %v3186, %v3185
  %v3240 = vpack.c.b16 %v3188, %v3187
  %v3241 = vpack.c.b16 %v3190, %v3189
  %v3242 = vpack.c.b16 %v3192, %v3191
  %v3243 = vpack.c.b16 %v3194, %v3193
  %v3244 = vpack.c.b16 %v3196, %v3195
  %v3245 = vpack.c.b16 %v3198, %v3197
  %v3246 = vpack.c.b16 %v3200, %v3199
  %v3247 = vpack.c.b16 %v3202, %v3201
  %v3248 = vpack.c.b16 %v3204, %v3203
  %v3249 = vpack.c.b16 %v3206, %v3205
  %v3250 = vpack.c.b16 %v3208, %v3207
  %v3251 = vpack.c.b16 %v3210, %v3209
  %v3252 = vpack.c.b16 %v3212, %v3211
  %v3253 = vpack.c.b16 %v3214, %v3213
  %v3254 = vpack.c.b16 %v3216, %v3215
  %v3255 = vpack.c.b16 %v3218, %v3217
  %v3256 = vpack.c.b16 %v3220, %v3219
  %v3257 = vpack.c.b16 %v3222, %v3221
  %v3258 = vpack.c.b16 %v3224, %v3223
  %v3259 = vpack.c.b16 %v3226, %v3225
  %v3260 = vpack.c.b16 %v3228, %v3227
  %3293 = vmatprep.subr.bf16.mxu0 0
  %3294 = vmatpush1.bf16.msra.mxu0 %v3236
  %3295 = vmatprep.subr.bf16.mxu0 0
  %3296 = vmatpush1.bf16.msra.mxu0 %v3235
  %3297 = vmatprep.subr.bf16.mxu0 0
  %3298 = vmatpush1.bf16.msra.mxu0 %v3234
  %3299 = vmatprep.subr.bf16.mxu0 0
  %3300 = vmatpush1.bf16.msra.mxu0 %v3233
  %3301 = vmatprep.subr.bf16.mxu0 0
  %3302 = vmatpush1.bf16.msra.mxu0 %v3232
  %3303 = vmatprep.subr.bf16.mxu0 0
  %3304 = vmatpush1.bf16.msra.mxu0 %v3231
  %3305 = vmatprep.subr.bf16.mxu0 0
  %3306 = vmatpush1.bf16.msra.mxu0 %v3230
  %3307 = vmatprep.subr.bf16.mxu0 0
  %3308 = vmatpush1.bf16.msra.mxu0 %v3229
  %3309 = vmatprep.subr.bf16.mxu0 0
  %3310 = vmatpush2.bf16.msra.mxu0 %v3244
  %3311 = vmatprep.subr.bf16.mxu0 0
  %3312 = vmatpush2.bf16.msra.mxu0 %v3243
  %3313 = vmatprep.subr.bf16.mxu0 0
  %3314 = vmatpush2.bf16.msra.mxu0 %v3242
  %3315 = vmatprep.subr.bf16.mxu0 0
  %3316 = vmatpush2.bf16.msra.mxu0 %v3241
  %3317 = vmatprep.subr.bf16.mxu0 0
  %3318 = vmatpush2.bf16.msra.mxu0 %v3240
  %3319 = vmatprep.subr.bf16.mxu0 0
  %3320 = vmatpush2.bf16.msra.mxu0 %v3239
  %3321 = vmatprep.subr.bf16.mxu0 0
  %3322 = vmatpush2.bf16.msra.mxu0 %v3238
  %3323 = vmatprep.subr.bf16.mxu0 0
  %3324 = vmatpush2.bf16.msra.mxu0 %v3237
  %3325 = vmatprep.mubr.bf16.mxu0 %v3092
  %3326 = vmatmul.mubr.bf16.gmra.mxu0 %v3091
  %v3327 = vpop.f32.mrf.mxu0
  %v3328 = vadd.f32 %v3099, %v3327
  %v3329 = vpop.f32.mrf.mxu0
  %v3330 = vpop.f32.mrf.mxu0
  %v3331 = vadd.f32 %v3099, %v3330
  %v3332 = vpop.f32.mrf.mxu0
  %3333 = vdwg.mxu0
  %3334 = vmatprep.subr.bf16.mxu0 0
  %3335 = vmatpush1.bf16.msra.mxu0 %v3252
  %3336 = vmatprep.subr.bf16.mxu0 0
  %3337 = vmatpush1.bf16.msra.mxu0 %v3251
  %3338 = vmatprep.subr.bf16.mxu0 0
  %3339 = vmatpush1.bf16.msra.mxu0 %v3250
  %3340 = vmatprep.subr.bf16.mxu0 0
  %3341 = vmatpush1.bf16.msra.mxu0 %v3249
  %3342 = vmatprep.subr.bf16.mxu0 0
  %3343 = vmatpush1.bf16.msra.mxu0 %v3248
  %3344 = vmatprep.subr.bf16.mxu0 0
  %3345 = vmatpush1.bf16.msra.mxu0 %v3247
  %3346 = vmatprep.subr.bf16.mxu0 0
  %3347 = vmatpush1.bf16.msra.mxu0 %v3246
  %3348 = vmatprep.subr.bf16.mxu0 0
  %3349 = vmatpush1.bf16.msra.mxu0 %v3245
  %3350 = vmatprep.subr.bf16.mxu0 0
  %3351 = vmatpush2.bf16.msra.mxu0 %v3260
  %3352 = vmatprep.subr.bf16.mxu0 0
  %3353 = vmatpush2.bf16.msra.mxu0 %v3259
  %3354 = vmatprep.subr.bf16.mxu0 0
  %3355 = vmatpush2.bf16.msra.mxu0 %v3258
  %3356 = vmatprep.subr.bf16.mxu0 0
  %3357 = vmatpush2.bf16.msra.mxu0 %v3257
  %3358 = vmatprep.subr.bf16.mxu0 0
  %3359 = vmatpush2.bf16.msra.mxu0 %v3256
  %3360 = vmatprep.subr.bf16.mxu0 0
  %3361 = vmatpush2.bf16.msra.mxu0 %v3255
  %3362 = vmatprep.subr.bf16.mxu0 0
  %3363 = vmatpush2.bf16.msra.mxu0 %v3254
  %3364 = vmatprep.subr.bf16.mxu0 0
  %3365 = vmatpush2.bf16.msra.mxu0 %v3253
  %3366 = vmatprep.mubr.bf16.mxu0 %v3094
  %3367 = vmatmul.mubr.bf16.gmra.mxu0 %v3093
  %v3368 = vpop.f32.mrf.mxu0
  %v3369 = vadd.f32 %v3328, %v3368
  %v3370 = vpop.f32.mrf.mxu0
  %v3371 = vpop.f32.mrf.mxu0
  %v3372 = vadd.f32 %v3331, %v3371
  %v3373 = vpop.f32.mrf.mxu0
  %3374 = vdwg.mxu0
  %v3375 = vadd.f32 %v3369, %v2647
  %v3376 = vadd.f32 %v3372, %v2648
  %s3377 = scalar_lea.vmem %s14, 1
  %v3378 = vld [vmem:[%s3377] sm:$0x1]
  %s3379 = scalar_lea.vmem %s15, 1
  %v3380 = vld [vmem:[%s3379] sm:$0x1]
  %3381 = vadd.xlane.f32.xlu0 %v3375
  %v3382 = vpop.xlane.xlu0 %3381
  %3383 = vadd.xlane.f32.xlu0 %v3376
  %v3384 = vpop.xlane.xlu0 %3383
  %v3385 = vmul.f32 %v3382, %v76
  %v3386 = vmul.f32 %v3384, %v76
  %v3387 = vsub.f32 %v3375, %v3385
  %v3388 = vsub.f32 %v3376, %v3386
  %v3389 = vmul.f32 %v3387, %v3387
  %v3390 = vmul.f32 %v3388, %v3388
  %3391 = vadd.xlane.f32.xlu0 %v3389
  %v3392 = vpop.xlane.xlu0 %3391
  %3393 = vadd.xlane.f32.xlu0 %v3390
  %v3394 = vpop.xlane.xlu0 %3393
  %v3395 = vmul.f32 %v3392, %v76
  %v3396 = vmul.f32 %v3394, %v76
  %v3397 = vadd.f32 %v3395, 1e-12
  %v3398 = vadd.f32 %v3396, 1e-12
  %v3399 = vrsqrt.pop %v3397
  %v3400 = vrsqrt.pop %v3398
  %v3401 = vmul.f32 %v3387, %v3399
  %v3402 = vmul.f32 %v3388, %v3400
  %v3404 = vlaneseq
  %v3405 = vshrl.u32 %v3404, 7
  %v3406 = vsub.s32 0, %v3405
  %v3407 = vrot.slane %v3378, %v3406
  %v3409 = vmul.f32 %v3401, %v3407
  %v3410 = vmul.f32 %v3402, %v3407
  %v3412 = vlaneseq
  %v3413 = vshrl.u32 %v3412, 7
  %v3414 = vsub.s32 0, %v3413
  %v3415 = vrot.slane %v3380, %v3414
  %v3417 = vadd.f32 %v3409, %v3415
  %v3418 = vadd.f32 %v3410, %v3415
  %v3420 = vrot.slane %v3418, 7
  %vm3422 = vcmask 1040384
  %v3423 = vsel %vm3422, %v3417, %v3420
  %v3424 = vld [vmem:[%s16] sm:$0xf]
  %v3425 = vld [vmem:[%s16 + $0x4] sm:$0xf]
  %v3426 = vld [vmem:[%s16 + $0x8] sm:$0xf]
  %v3427 = vld [vmem:[%s16 + $0xc] sm:$0xf]
  %v3428 = vld [vmem:[%s16 + $0x10] sm:$0xf]
  %v3429 = vld [vmem:[%s16 + $0x14] sm:$0xf]
  %v3430 = vld [vmem:[%s16 + $0x18] sm:$0xf]
  %v3431 = vld [vmem:[%s16 + $0x1c] sm:$0xf]
  %v3432 = vld [vmem:[%s16 + $0x20] sm:$0xf]
  %v3433 = vld [vmem:[%s16 + $0x24] sm:$0xf]
  %v3434 = vld [vmem:[%s16 + $0x28] sm:$0xf]
  %v3435 = vld [vmem:[%s16 + $0x2c] sm:$0xf]
  %v3436 = vld [vmem:[%s16 + $0x30] sm:$0xf]
  %v3437 = vld [vmem:[%s16 + $0x34] sm:$0xf]
  %v3438 = vld [vmem:[%s16 + $0x38] sm:$0xf]
  %v3439 = vld [vmem:[%s16 + $0x3c] sm:$0xf]
  %v3440 = vld [vmem:[%s17] sm:$0x1]
  %v3441 = vpack.c.bf16 %v3423, %v3423
  %v3443 = vlaneseq
  %v3444 = vshrl.u32 %v3443, 7
  %v3445 = vsub.s32 0, %v3444
  %v3446 = vrot.slane %v3440, %v3445
  %v3464 = vunpack.c.l.b16 %v3424
  %v3465 = vunpack.c.l.b16 %v3425
  %v3466 = vunpack.c.l.b16 %v3426
  %v3467 = vunpack.c.l.b16 %v3427
  %v3468 = vunpack.c.l.b16 %v3428
  %v3469 = vunpack.c.l.b16 %v3429
  %v3470 = vunpack.c.l.b16 %v3430
  %v3471 = vunpack.c.l.b16 %v3431
  %v3472 = vunpack.c.l.b16 %v3432
  %v3473 = vunpack.c.l.b16 %v3433
  %v3474 = vunpack.c.l.b16 %v3434
  %v3475 = vunpack.c.l.b16 %v3435
  %v3476 = vunpack.c.l.b16 %v3436
  %v3477 = vunpack.c.l.b16 %v3437
  %v3478 = vunpack.c.l.b16 %v3438
  %v3479 = vunpack.c.l.b16 %v3439
  %v3480 = vpack.c.b16 %v3465, %v3464
  %v3481 = vpack.c.b16 %v3467, %v3466
  %v3482 = vpack.c.b16 %v3469, %v3468
  %v3483 = vpack.c.b16 %v3471, %v3470
  %v3484 = vpack.c.b16 %v3473, %v3472
  %v3485 = vpack.c.b16 %v3475, %v3474
  %v3486 = vpack.c.b16 %v3477, %v3476
  %v3487 = vpack.c.b16 %v3479, %v3478
  %3496 = vmatprep.subr.bf16.mxu0 0
  %3497 = vmatpush1.bf16.msra.mxu0 %v3487
  %3498 = vmatprep.subr.bf16.mxu0 0
  %3499 = vmatpush1.bf16.msra.mxu0 %v3486
  %3500 = vmatprep.subr.bf16.mxu0 0
  %3501 = vmatpush1.bf16.msra.mxu0 %v3485
  %3502 = vmatprep.subr.bf16.mxu0 0
  %3503 = vmatpush1.bf16.msra.mxu0 %v3484
  %3504 = vmatprep.subr.bf16.mxu0 0
  %3505 = vmatpush1.bf16.msra.mxu0 %v3483
  %3506 = vmatprep.subr.bf16.mxu0 0
  %3507 = vmatpush1.bf16.msra.mxu0 %v3482
  %3508 = vmatprep.subr.bf16.mxu0 0
  %3509 = vmatpush1.bf16.msra.mxu0 %v3481
  %3510 = vmatprep.subr.bf16.mxu0 0
  %3511 = vmatpush1.bf16.msra.mxu0 %v3480
  %3512 = vmatprep.subr.bf16.mxu0 0
  %3513 = vmatpush2.bf16.msra.mxu0 0
  %3514 = vmatprep.subr.bf16.mxu0 0
  %3515 = vmatpush2.bf16.msra.mxu0 0
  %3516 = vmatprep.subr.bf16.mxu0 0
  %3517 = vmatpush2.bf16.msra.mxu0 0
  %3518 = vmatprep.subr.bf16.mxu0 0
  %3519 = vmatpush2.bf16.msra.mxu0 0
  %3520 = vmatprep.subr.bf16.mxu0 0
  %3521 = vmatpush2.bf16.msra.mxu0 0
  %3522 = vmatprep.subr.bf16.mxu0 0
  %3523 = vmatpush2.bf16.msra.mxu0 0
  %3524 = vmatprep.subr.bf16.mxu0 0
  %3525 = vmatpush2.bf16.msra.mxu0 0
  %3526 = vmatprep.subr.bf16.mxu0 0
  %3527 = vmatpush2.bf16.msra.mxu0 0
  %3528 = vmatprep.mubr.bf16.mxu0 0
  %3529 = vmatmul.mubr.bf16.gmra.mxu0 %v3441
  %v3530 = vpop.f32.mrf.mxu0
  %v3531 = vadd.f32 %v3446, %v3530
  %v3532 = vpop.f32.mrf.mxu0
  %v3533 = vpop.f32.mrf.mxu0
  %v3534 = vpop.f32.mrf.mxu0
  %3535 = vdwg.mxu0
  %v3536 = vtanh.pop %v3531
  %v3537 = vld [vmem:[%s18] sm:$0xff]
  %v3538 = vld [vmem:[%s18 + $0x8] sm:$0xff]
  %v3539 = vld [vmem:[%s18 + $0x10] sm:$0xff]
  %v3540 = vld [vmem:[%s18 + $0x18] sm:$0xff]
  %v3541 = vld [vmem:[%s18 + $0x20] sm:$0xff]
  %v3542 = vld [vmem:[%s18 + $0x28] sm:$0xff]
  %v3543 = vld [vmem:[%s18 + $0x30] sm:$0xff]
  %v3544 = vld [vmem:[%s18 + $0x38] sm:$0xff]
  %v3545 = vld [vmem:[%s18 + $0x40] sm:$0xff]
  %v3546 = vld [vmem:[%s18 + $0x48] sm:$0xff]
  %v3547 = vld [vmem:[%s18 + $0x50] sm:$0xff]
  %v3548 = vld [vmem:[%s18 + $0x58] sm:$0xff]
  %v3549 = vld [vmem:[%s18 + $0x60] sm:$0xff]
  %v3550 = vld [vmem:[%s18 + $0x68] sm:$0xff]
  %v3551 = vld [vmem:[%s18 + $0x70] sm:$0xff]
  %v3552 = vld [vmem:[%s18 + $0x78] sm:$0xff]
  %v3553 = vld [vmem:[#allocation2] sm:$0x1]
  %v3555 = vlaneseq
  %v3556 = vshrl.u32 %v3555, 7
  %v3557 = vsub.s32 0, %v3556
  %v3558 = vrot.slane %v3553, %v3557
  %3560 = vmatprep.subr.mxu0 0.0
  %3561 = vmatpush1.msra.mxu0 %v3552
  %3562 = vmatprep.subr.mxu0 0.0
  %3563 = vmatpush1.msra.mxu0 %v3551
  %3564 = vmatprep.subr.mxu0 0.0
  %3565 = vmatpush1.msra.mxu0 %v3550
  %3566 = vmatprep.subr.mxu0 0.0
  %3567 = vmatpush1.msra.mxu0 %v3549
  %3568 = vmatprep.subr.mxu0 0.0
  %3569 = vmatpush1.msra.mxu0 %v3548
  %3570 = vmatprep.subr.mxu0 0.0
  %3571 = vmatpush1.msra.mxu0 %v3547
  %3572 = vmatprep.subr.mxu0 0.0
  %3573 = vmatpush1.msra.mxu0 %v3546
  %3574 = vmatprep.subr.mxu0 0.0
  %3575 = vmatpush1.msra.mxu0 %v3545
  %3576 = vmatprep.subr.mxu0 0.0
  %3577 = vmatpush1.msra.mxu0 %v3544
  %3578 = vmatprep.subr.mxu0 0.0
  %3579 = vmatpush1.msra.mxu0 %v3543
  %3580 = vmatprep.subr.mxu0 0.0
  %3581 = vmatpush1.msra.mxu0 %v3542
  %3582 = vmatprep.subr.mxu0 0.0
  %3583 = vmatpush1.msra.mxu0 %v3541
  %3584 = vmatprep.subr.mxu0 0.0
  %3585 = vmatpush1.msra.mxu0 %v3540
  %3586 = vmatprep.subr.mxu0 0.0
  %3587 = vmatpush1.msra.mxu0 %v3539
  %3588 = vmatprep.subr.mxu0 0.0
  %3589 = vmatpush1.msra.mxu0 %v3538
  %3590 = vmatprep.subr.mxu0 0.0
  %3591 = vmatpush1.msra.mxu0 %v3537
  %3592 = vmatprep.subr.mxu0 0.0
  %3593 = vmatpush2.msra.mxu0 0.0
  %3594 = vmatprep.subr.mxu0 0.0
  %3595 = vmatpush2.msra.mxu0 0.0
  %3596 = vmatprep.subr.mxu0 0.0
  %3597 = vmatpush2.msra.mxu0 0.0
  %3598 = vmatprep.subr.mxu0 0.0
  %3599 = vmatpush2.msra.mxu0 0.0
  %3600 = vmatprep.subr.mxu0 0.0
  %3601 = vmatpush2.msra.mxu0 0.0
  %3602 = vmatprep.subr.mxu0 0.0
  %3603 = vmatpush2.msra.mxu0 0.0
  %3604 = vmatprep.subr.mxu0 0.0
  %3605 = vmatpush2.msra.mxu0 0.0
  %3606 = vmatprep.subr.mxu0 0.0
  %3607 = vmatpush2.msra.mxu0 0.0
  %3608 = vmatprep.subr.mxu0 0.0
  %3609 = vmatpush2.msra.mxu0 0.0
  %3610 = vmatprep.subr.mxu0 0.0
  %3611 = vmatpush2.msra.mxu0 0.0
  %3612 = vmatprep.subr.mxu0 0.0
  %3613 = vmatpush2.msra.mxu0 0.0
  %3614 = vmatprep.subr.mxu0 0.0
  %3615 = vmatpush2.msra.mxu0 0.0
  %3616 = vmatprep.subr.mxu0 0.0
  %3617 = vmatpush2.msra.mxu0 0.0
  %3618 = vmatprep.subr.mxu0 0.0
  %3619 = vmatpush2.msra.mxu0 0.0
  %3620 = vmatprep.subr.mxu0 0.0
  %3621 = vmatpush2.msra.mxu0 0.0
  %3622 = vmatprep.subr.mxu0 0.0
  %3623 = vmatpush2.msra.mxu0 0.0
  %3624 = vmatprep.mubr.f32.mxu0 0.0
  %3625 = vmatmul.mubr.f32.gmra.mxu0 %v3536
  %v3626 = vpop.f32.mrf.mxu0
  %v3627 = vadd.f32 %v3558, %v3626
  %v3628 = vpop.f32.mrf.mxu0
  %3629 = vdwg.mxu0
  %v3630 = vmul.f32 %v3627, 0.5
  %v3631 = vtanh.pop %v3630
  %v3632 = vadd.f32 %v3631, 1.0
  %v3633 = vmul.f32 %v3632, 0.5
  %vm3634 = vcmask 1024
  %3635 = vst.msk [vmem:[%s20] sm:$0x3] %vm3634, %v3633
  // Predicated region
  $region82: #{bert_class_forward.1} parent=0 // pred_check
    _
  $region83: #{bert_class_forward.1} parent=0 // pred_check_branch
    %3637 = sbr.rel (0) target = $region85
  $region84: #{bert_class_forward.1} parent=0 // pred_region
    _
  $region85: #{bert_class_forward.1} parent=0 // pred_fallthru
    _
  // Predicated region
  $region86: #{bert_class_forward.1} parent=0 // pred_check
    _
  $region87: #{bert_class_forward.1} parent=0 // pred_check_branch
    %3639 = sbr.rel (0) target = $region89
  $region88: #{bert_class_forward.1} parent=0 // pred_region
    _
  $region89: #{bert_class_forward.1} parent=0 // pred_fallthru
    _

</llo_original>
